<compile_context>
chip_gen: v7x
topology: tpu7x:2x2x1
jax: 0.10.0
libtpu: 0.0.40
codegen_flags: <defaults>
</compile_context>

<pallas_src>
import jax
import jax.numpy as jnp
from jax import lax
from jax.experimental import pallas as pl
from jax.experimental.pallas import tpu as pltpu

BN_EPS = 1e-5     # nn.BatchNorm1d default eps
L2_EPS = 1e-12    # F.normalize default eps
BINS = 16         # HPP bin_num=[16] == SeparateFCs/SeparateBNNecks parts_num


# ---------------------------------------------------------------------------
# Fused kernel.  grid = (n, s_tiles): per sample, the temporal max is
# accumulated over sequence tiles in a VMEM scratch; the head runs once on the
# last tile, fully batched over the 16 bins/parts.
# ---------------------------------------------------------------------------
def _direction_head_kernel(x_ref, w1_ref, bn_scale_ref, bn_shift_ref, w2n_ref,
                           e1_ref, e2_ref, logit_ref, macc_ref):
    # x_ref:        (1, c_in, s_tile, h*w)   one sequence tile, hw lane-dense
    # w1_ref:       (p, c_in, c_out)         SeparateFCs weights
    # bn_scale_ref: (p, c_out)               folded eval-mode BN scale
    # bn_shift_ref: (p, c_out)               folded eval-mode BN shift
    # w2n_ref:      (p, c_out, ncls)         pre-L2-normalized classifier weights
    # outputs:      (1, p, c_out) / (1, p, c_out) / (1, p, ncls)
    # macc_ref:     (c_in, h*w)              running temporal max (scratch)
    t = pl.program_id(1)
    c_in = x_ref.shape[1]
    s_blk = x_ref.shape[2]
    hw = x_ref.shape[3]
    e = hw // BINS

    @pl.when(t == 0)
    def _():
        macc_ref[...] = jnp.full(macc_ref.shape, -jnp.inf, macc_ref.dtype)

    # --- temporal max for this sequence tile -------------------------------
    # Frame chunks are sublane-tile aligned (multiples of 8) so each slice is
    # relayout-free; each chunk reduces on the sublane axis while the hw axis
    # stays fully lane-dense.
    ch = 8 if s_blk % 8 == 0 else s_blk
    m = jnp.max(x_ref[0, :, 0:ch, :], axis=1)                     # (c, hw)
    for k in range(1, s_blk // ch):
        m = jnp.maximum(m, jnp.max(x_ref[0, :, k * ch:(k + 1) * ch, :], axis=1))
    macc_ref[...] = jnp.maximum(macc_ref[...], m)

    # --- head: only on the last sequence tile -------------------------------
    @pl.when(t == pl.num_programs(1) - 1)
    def _():
        # HPP: all 16 bins at once.  One small transpose of the pooled map,
        # a trivial leading-dim split (hw = BINS*e), two batched reductions.
        mT = jnp.transpose(macc_ref[...], (1, 0))                  # (hw, c)
        z = mT.reshape(BINS, e, c_in)                              # (p, e, c)
        feat = jnp.mean(z, axis=1) + jnp.max(z, axis=1)            # (p, c_in)

        # SeparateFCs: one batched contraction over c_in for all 16 parts.
        e1 = jnp.sum(feat[:, :, None] * w1_ref[...], axis=1)       # (p, c_out)
        e1_ref[0] = e1.astype(e1_ref.dtype)

        # SeparateBNNecks: folded eval-mode BN + L2 normalize, full-tile math.
        xbn = e1 * bn_scale_ref[...] + bn_shift_ref[...]
        # F.normalize: x / max(||x||, eps) == x * rsqrt(max(||x||^2, eps^2))
        ssq = jnp.sum(xbn * xbn, axis=-1, keepdims=True)
        fnorm = xbn * lax.rsqrt(jnp.maximum(ssq, L2_EPS * L2_EPS))
        e2_ref[0] = fnorm.astype(e2_ref.dtype)

        # Cosine logits against pre-normalized class weights, all parts at once.
        logits = jnp.sum(fnorm[:, :, None] * w2n_ref[...], axis=1)  # (p, ncls)
        logit_ref[0] = logits.astype(logit_ref.dtype)


# ---------------------------------------------------------------------------
# Parameter preparation (done once, at parameter-load time).
# ---------------------------------------------------------------------------
def prepare_params(params, parts=BINS):
    c_out = params['fc_bin'].shape[-1]

    # BatchNorm1d runs on the flattened [n, c_out*p] features: flat index
    # j = c_idx * p + p_idx  ->  reshape (c_out, p), transpose to (p, c_out).
    def per_part(v):
        return jnp.transpose(v.reshape(c_out, parts), (1, 0))

    gamma = per_part(params['bn_gamma'])
    beta = per_part(params['bn_beta'])
    mean = per_part(params['bn_mean'])
    var = per_part(params['bn_var'])

    # Fold eval-mode BN into y = x * scale + shift.
    scale = gamma * lax.rsqrt(var + BN_EPS)
    shift = beta - mean * scale

    # F.normalize(fc_bin, dim=1): normalize each class column over c_out.
    w2 = params['bnneck_fc_bin']
    w2n = w2 / jnp.maximum(
        jnp.sqrt(jnp.sum(w2 * w2, axis=1, keepdims=True)), L2_EPS)

    return {'fc_bin': params['fc_bin'], 'bn_scale': scale,
            'bn_shift': shift, 'w2n': w2n}


# ---------------------------------------------------------------------------
# Forward wrapper.
# ---------------------------------------------------------------------------
def direction_estimation_forward(features, vies, prep, use_emb2=False,
                                 s_tile=None):
    n, c_in, s, h, w = features.shape
    hw = h * w
    assert hw % BINS == 0, "HPP bin_num=[16] requires h*w divisible by 16"
    x = features.reshape(n, c_in, s, hw)                     # contiguous view

    fc_bin = prep['fc_bin']
    bn_scale = prep['bn_scale']
    bn_shift = prep['bn_shift']
    w2n = prep['w2n']
    p, _, c_out = fc_bin.shape
    assert p == BINS
    ncls = w2n.shape[-1]

    # --- temporal tiling (second, "arbitrary" grid axis) --------------------
    # Sized against a ~4 MiB input block so the double-buffered input stays
    # well under v5e's 16 MiB default scoped VMEM (and v7x's 32 MiB) at any
    # sequence length.  s_tile must be a multiple of 8 (sublane tiling) or the
    # full sequence; remainder frames are padded with -inf (never zero).
    if s_tile is None:
        budget = 4 * 1024 * 1024
        frames = max(8, (budget // (c_in * hw * 4)) // 8 * 8)
        s_tile = s if s <= frames else frames
    if s_tile >= s:
        s_tile = s
        s_pad = s
    else:
        assert s_tile % 8 == 0, "temporal tile must be a multiple of 8 frames"
        s_pad = ((s + s_tile - 1) // s_tile) * s_tile
        if s_pad != s:
            x = jnp.pad(x, ((0, 0), (0, 0), (0, s_pad - s), (0, 0)),
                        constant_values=-jnp.inf)
    num_t = s_pad // s_tile

    e1, e2, logits = pl.pallas_call(
        _direction_head_kernel,
        out_shape=(
            jax.ShapeDtypeStruct((n, p, c_out), jnp.float32),
            jax.ShapeDtypeStruct((n, p, c_out), jnp.float32),
            jax.ShapeDtypeStruct((n, p, ncls), jnp.float32),
        ),
        grid=(n, num_t),
        in_specs=[
            pl.BlockSpec((1, c_in, s_tile, hw), lambda i, t: (i, 0, t, 0)),
            pl.BlockSpec((p, c_in, c_out), lambda i, t: (0, 0, 0)),
            pl.BlockSpec((p, c_out), lambda i, t: (0, 0)),
            pl.BlockSpec((p, c_out), lambda i, t: (0, 0)),
            pl.BlockSpec((p, c_out, ncls), lambda i, t: (0, 0, 0)),
        ],
        out_specs=(
            pl.BlockSpec((1, p, c_out), lambda i, t: (i, 0, 0)),
            pl.BlockSpec((1, p, c_out), lambda i, t: (i, 0, 0)),
            pl.BlockSpec((1, p, ncls), lambda i, t: (i, 0, 0)),
        ),
        scratch_shapes=[pltpu.VMEM((c_in, hw), jnp.float32)],
        compiler_params=pltpu.CompilerParams(
            dimension_semantics=("parallel", "arbitrary")),
    )(x, fc_bin, bn_scale, bn_shift, w2n)

    embed_1 = jnp.transpose(e1, (0, 2, 1))        # [n, c_out, p]
    embed_2 = jnp.transpose(e2, (0, 2, 1))        # [n, c_out, p]
    logits_t = jnp.transpose(logits, (0, 2, 1))   # [n, ncls, p]
    embed = embed_2 if use_emb2 else embed_1
    return {
        'training_feat': {'softmax': {'logits': logits_t, 'labels': vies}},
        'inference_feat': {'embeddings': embed},
    }


# ---------------------------------------------------------------------------
# Deterministic synthetic parameters (shapes from build_network / init).
# ---------------------------------------------------------------------------
def init_params(key, parts, c_in, c_out, num_classes):
    k1, k2, k3 = jax.random.split(key, 3)
    b1 = (6.0 / (c_in + c_out)) ** 0.5            # xavier-uniform style bound
    b2 = (6.0 / (c_out + num_classes)) ** 0.5
    return dict(
        fc_bin=jax.random.uniform(k1, (parts, c_in, c_out), jnp.float32, -b1, b1),
        bnneck_fc_bin=jax.random.uniform(
            k2, (parts, c_out, num_classes), jnp.float32, -b2, b2),
        # BN affine: weight ~ N(1, 0.02), bias = 0; running stats at defaults.
        bn_gamma=1.0 + 0.02 * jax.random.normal(k3, (c_out * parts,), jnp.float32),
        bn_beta=jnp.zeros((c_out * parts,), jnp.float32),
        bn_mean=jnp.zeros((c_out * parts,), jnp.float32),
        bn_var=jnp.ones((c_out * parts,), jnp.float32),
    )


# Pure-JAX reference of the same forward (from the raw PyTorch-style params),
# used only for a correctness check.
def reference_forward(features, params, bins=BINS):
    n, c, s, h, w = features.shape
    outs = jnp.max(features, axis=2)                          # [n, c, h, w]
    z = outs.reshape(n, c, bins, -1)
    feat = z.mean(-1) + z.max(-1)                             # [n, c, bins]
    f_pnc = jnp.transpose(feat, (2, 0, 1))                    # [p, n, c_in]
    e1 = jnp.einsum('pnc,pco->pno', f_pnc, params['fc_bin'])  # [p, n, c_out]
    c_out = params['fc_bin'].shape[-1]
    e1_ncp = jnp.transpose(e1, (1, 2, 0))                     # [n, c_out, p]
    flat = e1_ncp.reshape(n, c_out * bins)
    bn = ((flat - params['bn_mean']) / jnp.sqrt(params['bn_var'] + BN_EPS)
          * params['bn_gamma'] + params['bn_beta'])
    x = jnp.transpose(bn.reshape(n, c_out, bins), (2, 0, 1))  # [p, n, c_out]
    xn = x / jnp.maximum(jnp.linalg.norm(x, axis=-1, keepdims=True), L2_EPS)
    w2 = params['bnneck_fc_bin']
    w2n = w2 / jnp.maximum(jnp.linalg.norm(w2, axis=1, keepdims=True), L2_EPS)
    logits = jnp.einsum('pnc,pck->pnk', xn, w2n)
    e2_ncp = jnp.transpose(xn, (1, 2, 0))                     # [n, c_out, p]
    return e1_ncp, e2_ncp, jnp.transpose(logits, (1, 2, 0))


if __name__ == "__main__":
    key = jax.random.PRNGKey(0)
    kf, kp = jax.random.split(key)

    # Small shapes: batch=2, seq=12, spatial=16x16, Backbone channels [16,32,32,64].
    # s=12 with s_tile=8 exercises both the multi-tile running max and the
    # -inf sequence padding path.
    n, s, h, w = 2, 12, 16, 16
    channels = [16, 32, 32, 64]
    c_in, c_out, parts, ncls = channels[3], channels[2], 16, 11

    features = jax.random.normal(kf, (n, c_in, s, h, w), jnp.float32)
    vies = jnp.zeros((n,), jnp.int32)
    params = init_params(kp, parts, c_in, c_out, ncls)
    prep = prepare_params(params, parts)   # one-time parameter folding

    fwd = jax.jit(direction_estimation_forward,
                  static_argnames=("use_emb2", "s_tile"))
    retval = fwd(features, vies, prep, use_emb2=False, s_tile=8)
    logits = retval['training_feat']['softmax']['logits']
    embed = retval['inference_feat']['embeddings']
    retval2 = fwd(features, vies, prep, use_emb2=True, s_tile=8)
    embed2 = retval2['inference_feat']['embeddings']
    jax.block_until_ready((logits, embed, embed2))

    assert logits.shape == (n, ncls, parts)
    assert embed.shape == (n, c_out, parts)
    assert embed2.shape == (n, c_out, parts)

    ref_e1, ref_e2, ref_logits = reference_forward(features, params)
    assert jnp.allclose(embed, ref_e1, rtol=1e-4, atol=1e-4)
    assert jnp.allclose(embed2, ref_e2, rtol=1e-4, atol=1e-4)
    assert jnp.allclose(logits, ref_logits, rtol=1e-4, atol=1e-4)

    print("KERNEL_OK")
</pallas_src>

<mosaic_0001>
module attributes {stable_mosaic.version = 11 : i64} {
  func.func @_direction_head_kernel(%arg0: i32, %arg1: i32, %arg2: memref<1x64x8x256xf32, #tpu.memory_space<vmem>>, %arg3: memref<16x64x32xf32, #tpu.memory_space<vmem>>, %arg4: memref<16x32xf32, #tpu.memory_space<vmem>>, %arg5: memref<16x32xf32, #tpu.memory_space<vmem>>, %arg6: memref<16x32x11xf32, #tpu.memory_space<vmem>>, %arg7: memref<1x16x32xf32, #tpu.memory_space<vmem>>, %arg8: memref<1x16x32xf32, #tpu.memory_space<vmem>>, %arg9: memref<1x16x11xf32, #tpu.memory_space<vmem>>, %arg10: memref<64x256xf32, #tpu.memory_space<vmem>>) attributes {dimension_semantics = [#tpu.dimension_semantics<parallel>, #tpu.dimension_semantics<arbitrary>], iteration_bounds = array<i64: 2, 2>, scalar_prefetch = 0 : i64, scratch_operands = 1 : i64, tpu.core_type = #tpu.core_type<tc>, window_params = [{transform_indices = @transform_0, window_bounds = array<i64: 1, 64, 8, 256>}, {pipeline_mode = #tpu.pipeline_mode<synchronous>, transform_indices = @transform_1, window_bounds = array<i64: 16, 64, 32>}, {pipeline_mode = #tpu.pipeline_mode<synchronous>, transform_indices = @transform_2, window_bounds = array<i64: 16, 32>}, {pipeline_mode = #tpu.pipeline_mode<synchronous>, transform_indices = @transform_3, window_bounds = array<i64: 16, 32>}, {pipeline_mode = #tpu.pipeline_mode<synchronous>, transform_indices = @transform_4, window_bounds = array<i64: 16, 32, 11>}, {transform_indices = @transform_5, window_bounds = array<i64: 1, 16, 32>}, {transform_indices = @transform_6, window_bounds = array<i64: 1, 16, 32>}, {transform_indices = @transform_7, window_bounds = array<i64: 1, 16, 11>}]} {
    %c0_i32 = arith.constant 0 : i32
    %0 = arith.cmpi eq, %arg1, %c0_i32 : i32
    %1 = arith.extui %0 : i1 to i32
    %c0_i32_0 = arith.constant 0 : i32
    %2 = arith.cmpi ne, %1, %c0_i32_0 : i32
    scf.if %2 {
      %cst_9 = arith.constant 0xFF800000 : f32
      %12 = vector.broadcast %cst_9 : f32 to vector<64x256xf32>
      %c0_10 = arith.constant 0 : index
      %c0_11 = arith.constant 0 : index
      %13 = vector.load %arg10[%c0_10, %c0_11] : memref<64x256xf32, #tpu.memory_space<vmem>>, vector<64x256xf32>
      tpu.vector_store %arg10[%c0_10, %c0_11], %12 {strides = array<i32>} : memref<64x256xf32, #tpu.memory_space<vmem>>, vector<64x256xf32>,
    } else {
    }
    %c0 = arith.constant 0 : index
    %c0_1 = arith.constant 0 : index
    %c0_2 = arith.constant 0 : index
    %c0_3 = arith.constant 0 : index
    %3 = vector.load %arg2[%c0, %c0_1, %c0_2, %c0_3] : memref<1x64x8x256xf32, #tpu.memory_space<vmem>>, vector<1x64x8x256xf32>
    %4 = vector.shape_cast %3 : vector<1x64x8x256xf32> to vector<64x8x256xf32>
    %cst = arith.constant dense<0xFF800000> : vector<64x256xf32>
    %5 = vector.multi_reduction <maximumf>, %4, %cst [1] : vector<64x8x256xf32> to vector<64x256xf32>
    %c0_4 = arith.constant 0 : index
    %c0_5 = arith.constant 0 : index
    %6 = vector.load %arg10[%c0_4, %c0_5] : memref<64x256xf32, #tpu.memory_space<vmem>>, vector<64x256xf32>
    %7 = arith.maximumf %6, %5 : vector<64x256xf32>
    %c0_6 = arith.constant 0 : index
    %c0_7 = arith.constant 0 : index
    %8 = vector.load %arg10[%c0_6, %c0_7] : memref<64x256xf32, #tpu.memory_space<vmem>>, vector<64x256xf32>
    tpu.vector_store %arg10[%c0_6, %c0_7], %7 {strides = array<i32>} : memref<64x256xf32, #tpu.memory_space<vmem>>, vector<64x256xf32>,
    %c1_i32 = arith.constant 1 : i32
    %9 = arith.cmpi eq, %arg1, %c1_i32 : i32
    %10 = arith.extui %9 : i1 to i32
    %c0_i32_8 = arith.constant 0 : i32
    %11 = arith.cmpi ne, %10, %c0_i32_8 : i32
    scf.if %11 {
      %c0_9 = arith.constant 0 : index
      %c0_10 = arith.constant 0 : index
      %12 = vector.load %arg10[%c0_9, %c0_10] : memref<64x256xf32, #tpu.memory_space<vmem>>, vector<64x256xf32>
      %13 = tpu.transpose %12, [1, 0] : vector<64x256xf32> -> vector<256x64xf32>
      %14 = vector.shape_cast %13 : vector<256x64xf32> to vector<16x16x64xf32>
      %cst_11 = arith.constant dense<0.000000e+00> : vector<16x64xf32>
      %15 = vector.multi_reduction <add>, %14, %cst_11 [1] : vector<16x16x64xf32> to vector<16x64xf32>
      %cst_12 = arith.constant 1.600000e+01 : f32
      %16 = vector.broadcast %cst_12 : f32 to vector<16x64xf32>
      %17 = arith.divf %15, %16 : vector<16x64xf32>
      %cst_13 = arith.constant dense<0xFF800000> : vector<16x64xf32>
      %18 = vector.multi_reduction <maximumf>, %14, %cst_13 [1] : vector<16x16x64xf32> to vector<16x64xf32>
      %19 = arith.addf %17, %18 : vector<16x64xf32>
      %20 = vector.shape_cast %19 : vector<16x64xf32> to vector<16x64x1xf32>
      %c0_14 = arith.constant 0 : index
      %c0_15 = arith.constant 0 : index
      %c0_16 = arith.constant 0 : index
      %21 = vector.load %arg3[%c0_14, %c0_15, %c0_16] : memref<16x64x32xf32, #tpu.memory_space<vmem>>, vector<16x64x32xf32>
      %22 = vector.broadcast %20 : vector<16x64x1xf32> to vector<16x64x32xf32>
      %23 = arith.mulf %22, %21 : vector<16x64x32xf32>
      %cst_17 = arith.constant dense<0.000000e+00> : vector<16x32xf32>
      %24 = vector.multi_reduction <add>, %23, %cst_17 [1] : vector<16x64x32xf32> to vector<16x32xf32>
      %c0_18 = arith.constant 0 : index
      %c0_19 = arith.constant 0 : index
      %c0_20 = arith.constant 0 : index
      %25 = vector.load %arg7[%c0_18, %c0_19, %c0_20] : memref<1x16x32xf32, #tpu.memory_space<vmem>>, vector<1x16x32xf32>
      %26 = vector.shape_cast %25 : vector<1x16x32xf32> to vector<16x32xf32>
      %27 = vector.shape_cast %24 : vector<16x32xf32> to vector<1x16x32xf32>
      tpu.vector_store %arg7[%c0_18, %c0_19, %c0_20], %27 {strides = array<i32>} : memref<1x16x32xf32, #tpu.memory_space<vmem>>, vector<1x16x32xf32>,
      %c0_21 = arith.constant 0 : index
      %c0_22 = arith.constant 0 : index
      %28 = vector.load %arg4[%c0_21, %c0_22] : memref<16x32xf32, #tpu.memory_space<vmem>>, vector<16x32xf32>
      %29 = arith.mulf %24, %28 : vector<16x32xf32>
      %c0_23 = arith.constant 0 : index
      %c0_24 = arith.constant 0 : index
      %30 = vector.load %arg5[%c0_23, %c0_24] : memref<16x32xf32, #tpu.memory_space<vmem>>, vector<16x32xf32>
      %31 = arith.addf %29, %30 : vector<16x32xf32>
      %32 = arith.mulf %31, %31 : vector<16x32xf32>
      %cst_25 = arith.constant dense<0.000000e+00> : vector<16xf32>
      %33 = vector.multi_reduction <add>, %32, %cst_25 [1] : vector<16x32xf32> to vector<16xf32>
      %34 = vector.shape_cast %33 : vector<16xf32> to vector<16x1xf32>
      %cst_26 = arith.constant 1.000000e-24 : f32
      %35 = vector.broadcast %cst_26 : f32 to vector<16x1xf32>
      %36 = arith.maximumf %34, %35 : vector<16x1xf32>
      %37 = math.rsqrt %36 : vector<16x1xf32>
      %38 = vector.broadcast %37 : vector<16x1xf32> to vector<16x32xf32>
      %39 = arith.mulf %31, %38 : vector<16x32xf32>
      %c0_27 = arith.constant 0 : index
      %c0_28 = arith.constant 0 : index
      %c0_29 = arith.constant 0 : index
      %40 = vector.load %arg8[%c0_27, %c0_28, %c0_29] : memref<1x16x32xf32, #tpu.memory_space<vmem>>, vector<1x16x32xf32>
      %41 = vector.shape_cast %40 : vector<1x16x32xf32> to vector<16x32xf32>
      %42 = vector.shape_cast %39 : vector<16x32xf32> to vector<1x16x32xf32>
      tpu.vector_store %arg8[%c0_27, %c0_28, %c0_29], %42 {strides = array<i32>} : memref<1x16x32xf32, #tpu.memory_space<vmem>>, vector<1x16x32xf32>,
      %43 = vector.shape_cast %39 : vector<16x32xf32> to vector<16x32x1xf32>
      %c0_30 = arith.constant 0 : index
      %c0_31 = arith.constant 0 : index
      %c0_32 = arith.constant 0 : index
      %44 = vector.load %arg6[%c0_30, %c0_31, %c0_32] : memref<16x32x11xf32, #tpu.memory_space<vmem>>, vector<16x32x11xf32>
      %45 = vector.broadcast %43 : vector<16x32x1xf32> to vector<16x32x11xf32>
      %46 = arith.mulf %45, %44 : vector<16x32x11xf32>
      %cst_33 = arith.constant dense<0.000000e+00> : vector<16x11xf32>
      %47 = vector.multi_reduction <add>, %46, %cst_33 [1] : vector<16x32x11xf32> to vector<16x11xf32>
      %c0_34 = arith.constant 0 : index
      %c0_35 = arith.constant 0 : index
      %c0_36 = arith.constant 0 : index
      %48 = vector.load %arg9[%c0_34, %c0_35, %c0_36] : memref<1x16x11xf32, #tpu.memory_space<vmem>>, vector<1x16x11xf32>
      %49 = vector.shape_cast %48 : vector<1x16x11xf32> to vector<16x11xf32>
      %50 = vector.shape_cast %47 : vector<16x11xf32> to vector<1x16x11xf32>
      tpu.vector_store %arg9[%c0_34, %c0_35, %c0_36], %50 {strides = array<i32>} : memref<1x16x11xf32, #tpu.memory_space<vmem>>, vector<1x16x11xf32>,
    } else {
    }
    return
  }
  func.func @transform_0(%arg0: i32, %arg1: i32) -> (i32, i32, i32, i32) {
    %c0_i32 = arith.constant 0 : i32
    %c0_i32_0 = arith.constant 0 : i32
    %c0_i32_1 = arith.constant 0 : i32
    return %arg0, %c0_i32, %arg1, %c0_i32_0 : i32, i32, i32, i32
  }
  func.func @transform_1(%arg0: i32, %arg1: i32) -> (i32, i32, i32) {
    %c0_i32 = arith.constant 0 : i32
    %c0_i32_0 = arith.constant 0 : i32
    %c0_i32_1 = arith.constant 0 : i32
    %c0_i32_2 = arith.constant 0 : i32
    return %c0_i32, %c0_i32_0, %c0_i32_1 : i32, i32, i32
  }
  func.func @transform_2(%arg0: i32, %arg1: i32) -> (i32, i32) {
    %c0_i32 = arith.constant 0 : i32
    %c0_i32_0 = arith.constant 0 : i32
    %c0_i32_1 = arith.constant 0 : i32
    return %c0_i32, %c0_i32_0 : i32, i32
  }
  func.func @transform_3(%arg0: i32, %arg1: i32) -> (i32, i32) {
    %c0_i32 = arith.constant 0 : i32
    %c0_i32_0 = arith.constant 0 : i32
    %c0_i32_1 = arith.constant 0 : i32
    return %c0_i32, %c0_i32_0 : i32, i32
  }
  func.func @transform_4(%arg0: i32, %arg1: i32) -> (i32, i32, i32) {
    %c0_i32 = arith.constant 0 : i32
    %c0_i32_0 = arith.constant 0 : i32
    %c0_i32_1 = arith.constant 0 : i32
    %c0_i32_2 = arith.constant 0 : i32
    return %c0_i32, %c0_i32_0, %c0_i32_1 : i32, i32, i32
  }
  func.func @transform_5(%arg0: i32, %arg1: i32) -> (i32, i32, i32) {
    %c0_i32 = arith.constant 0 : i32
    %c0_i32_0 = arith.constant 0 : i32
    %c0_i32_1 = arith.constant 0 : i32
    return %arg0, %c0_i32, %c0_i32_0 : i32, i32, i32
  }
  func.func @transform_6(%arg0: i32, %arg1: i32) -> (i32, i32, i32) {
    %c0_i32 = arith.constant 0 : i32
    %c0_i32_0 = arith.constant 0 : i32
    %c0_i32_1 = arith.constant 0 : i32
    return %arg0, %c0_i32, %c0_i32_0 : i32, i32, i32
  }
  func.func @transform_7(%arg0: i32, %arg1: i32) -> (i32, i32, i32) {
    %c0_i32 = arith.constant 0 : i32
    %c0_i32_0 = arith.constant 0 : i32
    %c0_i32_1 = arith.constant 0 : i32
    return %arg0, %c0_i32, %c0_i32_0 : i32, i32, i32
  }
}

</mosaic_0001>

<llo_original>
// kernel: direction_estimation_forward.1
$region0: #{direction_estimation_forward.1}
  #allocation0 [shape = 'u32[]', space=smem, size = 0x4, offset = 0x4, fixed_abs, tag = 'smem constant byte address 0x4 - core index']
  #allocation1 [shape = 'u32[144,128]{1,0:T(1,128)}', space=vmem, size = 0x12000, scoped, tag = 'internal scratch']
  #allocation2 [shape = 'f32[64,256]{1,0:T(8,128)}', space=vmem, size = 0x10000, scoped, tag = 'scratch operand']
  %s0 = inlined_call_operand.vmem [shape: f32[2,64,16,256], index: 0, kind: input, shape index: {}]
  %s1 = inlined_call_operand.vmem [shape: f32[16,64,32], index: 1, kind: input, shape index: {}]
  %s2 = inlined_call_operand.vmem [shape: f32[16,32], index: 2, kind: input, shape index: {}]
  %s3 = inlined_call_operand.vmem [shape: f32[16,32], index: 3, kind: input, shape index: {}]
  %s4 = inlined_call_operand.vmem [shape: f32[16,32,11], index: 4, kind: input, shape index: {}]
  %s5 = inlined_call_operand.hbm [shape: f32[2,16,32], index: 5, kind: output, shape index: {0}]
  %s6 = inlined_call_operand.hbm [shape: f32[2,16,32], index: 6, kind: output, shape index: {1}]
  %s7 = inlined_call_operand.vmem [shape: f32[2,16,11], index: 7, kind: output, shape index: {2}]
  %8 = xla_tuple %s5, %s6, %s7
  %s9 = sld [smem:[#allocation0]]
  $region100: #{direction_estimation_forward.1} parent=0
    _
  %s11 = ssub.s32 1, %s9
  %s12 = scalar_select 0, %s11, %s9
  $region1: #{direction_estimation_forward.1} parent=0
    #allocation3 [shape = 'u8[1048576]{0}', space=vmem, size = 0x100000, scoped, tag = 'input window, operand 0']
    #allocation4 [shape = 'u8[16384]{0}', space=vmem, size = 0x4000, scoped, tag = 'output window, operand 0']
    #allocation5 [shape = 's32[2]{0}', space=sflag, size = 0x8, scoped, tag = 'scoped memory for direction_estimation_forward.1']
    #allocation6 [shape = 'u8[16384]{0}', space=vmem, size = 0x4000, scoped, tag = 'output window, operand 1']
    #allocation7 [shape = 's32[2]{0}', space=sflag, size = 0x8, scoped, tag = 'scoped memory for direction_estimation_forward.1']
    %13 = vsyncpa [#allocation5], 0
    %s14 = scalar_lea.sflag [#allocation5], 1
    %15 = vsyncpa %s14, 0
    %16 = vsyncpa [#allocation7], 0
    %s17 = scalar_lea.sflag [#allocation7], 1
    %18 = vsyncpa %s17, 0
    loop: start=0, step=1, limit=6
    $region2: #{direction_estimation_forward.1} parent=1 // loop_pre_header
      _
    $region3: #{direction_estimation_forward.1} parent=1 // loop_header
      %s20 = sphi 0, %s24
      %p21 = scmp.ge.s32.totalorder %s20, 6
      %s27 = sphi 0, %s39
      %s28 = sphi 0, %s35
      %s29 = sphi 0, %s27
      %s30 = sphi 0, %s28
      %s31 = sphi 0, %s29
      %s32 = sphi 0, %s30
      %s44 = sphi 0, %s46
      %s47 = sphi 0, %s44
      %s48 = sphi 0, %s47
      %s64 = sphi 0, %s48
      %s68 = sphi 0, %s68
      %s70 = sphi 0, %s68
      %s71 = sphi 0, %s70
      %s85 = sphi 0, %s71
      %s89 = sphi 0, %s89
      %s91 = sphi 0, %s89
      %s92 = sphi 0, %s91
      %s106 = sphi 0, %s92
      %s110 = sphi 0, %s110
      %s112 = sphi 0, %s110
      %s113 = sphi 0, %s112
      %s127 = sphi 0, %s113
      %s131 = sphi 0, %s131
      %s133 = sphi 0, %s131
      %s134 = sphi 0, %s133
      %s148 = sphi 0, %s134
      %s154 = sphi 0, %s156
      %s157 = sphi 0, %s154
      %s158 = sphi 0, %s157
      %s174 = sphi 0, %s158
      %s180 = sphi 0, %s182
      %s183 = sphi 0, %s180
      %s184 = sphi 0, %s183
      %s200 = sphi 0, %s184
      %s206 = sphi 0, %s208
      %s209 = sphi 0, %s206
      %s210 = sphi 0, %s209
      %s226 = sphi 0, %s210
    $region4: #{direction_estimation_forward.1} parent=1 // loop_header_branch
      %23 = sbr.rel (%p21) target = $region8
    $region5: #{direction_estimation_forward.1} parent=1 // loop_body
      %s25 = ssub.s32 %s20, 1
      %s26 = ssub.s32 %s20, 2
      %s33 = sadd.s32 1, %s28
      %p34 = scmp.ge.s32.totalorder %s33, 2
      %s35 = scalar_select %p34, 0, %s33
      %s36 = sadd.s32 1, %s27
      %s37 = scalar_select %p34, %s36, %s27
      %p38 = scmp.ge.s32.totalorder %s37, 2
      %s39 = scalar_select %p38, 0, %s37
      %s40 = ssub.s32 %s27, %s39
      %s41 = ssub.s32 %s28, %s35
      %s42 = sor.u32 %s40, %s41
      %p43 = scmp.eq.s32.totalorder %s42, 0
      %s45 = sadd.s32 %s44, 1
      %s46 = scalar_select %p43, %s44, %s45
      %p49 = pneg %p43
      %p50 = scmp.eq.s32.totalorder %s20, 3
      %p51 = por %p49, %p50
      %p52 = scmp.ne.s32.totalorder %s44, %s47
      %p53 = scmp.eq.s32.totalorder %s20, 0
      %p54 = por %p52, %p53
      %p55 = scmp.ne.s32.totalorder %s44, %s47
      %p56 = scmp.eq.s32.totalorder %s25, 3
      %p57 = por %p55, %p56
      %p58 = scmp.ne.s32.totalorder %s47, %s48
      %p59 = scmp.eq.s32.totalorder %s25, 0
      %p60 = por %p58, %p59
      %p61 = scmp.ne.s32.totalorder %s47, %s48
      %p62 = scmp.eq.s32.totalorder %s26, 3
      %p63 = por %p61, %p62
      %p65 = scmp.ne.s32.totalorder %s48, %s64
      %p66 = scmp.eq.s32.totalorder %s26, 0
      %p67 = por %p65, %p66
      %s69 = sadd.s32 %s68, 1
      %p72 = scmp.eq.s32.totalorder %s20, 3
      %p73 = scmp.ne.s32.totalorder %s68, %s70
      %p74 = scmp.eq.s32.totalorder %s20, 0
      %p75 = por %p73, %p74
      %p76 = scmp.ne.s32.totalorder %s68, %s70
      %p77 = scmp.eq.s32.totalorder %s25, 3
      %p78 = por %p76, %p77
      %p79 = scmp.ne.s32.totalorder %s70, %s71
      %p80 = scmp.eq.s32.totalorder %s25, 0
      %p81 = por %p79, %p80
      %p82 = scmp.ne.s32.totalorder %s70, %s71
      %p83 = scmp.eq.s32.totalorder %s26, 3
      %p84 = por %p82, %p83
      %p86 = scmp.ne.s32.totalorder %s71, %s85
      %p87 = scmp.eq.s32.totalorder %s26, 0
      %p88 = por %p86, %p87
      %s90 = sadd.s32 %s89, 1
      %p93 = scmp.eq.s32.totalorder %s20, 3
      %p94 = scmp.ne.s32.totalorder %s89, %s91
      %p95 = scmp.eq.s32.totalorder %s20, 0
      %p96 = por %p94, %p95
      %p97 = scmp.ne.s32.totalorder %s89, %s91
      %p98 = scmp.eq.s32.totalorder %s25, 3
      %p99 = por %p97, %p98
      %p100 = scmp.ne.s32.totalorder %s91, %s92
      %p101 = scmp.eq.s32.totalorder %s25, 0
      %p102 = por %p100, %p101
      %p103 = scmp.ne.s32.totalorder %s91, %s92
      %p104 = scmp.eq.s32.totalorder %s26, 3
      %p105 = por %p103, %p104
      %p107 = scmp.ne.s32.totalorder %s92, %s106
      %p108 = scmp.eq.s32.totalorder %s26, 0
      %p109 = por %p107, %p108
      %s111 = sadd.s32 %s110, 1
      %p114 = scmp.eq.s32.totalorder %s20, 3
      %p115 = scmp.ne.s32.totalorder %s110, %s112
      %p116 = scmp.eq.s32.totalorder %s20, 0
      %p117 = por %p115, %p116
      %p118 = scmp.ne.s32.totalorder %s110, %s112
      %p119 = scmp.eq.s32.totalorder %s25, 3
      %p120 = por %p118, %p119
      %p121 = scmp.ne.s32.totalorder %s112, %s113
      %p122 = scmp.eq.s32.totalorder %s25, 0
      %p123 = por %p121, %p122
      %p124 = scmp.ne.s32.totalorder %s112, %s113
      %p125 = scmp.eq.s32.totalorder %s26, 3
      %p126 = por %p124, %p125
      %p128 = scmp.ne.s32.totalorder %s113, %s127
      %p129 = scmp.eq.s32.totalorder %s26, 0
      %p130 = por %p128, %p129
      %s132 = sadd.s32 %s131, 1
      %p135 = scmp.eq.s32.totalorder %s20, 3
      %p136 = scmp.ne.s32.totalorder %s131, %s133
      %p137 = scmp.eq.s32.totalorder %s20, 0
      %p138 = por %p136, %p137
      %p139 = scmp.ne.s32.totalorder %s131, %s133
      %p140 = scmp.eq.s32.totalorder %s25, 3
      %p141 = por %p139, %p140
      %p142 = scmp.ne.s32.totalorder %s133, %s134
      %p143 = scmp.eq.s32.totalorder %s25, 0
      %p144 = por %p142, %p143
      %p145 = scmp.ne.s32.totalorder %s133, %s134
      %p146 = scmp.eq.s32.totalorder %s26, 3
      %p147 = por %p145, %p146
      %p149 = scmp.ne.s32.totalorder %s134, %s148
      %p150 = scmp.eq.s32.totalorder %s26, 0
      %p151 = por %p149, %p150
      %s152 = ssub.s32 %s27, %s39
      %p153 = scmp.eq.s32.totalorder %s152, 0
      %s155 = sadd.s32 %s154, 1
      %s156 = scalar_select %p153, %s154, %s155
      %p159 = pneg %p153
      %p160 = scmp.eq.s32.totalorder %s20, 3
      %p161 = por %p159, %p160
      %p162 = scmp.ne.s32.totalorder %s154, %s157
      %p163 = scmp.eq.s32.totalorder %s20, 0
      %p164 = por %p162, %p163
      %p165 = scmp.ne.s32.totalorder %s154, %s157
      %p166 = scmp.eq.s32.totalorder %s25, 3
      %p167 = por %p165, %p166
      %p168 = scmp.ne.s32.totalorder %s157, %s158
      %p169 = scmp.eq.s32.totalorder %s25, 0
      %p170 = por %p168, %p169
      %p171 = scmp.ne.s32.totalorder %s157, %s158
      %p172 = scmp.eq.s32.totalorder %s26, 3
      %p173 = por %p171, %p172
      %p175 = scmp.ne.s32.totalorder %s158, %s174
      %p176 = scmp.eq.s32.totalorder %s26, 0
      %p177 = por %p175, %p176
      %s178 = ssub.s32 %s27, %s39
      %p179 = scmp.eq.s32.totalorder %s178, 0
      %s181 = sadd.s32 %s180, 1
      %s182 = scalar_select %p179, %s180, %s181
      %p185 = pneg %p179
      %p186 = scmp.eq.s32.totalorder %s20, 3
      %p187 = por %p185, %p186
      %p188 = scmp.ne.s32.totalorder %s180, %s183
      %p189 = scmp.eq.s32.totalorder %s20, 0
      %p190 = por %p188, %p189
      %p191 = scmp.ne.s32.totalorder %s180, %s183
      %p192 = scmp.eq.s32.totalorder %s25, 3
      %p193 = por %p191, %p192
      %p194 = scmp.ne.s32.totalorder %s183, %s184
      %p195 = scmp.eq.s32.totalorder %s25, 0
      %p196 = por %p194, %p195
      %p197 = scmp.ne.s32.totalorder %s183, %s184
      %p198 = scmp.eq.s32.totalorder %s26, 3
      %p199 = por %p197, %p198
      %p201 = scmp.ne.s32.totalorder %s184, %s200
      %p202 = scmp.eq.s32.totalorder %s26, 0
      %p203 = por %p201, %p202
      %s204 = ssub.s32 %s27, %s39
      %p205 = scmp.eq.s32.totalorder %s204, 0
      %s207 = sadd.s32 %s206, 1
      %s208 = scalar_select %p205, %s206, %s207
      %p211 = pneg %p205
      %p212 = scmp.eq.s32.totalorder %s20, 3
      %p213 = por %p211, %p212
      %p214 = scmp.ne.s32.totalorder %s206, %s209
      %p215 = scmp.eq.s32.totalorder %s20, 0
      %p216 = por %p214, %p215
      %p217 = scmp.ne.s32.totalorder %s206, %s209
      %p218 = scmp.eq.s32.totalorder %s25, 3
      %p219 = por %p217, %p218
      %p220 = scmp.ne.s32.totalorder %s209, %s210
      %p221 = scmp.eq.s32.totalorder %s25, 0
      %p222 = por %p220, %p221
      %p223 = scmp.ne.s32.totalorder %s209, %s210
      %p224 = scmp.eq.s32.totalorder %s26, 3
      %p225 = por %p223, %p224
      %p227 = scmp.ne.s32.totalorder %s210, %s226
      %p228 = scmp.eq.s32.totalorder %s26, 0
      %p229 = por %p227, %p228
      %p230 = scmp.le.s32.totalorder 1, %s20
      %p231 = scmp.lt.s32.totalorder %s20, 5
      %p232 = pnand %p230, %p231
      %p233 = pneg %p232
      // Predicated region
      $region9: #{direction_estimation_forward.1} parent=5 // pred_check
        _
      $region10: #{direction_estimation_forward.1} parent=5 // pred_check_branch
        %235 = sbr.rel (%p232) target = $region12
      $region11: #{direction_estimation_forward.1} parent=5 // pred_region
        %s236 = ssub.s32 %s20, 1
        // Predicated region
        $region13: #{direction_estimation_forward.1} parent=11 // pred_check
          %p237 = pneg %p81
        $region14: #{direction_estimation_forward.1} parent=11 // pred_check_branch
          %239 = sbr.rel (%p237) target = $region16
        $region15: #{direction_estimation_forward.1} parent=11 // pred_region
          _
        $region16: #{direction_estimation_forward.1} parent=11 // pred_fallthru
          _
        // Predicated region
        $region17: #{direction_estimation_forward.1} parent=11 // pred_check
          %p240 = pneg %p102
        $region18: #{direction_estimation_forward.1} parent=11 // pred_check_branch
          %242 = sbr.rel (%p240) target = $region20
        $region19: #{direction_estimation_forward.1} parent=11 // pred_region
          _
        $region20: #{direction_estimation_forward.1} parent=11 // pred_fallthru
          _
        // Predicated region
        $region21: #{direction_estimation_forward.1} parent=11 // pred_check
          %p243 = pneg %p123
        $region22: #{direction_estimation_forward.1} parent=11 // pred_check_branch
          %245 = sbr.rel (%p243) target = $region24
        $region23: #{direction_estimation_forward.1} parent=11 // pred_region
          _
        $region24: #{direction_estimation_forward.1} parent=11 // pred_fallthru
          _
        // Predicated region
        $region25: #{direction_estimation_forward.1} parent=11 // pred_check
          %p246 = pneg %p144
        $region26: #{direction_estimation_forward.1} parent=11 // pred_check_branch
          %248 = sbr.rel (%p246) target = $region28
        $region27: #{direction_estimation_forward.1} parent=11 // pred_region
          _
        $region28: #{direction_estimation_forward.1} parent=11 // pred_fallthru
          _
      $region12: #{direction_estimation_forward.1} parent=5 // pred_fallthru
        _
      %p249 = scmp.lt.s32.totalorder %s20, 4
      // Predicated region
      $region29: #{direction_estimation_forward.1} parent=5 // pred_check
        %p250 = pneg %p249
      $region30: #{direction_estimation_forward.1} parent=5 // pred_check_branch
        %252 = sbr.rel (%p250) target = $region32
      $region31: #{direction_estimation_forward.1} parent=5 // pred_region
        // Predicated region
        $region33: #{direction_estimation_forward.1} parent=31 // pred_check
          %p253 = pneg %p54
        $region34: #{direction_estimation_forward.1} parent=31 // pred_check_branch
          %255 = sbr.rel (%p253) target = $region36
        $region35: #{direction_estimation_forward.1} parent=31 // pred_region
          %s256 = sand.u32 %s44, 1
          %s257 = sand.u32 %s44, 1
          %s258 = smul.addr %s257, 1024
          %s259 = scalar_lea.vmem [#allocation3], %s258
          %s260 = smul.addr %s28, 2
          %s261 = smul.addr %s27, 256
          %s262 = sadd.s32 %s260, %s261
          %s263 = smul.addr %s262, 8
          %s264 = scalar_lea.vmem %s0, %s263
          // Predicated region
          $region37: #{direction_estimation_forward.1} parent=35 // pred_check
            _
          $region38: #{direction_estimation_forward.1} parent=35 // pred_check_branch
            %266 = sbr.rel (0) target = $region40
          $region39: #{direction_estimation_forward.1} parent=35 // pred_region
            // Predicated region
            $region41: #{direction_estimation_forward.1} parent=39 // pred_check
              _
            $region42: #{direction_estimation_forward.1} parent=39 // pred_check_branch
              %268 = sbr.rel (0) target = $region44
            $region43: #{direction_estimation_forward.1} parent=39 // pred_region
              loop: start=0, step=1, limit=1
              $region45: #{direction_estimation_forward.1} parent=43 // loop_pre_header
                _
              $region46: #{direction_estimation_forward.1} parent=43 // loop_header
                %s270 = sphi 0, %s274
                %p271 = scmp.ge.s32.totalorder %s270, 1
                %s275 = sphi %s264, %s264
                %s276 = sphi %s259, %s259
              $region47: #{direction_estimation_forward.1} parent=43 // loop_header_branch
                %273 = sbr.rel (%p271) target = $region51
              $region48: #{direction_estimation_forward.1} parent=43 // loop_body
                %v277 = vld [vmem:[%s275] sm:$0xff]
                %278 = vst [vmem:[%s276] sm:$0xff] %v277
                %v279 = vld [vmem:[%s275 + $0x8] sm:$0xff]
                %280 = vst [vmem:[%s276 + $0x8] sm:$0xff] %v279
                %v281 = vld [vmem:[%s275 + $0x20] sm:$0xff]
                %282 = vst [vmem:[%s276 + $0x10] sm:$0xff] %v281
                %v283 = vld [vmem:[%s275 + $0x28] sm:$0xff]
                %284 = vst [vmem:[%s276 + $0x18] sm:$0xff] %v283
                %v285 = vld [vmem:[%s275 + $0x40] sm:$0xff]
                %286 = vst [vmem:[%s276 + $0x20] sm:$0xff] %v285
                %v287 = vld [vmem:[%s275 + $0x48] sm:$0xff]
                %288 = vst [vmem:[%s276 + $0x28] sm:$0xff] %v287
                %v289 = vld [vmem:[%s275 + $0x60] sm:$0xff]
                %290 = vst [vmem:[%s276 + $0x30] sm:$0xff] %v289
                %v291 = vld [vmem:[%s275 + $0x68] sm:$0xff]
                %292 = vst [vmem:[%s276 + $0x38] sm:$0xff] %v291
                %v293 = vld [vmem:[%s275 + $0x80] sm:$0xff]
                %294 = vst [vmem:[%s276 + $0x40] sm:$0xff] %v293
                %v295 = vld [vmem:[%s275 + $0x88] sm:$0xff]
                %296 = vst [vmem:[%s276 + $0x48] sm:$0xff] %v295
                %v297 = vld [vmem:[%s275 + $0xa0] sm:$0xff]
                %298 = vst [vmem:[%s276 + $0x50] sm:$0xff] %v297
                %v299 = vld [vmem:[%s275 + $0xa8] sm:$0xff]
                %300 = vst [vmem:[%s276 + $0x58] sm:$0xff] %v299
                %v301 = vld [vmem:[%s275 + $0xc0] sm:$0xff]
                %302 = vst [vmem:[%s276 + $0x60] sm:$0xff] %v301
                %v303 = vld [vmem:[%s275 + $0xc8] sm:$0xff]
                %304 = vst [vmem:[%s276 + $0x68] sm:$0xff] %v303
                %v305 = vld [vmem:[%s275 + $0xe0] sm:$0xff]
                %306 = vst [vmem:[%s276 + $0x70] sm:$0xff] %v305
                %v307 = vld [vmem:[%s275 + $0xe8] sm:$0xff]
                %308 = vst [vmem:[%s276 + $0x78] sm:$0xff] %v307
                %v309 = vld [vmem:[%s275 + $0x100] sm:$0xff]
                %310 = vst [vmem:[%s276 + $0x80] sm:$0xff] %v309
                %v311 = vld [vmem:[%s275 + $0x108] sm:$0xff]
                %312 = vst [vmem:[%s276 + $0x88] sm:$0xff] %v311
                %v313 = vld [vmem:[%s275 + $0x120] sm:$0xff]
                %314 = vst [vmem:[%s276 + $0x90] sm:$0xff] %v313
                %v315 = vld [vmem:[%s275 + $0x128] sm:$0xff]
                %316 = vst [vmem:[%s276 + $0x98] sm:$0xff] %v315
                %v317 = vld [vmem:[%s275 + $0x140] sm:$0xff]
                %318 = vst [vmem:[%s276 + $0xa0] sm:$0xff] %v317
                %v319 = vld [vmem:[%s275 + $0x148] sm:$0xff]
                %320 = vst [vmem:[%s276 + $0xa8] sm:$0xff] %v319
                %v321 = vld [vmem:[%s275 + $0x160] sm:$0xff]
                %322 = vst [vmem:[%s276 + $0xb0] sm:$0xff] %v321
                %v323 = vld [vmem:[%s275 + $0x168] sm:$0xff]
                %324 = vst [vmem:[%s276 + $0xb8] sm:$0xff] %v323
                %v325 = vld [vmem:[%s275 + $0x180] sm:$0xff]
                %326 = vst [vmem:[%s276 + $0xc0] sm:$0xff] %v325
                %v327 = vld [vmem:[%s275 + $0x188] sm:$0xff]
                %328 = vst [vmem:[%s276 + $0xc8] sm:$0xff] %v327
                %v329 = vld [vmem:[%s275 + $0x1a0] sm:$0xff]
                %330 = vst [vmem:[%s276 + $0xd0] sm:$0xff] %v329
                %v331 = vld [vmem:[%s275 + $0x1a8] sm:$0xff]
                %332 = vst [vmem:[%s276 + $0xd8] sm:$0xff] %v331
                %v333 = vld [vmem:[%s275 + $0x1c0] sm:$0xff]
                %334 = vst [vmem:[%s276 + $0xe0] sm:$0xff] %v333
                %v335 = vld [vmem:[%s275 + $0x1c8] sm:$0xff]
                %336 = vst [vmem:[%s276 + $0xe8] sm:$0xff] %v335
                %v337 = vld [vmem:[%s275 + $0x1e0] sm:$0xff]
                %338 = vst [vmem:[%s276 + $0xf0] sm:$0xff] %v337
                %v339 = vld [vmem:[%s275 + $0x1e8] sm:$0xff]
                %340 = vst [vmem:[%s276 + $0xf8] sm:$0xff] %v339
                %v341 = vld [vmem:[%s275 + $0x200] sm:$0xff]
                %342 = vst [vmem:[%s276 + $0x100] sm:$0xff] %v341
                %v343 = vld [vmem:[%s275 + $0x208] sm:$0xff]
                %344 = vst [vmem:[%s276 + $0x108] sm:$0xff] %v343
                %v345 = vld [vmem:[%s275 + $0x220] sm:$0xff]
                %346 = vst [vmem:[%s276 + $0x110] sm:$0xff] %v345
                %v347 = vld [vmem:[%s275 + $0x228] sm:$0xff]
                %348 = vst [vmem:[%s276 + $0x118] sm:$0xff] %v347
                %v349 = vld [vmem:[%s275 + $0x240] sm:$0xff]
                %350 = vst [vmem:[%s276 + $0x120] sm:$0xff] %v349
                %v351 = vld [vmem:[%s275 + $0x248] sm:$0xff]
                %352 = vst [vmem:[%s276 + $0x128] sm:$0xff] %v351
                %v353 = vld [vmem:[%s275 + $0x260] sm:$0xff]
                %354 = vst [vmem:[%s276 + $0x130] sm:$0xff] %v353
                %v355 = vld [vmem:[%s275 + $0x268] sm:$0xff]
                %356 = vst [vmem:[%s276 + $0x138] sm:$0xff] %v355
                %v357 = vld [vmem:[%s275 + $0x280] sm:$0xff]
                %358 = vst [vmem:[%s276 + $0x140] sm:$0xff] %v357
                %v359 = vld [vmem:[%s275 + $0x288] sm:$0xff]
                %360 = vst [vmem:[%s276 + $0x148] sm:$0xff] %v359
                %v361 = vld [vmem:[%s275 + $0x2a0] sm:$0xff]
                %362 = vst [vmem:[%s276 + $0x150] sm:$0xff] %v361
                %v363 = vld [vmem:[%s275 + $0x2a8] sm:$0xff]
                %364 = vst [vmem:[%s276 + $0x158] sm:$0xff] %v363
                %v365 = vld [vmem:[%s275 + $0x2c0] sm:$0xff]
                %366 = vst [vmem:[%s276 + $0x160] sm:$0xff] %v365
                %v367 = vld [vmem:[%s275 + $0x2c8] sm:$0xff]
                %368 = vst [vmem:[%s276 + $0x168] sm:$0xff] %v367
                %v369 = vld [vmem:[%s275 + $0x2e0] sm:$0xff]
                %370 = vst [vmem:[%s276 + $0x170] sm:$0xff] %v369
                %v371 = vld [vmem:[%s275 + $0x2e8] sm:$0xff]
                %372 = vst [vmem:[%s276 + $0x178] sm:$0xff] %v371
                %v373 = vld [vmem:[%s275 + $0x300] sm:$0xff]
                %374 = vst [vmem:[%s276 + $0x180] sm:$0xff] %v373
                %v375 = vld [vmem:[%s275 + $0x308] sm:$0xff]
                %376 = vst [vmem:[%s276 + $0x188] sm:$0xff] %v375
                %v377 = vld [vmem:[%s275 + $0x320] sm:$0xff]
                %378 = vst [vmem:[%s276 + $0x190] sm:$0xff] %v377
                %v379 = vld [vmem:[%s275 + $0x328] sm:$0xff]
                %380 = vst [vmem:[%s276 + $0x198] sm:$0xff] %v379
                %v381 = vld [vmem:[%s275 + $0x340] sm:$0xff]
                %382 = vst [vmem:[%s276 + $0x1a0] sm:$0xff] %v381
                %v383 = vld [vmem:[%s275 + $0x348] sm:$0xff]
                %384 = vst [vmem:[%s276 + $0x1a8] sm:$0xff] %v383
                %v385 = vld [vmem:[%s275 + $0x360] sm:$0xff]
                %386 = vst [vmem:[%s276 + $0x1b0] sm:$0xff] %v385
                %v387 = vld [vmem:[%s275 + $0x368] sm:$0xff]
                %388 = vst [vmem:[%s276 + $0x1b8] sm:$0xff] %v387
                %v389 = vld [vmem:[%s275 + $0x380] sm:$0xff]
                %390 = vst [vmem:[%s276 + $0x1c0] sm:$0xff] %v389
                %v391 = vld [vmem:[%s275 + $0x388] sm:$0xff]
                %392 = vst [vmem:[%s276 + $0x1c8] sm:$0xff] %v391
                %v393 = vld [vmem:[%s275 + $0x3a0] sm:$0xff]
                %394 = vst [vmem:[%s276 + $0x1d0] sm:$0xff] %v393
                %v395 = vld [vmem:[%s275 + $0x3a8] sm:$0xff]
                %396 = vst [vmem:[%s276 + $0x1d8] sm:$0xff] %v395
                %v397 = vld [vmem:[%s275 + $0x3c0] sm:$0xff]
                %398 = vst [vmem:[%s276 + $0x1e0] sm:$0xff] %v397
                %v399 = vld [vmem:[%s275 + $0x3c8] sm:$0xff]
                %400 = vst [vmem:[%s276 + $0x1e8] sm:$0xff] %v399
                %v401 = vld [vmem:[%s275 + $0x3e0] sm:$0xff]
                %402 = vst [vmem:[%s276 + $0x1f0] sm:$0xff] %v401
                %v403 = vld [vmem:[%s275 + $0x3e8] sm:$0xff]
                %404 = vst [vmem:[%s276 + $0x1f8] sm:$0xff] %v403
                %v405 = vld [vmem:[%s275 + $0x400] sm:$0xff]
                %406 = vst [vmem:[%s276 + $0x200] sm:$0xff] %v405
                %v407 = vld [vmem:[%s275 + $0x408] sm:$0xff]
                %408 = vst [vmem:[%s276 + $0x208] sm:$0xff] %v407
                %v409 = vld [vmem:[%s275 + $0x420] sm:$0xff]
                %410 = vst [vmem:[%s276 + $0x210] sm:$0xff] %v409
                %v411 = vld [vmem:[%s275 + $0x428] sm:$0xff]
                %412 = vst [vmem:[%s276 + $0x218] sm:$0xff] %v411
                %v413 = vld [vmem:[%s275 + $0x440] sm:$0xff]
                %414 = vst [vmem:[%s276 + $0x220] sm:$0xff] %v413
                %v415 = vld [vmem:[%s275 + $0x448] sm:$0xff]
                %416 = vst [vmem:[%s276 + $0x228] sm:$0xff] %v415
                %v417 = vld [vmem:[%s275 + $0x460] sm:$0xff]
                %418 = vst [vmem:[%s276 + $0x230] sm:$0xff] %v417
                %v419 = vld [vmem:[%s275 + $0x468] sm:$0xff]
                %420 = vst [vmem:[%s276 + $0x238] sm:$0xff] %v419
                %v421 = vld [vmem:[%s275 + $0x480] sm:$0xff]
                %422 = vst [vmem:[%s276 + $0x240] sm:$0xff] %v421
                %v423 = vld [vmem:[%s275 + $0x488] sm:$0xff]
                %424 = vst [vmem:[%s276 + $0x248] sm:$0xff] %v423
                %v425 = vld [vmem:[%s275 + $0x4a0] sm:$0xff]
                %426 = vst [vmem:[%s276 + $0x250] sm:$0xff] %v425
                %v427 = vld [vmem:[%s275 + $0x4a8] sm:$0xff]
                %428 = vst [vmem:[%s276 + $0x258] sm:$0xff] %v427
                %v429 = vld [vmem:[%s275 + $0x4c0] sm:$0xff]
                %430 = vst [vmem:[%s276 + $0x260] sm:$0xff] %v429
                %v431 = vld [vmem:[%s275 + $0x4c8] sm:$0xff]
                %432 = vst [vmem:[%s276 + $0x268] sm:$0xff] %v431
                %v433 = vld [vmem:[%s275 + $0x4e0] sm:$0xff]
                %434 = vst [vmem:[%s276 + $0x270] sm:$0xff] %v433
                %v435 = vld [vmem:[%s275 + $0x4e8] sm:$0xff]
                %436 = vst [vmem:[%s276 + $0x278] sm:$0xff] %v435
                %v437 = vld [vmem:[%s275 + $0x500] sm:$0xff]
                %438 = vst [vmem:[%s276 + $0x280] sm:$0xff] %v437
                %v439 = vld [vmem:[%s275 + $0x508] sm:$0xff]
                %440 = vst [vmem:[%s276 + $0x288] sm:$0xff] %v439
                %v441 = vld [vmem:[%s275 + $0x520] sm:$0xff]
                %442 = vst [vmem:[%s276 + $0x290] sm:$0xff] %v441
                %v443 = vld [vmem:[%s275 + $0x528] sm:$0xff]
                %444 = vst [vmem:[%s276 + $0x298] sm:$0xff] %v443
                %v445 = vld [vmem:[%s275 + $0x540] sm:$0xff]
                %446 = vst [vmem:[%s276 + $0x2a0] sm:$0xff] %v445
                %v447 = vld [vmem:[%s275 + $0x548] sm:$0xff]
                %448 = vst [vmem:[%s276 + $0x2a8] sm:$0xff] %v447
                %v449 = vld [vmem:[%s275 + $0x560] sm:$0xff]
                %450 = vst [vmem:[%s276 + $0x2b0] sm:$0xff] %v449
                %v451 = vld [vmem:[%s275 + $0x568] sm:$0xff]
                %452 = vst [vmem:[%s276 + $0x2b8] sm:$0xff] %v451
                %v453 = vld [vmem:[%s275 + $0x580] sm:$0xff]
                %454 = vst [vmem:[%s276 + $0x2c0] sm:$0xff] %v453
                %v455 = vld [vmem:[%s275 + $0x588] sm:$0xff]
                %456 = vst [vmem:[%s276 + $0x2c8] sm:$0xff] %v455
                %v457 = vld [vmem:[%s275 + $0x5a0] sm:$0xff]
                %458 = vst [vmem:[%s276 + $0x2d0] sm:$0xff] %v457
                %v459 = vld [vmem:[%s275 + $0x5a8] sm:$0xff]
                %460 = vst [vmem:[%s276 + $0x2d8] sm:$0xff] %v459
                %v461 = vld [vmem:[%s275 + $0x5c0] sm:$0xff]
                %462 = vst [vmem:[%s276 + $0x2e0] sm:$0xff] %v461
                %v463 = vld [vmem:[%s275 + $0x5c8] sm:$0xff]
                %464 = vst [vmem:[%s276 + $0x2e8] sm:$0xff] %v463
                %v465 = vld [vmem:[%s275 + $0x5e0] sm:$0xff]
                %466 = vst [vmem:[%s276 + $0x2f0] sm:$0xff] %v465
                %v467 = vld [vmem:[%s275 + $0x5e8] sm:$0xff]
                %468 = vst [vmem:[%s276 + $0x2f8] sm:$0xff] %v467
                %v469 = vld [vmem:[%s275 + $0x600] sm:$0xff]
                %470 = vst [vmem:[%s276 + $0x300] sm:$0xff] %v469
                %v471 = vld [vmem:[%s275 + $0x608] sm:$0xff]
                %472 = vst [vmem:[%s276 + $0x308] sm:$0xff] %v471
                %v473 = vld [vmem:[%s275 + $0x620] sm:$0xff]
                %474 = vst [vmem:[%s276 + $0x310] sm:$0xff] %v473
                %v475 = vld [vmem:[%s275 + $0x628] sm:$0xff]
                %476 = vst [vmem:[%s276 + $0x318] sm:$0xff] %v475
                %v477 = vld [vmem:[%s275 + $0x640] sm:$0xff]
                %478 = vst [vmem:[%s276 + $0x320] sm:$0xff] %v477
                %v479 = vld [vmem:[%s275 + $0x648] sm:$0xff]
                %480 = vst [vmem:[%s276 + $0x328] sm:$0xff] %v479
                %v481 = vld [vmem:[%s275 + $0x660] sm:$0xff]
                %482 = vst [vmem:[%s276 + $0x330] sm:$0xff] %v481
                %v483 = vld [vmem:[%s275 + $0x668] sm:$0xff]
                %484 = vst [vmem:[%s276 + $0x338] sm:$0xff] %v483
                %v485 = vld [vmem:[%s275 + $0x680] sm:$0xff]
                %486 = vst [vmem:[%s276 + $0x340] sm:$0xff] %v485
                %v487 = vld [vmem:[%s275 + $0x688] sm:$0xff]
                %488 = vst [vmem:[%s276 + $0x348] sm:$0xff] %v487
                %v489 = vld [vmem:[%s275 + $0x6a0] sm:$0xff]
                %490 = vst [vmem:[%s276 + $0x350] sm:$0xff] %v489
                %v491 = vld [vmem:[%s275 + $0x6a8] sm:$0xff]
                %492 = vst [vmem:[%s276 + $0x358] sm:$0xff] %v491
                %v493 = vld [vmem:[%s275 + $0x6c0] sm:$0xff]
                %494 = vst [vmem:[%s276 + $0x360] sm:$0xff] %v493
                %v495 = vld [vmem:[%s275 + $0x6c8] sm:$0xff]
                %496 = vst [vmem:[%s276 + $0x368] sm:$0xff] %v495
                %v497 = vld [vmem:[%s275 + $0x6e0] sm:$0xff]
                %498 = vst [vmem:[%s276 + $0x370] sm:$0xff] %v497
                %v499 = vld [vmem:[%s275 + $0x6e8] sm:$0xff]
                %500 = vst [vmem:[%s276 + $0x378] sm:$0xff] %v499
                %v501 = vld [vmem:[%s275 + $0x700] sm:$0xff]
                %502 = vst [vmem:[%s276 + $0x380] sm:$0xff] %v501
                %v503 = vld [vmem:[%s275 + $0x708] sm:$0xff]
                %504 = vst [vmem:[%s276 + $0x388] sm:$0xff] %v503
                %v505 = vld [vmem:[%s275 + $0x720] sm:$0xff]
                %506 = vst [vmem:[%s276 + $0x390] sm:$0xff] %v505
                %v507 = vld [vmem:[%s275 + $0x728] sm:$0xff]
                %508 = vst [vmem:[%s276 + $0x398] sm:$0xff] %v507
                %v509 = vld [vmem:[%s275 + $0x740] sm:$0xff]
                %510 = vst [vmem:[%s276 + $0x3a0] sm:$0xff] %v509
                %v511 = vld [vmem:[%s275 + $0x748] sm:$0xff]
                %512 = vst [vmem:[%s276 + $0x3a8] sm:$0xff] %v511
                %v513 = vld [vmem:[%s275 + $0x760] sm:$0xff]
                %514 = vst [vmem:[%s276 + $0x3b0] sm:$0xff] %v513
                %v515 = vld [vmem:[%s275 + $0x768] sm:$0xff]
                %516 = vst [vmem:[%s276 + $0x3b8] sm:$0xff] %v515
                %v517 = vld [vmem:[%s275 + $0x780] sm:$0xff]
                %518 = vst [vmem:[%s276 + $0x3c0] sm:$0xff] %v517
                %v519 = vld [vmem:[%s275 + $0x788] sm:$0xff]
                %520 = vst [vmem:[%s276 + $0x3c8] sm:$0xff] %v519
                %v521 = vld [vmem:[%s275 + $0x7a0] sm:$0xff]
                %522 = vst [vmem:[%s276 + $0x3d0] sm:$0xff] %v521
                %v523 = vld [vmem:[%s275 + $0x7a8] sm:$0xff]
                %524 = vst [vmem:[%s276 + $0x3d8] sm:$0xff] %v523
                %v525 = vld [vmem:[%s275 + $0x7c0] sm:$0xff]
                %526 = vst [vmem:[%s276 + $0x3e0] sm:$0xff] %v525
                %v527 = vld [vmem:[%s275 + $0x7c8] sm:$0xff]
                %528 = vst [vmem:[%s276 + $0x3e8] sm:$0xff] %v527
                %v529 = vld [vmem:[%s275 + $0x7e0] sm:$0xff]
                %530 = vst [vmem:[%s276 + $0x3f0] sm:$0xff] %v529
                %v531 = vld [vmem:[%s275 + $0x7e8] sm:$0xff]
                %532 = vst [vmem:[%s276 + $0x3f8] sm:$0xff] %v531
              $region49: #{direction_estimation_forward.1} parent=43 // loop_footer
                %s274 = sadd.s32 1, %s270
              $region50: #{direction_estimation_forward.1} parent=43 // loop_footer_branch
                %269 = sbr.rel target = $region46
              $region51: #{direction_estimation_forward.1} parent=43 // loop_exit
                _
            $region44: #{direction_estimation_forward.1} parent=39 // pred_fallthru
              _
            // Predicated region
            $region52: #{direction_estimation_forward.1} parent=39 // pred_check
              _
            $region53: #{direction_estimation_forward.1} parent=39 // pred_check_branch
              %534 = sbr.rel target = $region55
            $region54: #{direction_estimation_forward.1} parent=39 // pred_region
              _
            $region55: #{direction_estimation_forward.1} parent=39 // pred_fallthru
              _
          $region40: #{direction_estimation_forward.1} parent=35 // pred_fallthru
            _
          %535 = vnop
        $region36: #{direction_estimation_forward.1} parent=31 // pred_fallthru
          _
      $region32: #{direction_estimation_forward.1} parent=5 // pred_fallthru
        _
      %p536 = scmp.le.s32.totalorder 1, %s20
      %p537 = scmp.lt.s32.totalorder %s20, 5
      %p538 = pnand %p536, %p537
      %p539 = pneg %p538
      // Predicated region
      $region56: #{direction_estimation_forward.1} parent=5 // pred_check
        _
      $region57: #{direction_estimation_forward.1} parent=5 // pred_check_branch
        %541 = sbr.rel (%p538) target = $region59
      $region58: #{direction_estimation_forward.1} parent=5 // pred_region
        %s542 = ssub.s32 %s20, 1
        %s543 = sand.u32 %s47, 1
        %s544 = sand.u32 %s47, 1
        %s545 = smul.addr %s544, 1024
        %s546 = scalar_lea.vmem [#allocation3], %s545
        // Predicated region
        $region60: #{direction_estimation_forward.1} parent=58 // pred_check
          %p547 = pneg %p60
        $region61: #{direction_estimation_forward.1} parent=58 // pred_check_branch
          %549 = sbr.rel (%p547) target = $region63
        $region62: #{direction_estimation_forward.1} parent=58 // pred_region
          _
        $region63: #{direction_estimation_forward.1} parent=58 // pred_fallthru
          _
        %s550 = sand.u32 %s47, 1
        %s551 = sand.u32 %s47, 1
        %s552 = smul.addr %s551, 1024
        %s553 = scalar_lea.vmem [#allocation3], %s552
        %p554 = pneg %p60
        %p555 = pneg %p57
        %p556 = pneg %p81
        %p557 = pneg %p78
        %p558 = pneg %p102
        %p559 = pneg %p99
        %p560 = pneg %p123
        %p561 = pneg %p120
        %p562 = pneg %p144
        %p563 = pneg %p141
        %p564 = pneg %p170
        %p565 = pneg %p167
        %s566 = sand.u32 %s157, 1
        %s567 = scalar_lea.sflag [#allocation5], %s566
        %s568 = sand.u32 %s157, 1
        %s569 = smul.addr %s568, 16
        %s570 = scalar_lea.vmem [#allocation4], %s569
        %p571 = pneg %p196
        %p572 = pneg %p193
        %s573 = sand.u32 %s183, 1
        %s574 = scalar_lea.sflag [#allocation7], %s573
        %s575 = sand.u32 %s183, 1
        %s576 = smul.addr %s575, 16
        %s577 = scalar_lea.vmem [#allocation6], %s576
        %p578 = pneg %p222
        %p579 = pneg %p219
        %p580 = scmp.lt.s32.totalorder %s29, 1
        %s581 = scalar_select %p580, %s29, 1
        %s582 = smul.addr %s581, 2
        %s583 = smul.addr %s582, 8
        %s584 = scalar_lea.vmem %s7, %s583
        %p585 = scmp.lt.s32.totalorder %s29, 1
        %s586 = scalar_select %p585, %s29, 1
        %s587 = smul.addr %s586, 2
        %s588 = smul.addr %s587, 8
        %s589 = scalar_lea.vmem %s7, %s588
        %p590 = scmp.eq.s32.totalorder %s30, 0
        // Predicated region
        $region64: #{direction_estimation_forward.1} parent=58 // pred_check
          %p591 = pneg %p590
        $region65: #{direction_estimation_forward.1} parent=58 // pred_check_branch
          %593 = sbr.rel (%p591) target = $region67
        $region66: #{direction_estimation_forward.1} parent=58 // pred_region
          %594 = vst [vmem:[#allocation2] sm:$0xff] -inf
          %595 = vst [vmem:[#allocation2 + $0x8] sm:$0xff] -inf
          %596 = vst [vmem:[#allocation2 + $0x10] sm:$0xff] -inf
          %597 = vst [vmem:[#allocation2 + $0x18] sm:$0xff] -inf
          %598 = vst [vmem:[#allocation2 + $0x20] sm:$0xff] -inf
          %599 = vst [vmem:[#allocation2 + $0x28] sm:$0xff] -inf
          %600 = vst [vmem:[#allocation2 + $0x30] sm:$0xff] -inf
          %601 = vst [vmem:[#allocation2 + $0x38] sm:$0xff] -inf
          %602 = vst [vmem:[#allocation2 + $0x40] sm:$0xff] -inf
          %603 = vst [vmem:[#allocation2 + $0x48] sm:$0xff] -inf
          %604 = vst [vmem:[#allocation2 + $0x50] sm:$0xff] -inf
          %605 = vst [vmem:[#allocation2 + $0x58] sm:$0xff] -inf
          %606 = vst [vmem:[#allocation2 + $0x60] sm:$0xff] -inf
          %607 = vst [vmem:[#allocation2 + $0x68] sm:$0xff] -inf
          %608 = vst [vmem:[#allocation2 + $0x70] sm:$0xff] -inf
          %609 = vst [vmem:[#allocation2 + $0x78] sm:$0xff] -inf
        $region67: #{direction_estimation_forward.1} parent=58 // pred_fallthru
          _
        %v610 = vld [vmem:[%s546] sm:$0xff]
        %v611 = vld [vmem:[%s546 + $0x8] sm:$0xff]
        %v612 = vld [vmem:[%s546 + $0x10] sm:$0xff]
        %v613 = vld [vmem:[%s546 + $0x18] sm:$0xff]
        %v614 = vld [vmem:[%s546 + $0x20] sm:$0xff]
        %v615 = vld [vmem:[%s546 + $0x28] sm:$0xff]
        %v616 = vld [vmem:[%s546 + $0x30] sm:$0xff]
        %v617 = vld [vmem:[%s546 + $0x38] sm:$0xff]
        %v618 = vld [vmem:[%s546 + $0x40] sm:$0xff]
        %v619 = vld [vmem:[%s546 + $0x48] sm:$0xff]
        %v620 = vld [vmem:[%s546 + $0x50] sm:$0xff]
        %v621 = vld [vmem:[%s546 + $0x58] sm:$0xff]
        %v622 = vld [vmem:[%s546 + $0x60] sm:$0xff]
        %v623 = vld [vmem:[%s546 + $0x68] sm:$0xff]
        %v624 = vld [vmem:[%s546 + $0x70] sm:$0xff]
        %v625 = vld [vmem:[%s546 + $0x78] sm:$0xff]
        %v626 = vld [vmem:[%s546 + $0x80] sm:$0xff]
        %v627 = vld [vmem:[%s546 + $0x88] sm:$0xff]
        %v628 = vld [vmem:[%s546 + $0x90] sm:$0xff]
        %v629 = vld [vmem:[%s546 + $0x98] sm:$0xff]
        %v630 = vld [vmem:[%s546 + $0xa0] sm:$0xff]
        %v631 = vld [vmem:[%s546 + $0xa8] sm:$0xff]
        %v632 = vld [vmem:[%s546 + $0xb0] sm:$0xff]
        %v633 = vld [vmem:[%s546 + $0xb8] sm:$0xff]
        %v634 = vld [vmem:[%s546 + $0xc0] sm:$0xff]
        %v635 = vld [vmem:[%s546 + $0xc8] sm:$0xff]
        %v636 = vld [vmem:[%s546 + $0xd0] sm:$0xff]
        %v637 = vld [vmem:[%s546 + $0xd8] sm:$0xff]
        %v638 = vld [vmem:[%s546 + $0xe0] sm:$0xff]
        %v639 = vld [vmem:[%s546 + $0xe8] sm:$0xff]
        %v640 = vld [vmem:[%s546 + $0xf0] sm:$0xff]
        %v641 = vld [vmem:[%s546 + $0xf8] sm:$0xff]
        %v642 = vld [vmem:[%s546 + $0x100] sm:$0xff]
        %v643 = vld [vmem:[%s546 + $0x108] sm:$0xff]
        %v644 = vld [vmem:[%s546 + $0x110] sm:$0xff]
        %v645 = vld [vmem:[%s546 + $0x118] sm:$0xff]
        %v646 = vld [vmem:[%s546 + $0x120] sm:$0xff]
        %v647 = vld [vmem:[%s546 + $0x128] sm:$0xff]
        %v648 = vld [vmem:[%s546 + $0x130] sm:$0xff]
        %v649 = vld [vmem:[%s546 + $0x138] sm:$0xff]
        %v650 = vld [vmem:[%s546 + $0x140] sm:$0xff]
        %v651 = vld [vmem:[%s546 + $0x148] sm:$0xff]
        %v652 = vld [vmem:[%s546 + $0x150] sm:$0xff]
        %v653 = vld [vmem:[%s546 + $0x158] sm:$0xff]
        %v654 = vld [vmem:[%s546 + $0x160] sm:$0xff]
        %v655 = vld [vmem:[%s546 + $0x168] sm:$0xff]
        %v656 = vld [vmem:[%s546 + $0x170] sm:$0xff]
        %v657 = vld [vmem:[%s546 + $0x178] sm:$0xff]
        %v658 = vld [vmem:[%s546 + $0x180] sm:$0xff]
        %v659 = vld [vmem:[%s546 + $0x188] sm:$0xff]
        %v660 = vld [vmem:[%s546 + $0x190] sm:$0xff]
        %v661 = vld [vmem:[%s546 + $0x198] sm:$0xff]
        %v662 = vld [vmem:[%s546 + $0x1a0] sm:$0xff]
        %v663 = vld [vmem:[%s546 + $0x1a8] sm:$0xff]
        %v664 = vld [vmem:[%s546 + $0x1b0] sm:$0xff]
        %v665 = vld [vmem:[%s546 + $0x1b8] sm:$0xff]
        %v666 = vld [vmem:[%s546 + $0x1c0] sm:$0xff]
        %v667 = vld [vmem:[%s546 + $0x1c8] sm:$0xff]
        %v668 = vld [vmem:[%s546 + $0x1d0] sm:$0xff]
        %v669 = vld [vmem:[%s546 + $0x1d8] sm:$0xff]
        %v670 = vld [vmem:[%s546 + $0x1e0] sm:$0xff]
        %v671 = vld [vmem:[%s546 + $0x1e8] sm:$0xff]
        %v672 = vld [vmem:[%s546 + $0x1f0] sm:$0xff]
        %v673 = vld [vmem:[%s546 + $0x1f8] sm:$0xff]
        %v674 = vld [vmem:[%s546 + $0x200] sm:$0xff]
        %v675 = vld [vmem:[%s546 + $0x208] sm:$0xff]
        %v676 = vld [vmem:[%s546 + $0x210] sm:$0xff]
        %v677 = vld [vmem:[%s546 + $0x218] sm:$0xff]
        %v678 = vld [vmem:[%s546 + $0x220] sm:$0xff]
        %v679 = vld [vmem:[%s546 + $0x228] sm:$0xff]
        %v680 = vld [vmem:[%s546 + $0x230] sm:$0xff]
        %v681 = vld [vmem:[%s546 + $0x238] sm:$0xff]
        %v682 = vld [vmem:[%s546 + $0x240] sm:$0xff]
        %v683 = vld [vmem:[%s546 + $0x248] sm:$0xff]
        %v684 = vld [vmem:[%s546 + $0x250] sm:$0xff]
        %v685 = vld [vmem:[%s546 + $0x258] sm:$0xff]
        %v686 = vld [vmem:[%s546 + $0x260] sm:$0xff]
        %v687 = vld [vmem:[%s546 + $0x268] sm:$0xff]
        %v688 = vld [vmem:[%s546 + $0x270] sm:$0xff]
        %v689 = vld [vmem:[%s546 + $0x278] sm:$0xff]
        %v690 = vld [vmem:[%s546 + $0x280] sm:$0xff]
        %v691 = vld [vmem:[%s546 + $0x288] sm:$0xff]
        %v692 = vld [vmem:[%s546 + $0x290] sm:$0xff]
        %v693 = vld [vmem:[%s546 + $0x298] sm:$0xff]
        %v694 = vld [vmem:[%s546 + $0x2a0] sm:$0xff]
        %v695 = vld [vmem:[%s546 + $0x2a8] sm:$0xff]
        %v696 = vld [vmem:[%s546 + $0x2b0] sm:$0xff]
        %v697 = vld [vmem:[%s546 + $0x2b8] sm:$0xff]
        %v698 = vld [vmem:[%s546 + $0x2c0] sm:$0xff]
        %v699 = vld [vmem:[%s546 + $0x2c8] sm:$0xff]
        %v700 = vld [vmem:[%s546 + $0x2d0] sm:$0xff]
        %v701 = vld [vmem:[%s546 + $0x2d8] sm:$0xff]
        %v702 = vld [vmem:[%s546 + $0x2e0] sm:$0xff]
        %v703 = vld [vmem:[%s546 + $0x2e8] sm:$0xff]
        %v704 = vld [vmem:[%s546 + $0x2f0] sm:$0xff]
        %v705 = vld [vmem:[%s546 + $0x2f8] sm:$0xff]
        %v706 = vld [vmem:[%s546 + $0x300] sm:$0xff]
        %v707 = vld [vmem:[%s546 + $0x308] sm:$0xff]
        %v708 = vld [vmem:[%s546 + $0x310] sm:$0xff]
        %v709 = vld [vmem:[%s546 + $0x318] sm:$0xff]
        %v710 = vld [vmem:[%s546 + $0x320] sm:$0xff]
        %v711 = vld [vmem:[%s546 + $0x328] sm:$0xff]
        %v712 = vld [vmem:[%s546 + $0x330] sm:$0xff]
        %v713 = vld [vmem:[%s546 + $0x338] sm:$0xff]
        %v714 = vld [vmem:[%s546 + $0x340] sm:$0xff]
        %v715 = vld [vmem:[%s546 + $0x348] sm:$0xff]
        %v716 = vld [vmem:[%s546 + $0x350] sm:$0xff]
        %v717 = vld [vmem:[%s546 + $0x358] sm:$0xff]
        %v718 = vld [vmem:[%s546 + $0x360] sm:$0xff]
        %v719 = vld [vmem:[%s546 + $0x368] sm:$0xff]
        %v720 = vld [vmem:[%s546 + $0x370] sm:$0xff]
        %v721 = vld [vmem:[%s546 + $0x378] sm:$0xff]
        %v722 = vld [vmem:[%s546 + $0x380] sm:$0xff]
        %v723 = vld [vmem:[%s546 + $0x388] sm:$0xff]
        %v724 = vld [vmem:[%s546 + $0x390] sm:$0xff]
        %v725 = vld [vmem:[%s546 + $0x398] sm:$0xff]
        %v726 = vld [vmem:[%s546 + $0x3a0] sm:$0xff]
        %v727 = vld [vmem:[%s546 + $0x3a8] sm:$0xff]
        %v728 = vld [vmem:[%s546 + $0x3b0] sm:$0xff]
        %v729 = vld [vmem:[%s546 + $0x3b8] sm:$0xff]
        %v730 = vld [vmem:[%s546 + $0x3c0] sm:$0xff]
        %v731 = vld [vmem:[%s546 + $0x3c8] sm:$0xff]
        %v732 = vld [vmem:[%s546 + $0x3d0] sm:$0xff]
        %v733 = vld [vmem:[%s546 + $0x3d8] sm:$0xff]
        %v734 = vld [vmem:[%s546 + $0x3e0] sm:$0xff]
        %v735 = vld [vmem:[%s546 + $0x3e8] sm:$0xff]
        %v736 = vld [vmem:[%s546 + $0x3f0] sm:$0xff]
        %v737 = vld [vmem:[%s546 + $0x3f8] sm:$0xff]
        %v738 = vrot.slane %v610, 4
        %v739 = vmax.f32 %v610, %v738
        %v740 = vrot.slane %v739, 2
        %v741 = vmax.f32 %v739, %v740
        %v742 = vrot.slane %v741, 1
        %v743 = vmax.f32 %v741, %v742
        %v744 = vrot.slane %v611, 4
        %v745 = vmax.f32 %v611, %v744
        %v746 = vrot.slane %v745, 2
        %v747 = vmax.f32 %v745, %v746
        %v748 = vrot.slane %v747, 1
        %v749 = vmax.f32 %v747, %v748
        %v750 = vrot.slane %v612, 4
        %v751 = vmax.f32 %v612, %v750
        %v752 = vrot.slane %v751, 2
        %v753 = vmax.f32 %v751, %v752
        %v754 = vrot.slane %v753, 1
        %v755 = vmax.f32 %v753, %v754
        %v756 = vrot.slane %v613, 4
        %v757 = vmax.f32 %v613, %v756
        %v758 = vrot.slane %v757, 2
        %v759 = vmax.f32 %v757, %v758
        %v760 = vrot.slane %v759, 1
        %v761 = vmax.f32 %v759, %v760
        %v762 = vrot.slane %v614, 4
        %v763 = vmax.f32 %v614, %v762
        %v764 = vrot.slane %v763, 2
        %v765 = vmax.f32 %v763, %v764
        %v766 = vrot.slane %v765, 1
        %v767 = vmax.f32 %v765, %v766
        %v768 = vrot.slane %v615, 4
        %v769 = vmax.f32 %v615, %v768
        %v770 = vrot.slane %v769, 2
        %v771 = vmax.f32 %v769, %v770
        %v772 = vrot.slane %v771, 1
        %v773 = vmax.f32 %v771, %v772
        %v774 = vrot.slane %v616, 4
        %v775 = vmax.f32 %v616, %v774
        %v776 = vrot.slane %v775, 2
        %v777 = vmax.f32 %v775, %v776
        %v778 = vrot.slane %v777, 1
        %v779 = vmax.f32 %v777, %v778
        %v780 = vrot.slane %v617, 4
        %v781 = vmax.f32 %v617, %v780
        %v782 = vrot.slane %v781, 2
        %v783 = vmax.f32 %v781, %v782
        %v784 = vrot.slane %v783, 1
        %v785 = vmax.f32 %v783, %v784
        %v786 = vrot.slane %v618, 4
        %v787 = vmax.f32 %v618, %v786
        %v788 = vrot.slane %v787, 2
        %v789 = vmax.f32 %v787, %v788
        %v790 = vrot.slane %v789, 1
        %v791 = vmax.f32 %v789, %v790
        %v792 = vrot.slane %v619, 4
        %v793 = vmax.f32 %v619, %v792
        %v794 = vrot.slane %v793, 2
        %v795 = vmax.f32 %v793, %v794
        %v796 = vrot.slane %v795, 1
        %v797 = vmax.f32 %v795, %v796
        %v798 = vrot.slane %v620, 4
        %v799 = vmax.f32 %v620, %v798
        %v800 = vrot.slane %v799, 2
        %v801 = vmax.f32 %v799, %v800
        %v802 = vrot.slane %v801, 1
        %v803 = vmax.f32 %v801, %v802
        %v804 = vrot.slane %v621, 4
        %v805 = vmax.f32 %v621, %v804
        %v806 = vrot.slane %v805, 2
        %v807 = vmax.f32 %v805, %v806
        %v808 = vrot.slane %v807, 1
        %v809 = vmax.f32 %v807, %v808
        %v810 = vrot.slane %v622, 4
        %v811 = vmax.f32 %v622, %v810
        %v812 = vrot.slane %v811, 2
        %v813 = vmax.f32 %v811, %v812
        %v814 = vrot.slane %v813, 1
        %v815 = vmax.f32 %v813, %v814
        %v816 = vrot.slane %v623, 4
        %v817 = vmax.f32 %v623, %v816
        %v818 = vrot.slane %v817, 2
        %v819 = vmax.f32 %v817, %v818
        %v820 = vrot.slane %v819, 1
        %v821 = vmax.f32 %v819, %v820
        %v822 = vrot.slane %v624, 4
        %v823 = vmax.f32 %v624, %v822
        %v824 = vrot.slane %v823, 2
        %v825 = vmax.f32 %v823, %v824
        %v826 = vrot.slane %v825, 1
        %v827 = vmax.f32 %v825, %v826
        %v828 = vrot.slane %v625, 4
        %v829 = vmax.f32 %v625, %v828
        %v830 = vrot.slane %v829, 2
        %v831 = vmax.f32 %v829, %v830
        %v832 = vrot.slane %v831, 1
        %v833 = vmax.f32 %v831, %v832
        %v834 = vrot.slane %v626, 4
        %v835 = vmax.f32 %v626, %v834
        %v836 = vrot.slane %v835, 2
        %v837 = vmax.f32 %v835, %v836
        %v838 = vrot.slane %v837, 1
        %v839 = vmax.f32 %v837, %v838
        %v840 = vrot.slane %v627, 4
        %v841 = vmax.f32 %v627, %v840
        %v842 = vrot.slane %v841, 2
        %v843 = vmax.f32 %v841, %v842
        %v844 = vrot.slane %v843, 1
        %v845 = vmax.f32 %v843, %v844
        %v846 = vrot.slane %v628, 4
        %v847 = vmax.f32 %v628, %v846
        %v848 = vrot.slane %v847, 2
        %v849 = vmax.f32 %v847, %v848
        %v850 = vrot.slane %v849, 1
        %v851 = vmax.f32 %v849, %v850
        %v852 = vrot.slane %v629, 4
        %v853 = vmax.f32 %v629, %v852
        %v854 = vrot.slane %v853, 2
        %v855 = vmax.f32 %v853, %v854
        %v856 = vrot.slane %v855, 1
        %v857 = vmax.f32 %v855, %v856
        %v858 = vrot.slane %v630, 4
        %v859 = vmax.f32 %v630, %v858
        %v860 = vrot.slane %v859, 2
        %v861 = vmax.f32 %v859, %v860
        %v862 = vrot.slane %v861, 1
        %v863 = vmax.f32 %v861, %v862
        %v864 = vrot.slane %v631, 4
        %v865 = vmax.f32 %v631, %v864
        %v866 = vrot.slane %v865, 2
        %v867 = vmax.f32 %v865, %v866
        %v868 = vrot.slane %v867, 1
        %v869 = vmax.f32 %v867, %v868
        %v870 = vrot.slane %v632, 4
        %v871 = vmax.f32 %v632, %v870
        %v872 = vrot.slane %v871, 2
        %v873 = vmax.f32 %v871, %v872
        %v874 = vrot.slane %v873, 1
        %v875 = vmax.f32 %v873, %v874
        %v876 = vrot.slane %v633, 4
        %v877 = vmax.f32 %v633, %v876
        %v878 = vrot.slane %v877, 2
        %v879 = vmax.f32 %v877, %v878
        %v880 = vrot.slane %v879, 1
        %v881 = vmax.f32 %v879, %v880
        %v882 = vrot.slane %v634, 4
        %v883 = vmax.f32 %v634, %v882
        %v884 = vrot.slane %v883, 2
        %v885 = vmax.f32 %v883, %v884
        %v886 = vrot.slane %v885, 1
        %v887 = vmax.f32 %v885, %v886
        %v888 = vrot.slane %v635, 4
        %v889 = vmax.f32 %v635, %v888
        %v890 = vrot.slane %v889, 2
        %v891 = vmax.f32 %v889, %v890
        %v892 = vrot.slane %v891, 1
        %v893 = vmax.f32 %v891, %v892
        %v894 = vrot.slane %v636, 4
        %v895 = vmax.f32 %v636, %v894
        %v896 = vrot.slane %v895, 2
        %v897 = vmax.f32 %v895, %v896
        %v898 = vrot.slane %v897, 1
        %v899 = vmax.f32 %v897, %v898
        %v900 = vrot.slane %v637, 4
        %v901 = vmax.f32 %v637, %v900
        %v902 = vrot.slane %v901, 2
        %v903 = vmax.f32 %v901, %v902
        %v904 = vrot.slane %v903, 1
        %v905 = vmax.f32 %v903, %v904
        %v906 = vrot.slane %v638, 4
        %v907 = vmax.f32 %v638, %v906
        %v908 = vrot.slane %v907, 2
        %v909 = vmax.f32 %v907, %v908
        %v910 = vrot.slane %v909, 1
        %v911 = vmax.f32 %v909, %v910
        %v912 = vrot.slane %v639, 4
        %v913 = vmax.f32 %v639, %v912
        %v914 = vrot.slane %v913, 2
        %v915 = vmax.f32 %v913, %v914
        %v916 = vrot.slane %v915, 1
        %v917 = vmax.f32 %v915, %v916
        %v918 = vrot.slane %v640, 4
        %v919 = vmax.f32 %v640, %v918
        %v920 = vrot.slane %v919, 2
        %v921 = vmax.f32 %v919, %v920
        %v922 = vrot.slane %v921, 1
        %v923 = vmax.f32 %v921, %v922
        %v924 = vrot.slane %v641, 4
        %v925 = vmax.f32 %v641, %v924
        %v926 = vrot.slane %v925, 2
        %v927 = vmax.f32 %v925, %v926
        %v928 = vrot.slane %v927, 1
        %v929 = vmax.f32 %v927, %v928
        %v930 = vrot.slane %v642, 4
        %v931 = vmax.f32 %v642, %v930
        %v932 = vrot.slane %v931, 2
        %v933 = vmax.f32 %v931, %v932
        %v934 = vrot.slane %v933, 1
        %v935 = vmax.f32 %v933, %v934
        %v936 = vrot.slane %v643, 4
        %v937 = vmax.f32 %v643, %v936
        %v938 = vrot.slane %v937, 2
        %v939 = vmax.f32 %v937, %v938
        %v940 = vrot.slane %v939, 1
        %v941 = vmax.f32 %v939, %v940
        %v942 = vrot.slane %v644, 4
        %v943 = vmax.f32 %v644, %v942
        %v944 = vrot.slane %v943, 2
        %v945 = vmax.f32 %v943, %v944
        %v946 = vrot.slane %v945, 1
        %v947 = vmax.f32 %v945, %v946
        %v948 = vrot.slane %v645, 4
        %v949 = vmax.f32 %v645, %v948
        %v950 = vrot.slane %v949, 2
        %v951 = vmax.f32 %v949, %v950
        %v952 = vrot.slane %v951, 1
        %v953 = vmax.f32 %v951, %v952
        %v954 = vrot.slane %v646, 4
        %v955 = vmax.f32 %v646, %v954
        %v956 = vrot.slane %v955, 2
        %v957 = vmax.f32 %v955, %v956
        %v958 = vrot.slane %v957, 1
        %v959 = vmax.f32 %v957, %v958
        %v960 = vrot.slane %v647, 4
        %v961 = vmax.f32 %v647, %v960
        %v962 = vrot.slane %v961, 2
        %v963 = vmax.f32 %v961, %v962
        %v964 = vrot.slane %v963, 1
        %v965 = vmax.f32 %v963, %v964
        %v966 = vrot.slane %v648, 4
        %v967 = vmax.f32 %v648, %v966
        %v968 = vrot.slane %v967, 2
        %v969 = vmax.f32 %v967, %v968
        %v970 = vrot.slane %v969, 1
        %v971 = vmax.f32 %v969, %v970
        %v972 = vrot.slane %v649, 4
        %v973 = vmax.f32 %v649, %v972
        %v974 = vrot.slane %v973, 2
        %v975 = vmax.f32 %v973, %v974
        %v976 = vrot.slane %v975, 1
        %v977 = vmax.f32 %v975, %v976
        %v978 = vrot.slane %v650, 4
        %v979 = vmax.f32 %v650, %v978
        %v980 = vrot.slane %v979, 2
        %v981 = vmax.f32 %v979, %v980
        %v982 = vrot.slane %v981, 1
        %v983 = vmax.f32 %v981, %v982
        %v984 = vrot.slane %v651, 4
        %v985 = vmax.f32 %v651, %v984
        %v986 = vrot.slane %v985, 2
        %v987 = vmax.f32 %v985, %v986
        %v988 = vrot.slane %v987, 1
        %v989 = vmax.f32 %v987, %v988
        %v990 = vrot.slane %v652, 4
        %v991 = vmax.f32 %v652, %v990
        %v992 = vrot.slane %v991, 2
        %v993 = vmax.f32 %v991, %v992
        %v994 = vrot.slane %v993, 1
        %v995 = vmax.f32 %v993, %v994
        %v996 = vrot.slane %v653, 4
        %v997 = vmax.f32 %v653, %v996
        %v998 = vrot.slane %v997, 2
        %v999 = vmax.f32 %v997, %v998
        %v1000 = vrot.slane %v999, 1
        %v1001 = vmax.f32 %v999, %v1000
        %v1002 = vrot.slane %v654, 4
        %v1003 = vmax.f32 %v654, %v1002
        %v1004 = vrot.slane %v1003, 2
        %v1005 = vmax.f32 %v1003, %v1004
        %v1006 = vrot.slane %v1005, 1
        %v1007 = vmax.f32 %v1005, %v1006
        %v1008 = vrot.slane %v655, 4
        %v1009 = vmax.f32 %v655, %v1008
        %v1010 = vrot.slane %v1009, 2
        %v1011 = vmax.f32 %v1009, %v1010
        %v1012 = vrot.slane %v1011, 1
        %v1013 = vmax.f32 %v1011, %v1012
        %v1014 = vrot.slane %v656, 4
        %v1015 = vmax.f32 %v656, %v1014
        %v1016 = vrot.slane %v1015, 2
        %v1017 = vmax.f32 %v1015, %v1016
        %v1018 = vrot.slane %v1017, 1
        %v1019 = vmax.f32 %v1017, %v1018
        %v1020 = vrot.slane %v657, 4
        %v1021 = vmax.f32 %v657, %v1020
        %v1022 = vrot.slane %v1021, 2
        %v1023 = vmax.f32 %v1021, %v1022
        %v1024 = vrot.slane %v1023, 1
        %v1025 = vmax.f32 %v1023, %v1024
        %v1026 = vrot.slane %v658, 4
        %v1027 = vmax.f32 %v658, %v1026
        %v1028 = vrot.slane %v1027, 2
        %v1029 = vmax.f32 %v1027, %v1028
        %v1030 = vrot.slane %v1029, 1
        %v1031 = vmax.f32 %v1029, %v1030
        %v1032 = vrot.slane %v659, 4
        %v1033 = vmax.f32 %v659, %v1032
        %v1034 = vrot.slane %v1033, 2
        %v1035 = vmax.f32 %v1033, %v1034
        %v1036 = vrot.slane %v1035, 1
        %v1037 = vmax.f32 %v1035, %v1036
        %v1038 = vrot.slane %v660, 4
        %v1039 = vmax.f32 %v660, %v1038
        %v1040 = vrot.slane %v1039, 2
        %v1041 = vmax.f32 %v1039, %v1040
        %v1042 = vrot.slane %v1041, 1
        %v1043 = vmax.f32 %v1041, %v1042
        %v1044 = vrot.slane %v661, 4
        %v1045 = vmax.f32 %v661, %v1044
        %v1046 = vrot.slane %v1045, 2
        %v1047 = vmax.f32 %v1045, %v1046
        %v1048 = vrot.slane %v1047, 1
        %v1049 = vmax.f32 %v1047, %v1048
        %v1050 = vrot.slane %v662, 4
        %v1051 = vmax.f32 %v662, %v1050
        %v1052 = vrot.slane %v1051, 2
        %v1053 = vmax.f32 %v1051, %v1052
        %v1054 = vrot.slane %v1053, 1
        %v1055 = vmax.f32 %v1053, %v1054
        %v1056 = vrot.slane %v663, 4
        %v1057 = vmax.f32 %v663, %v1056
        %v1058 = vrot.slane %v1057, 2
        %v1059 = vmax.f32 %v1057, %v1058
        %v1060 = vrot.slane %v1059, 1
        %v1061 = vmax.f32 %v1059, %v1060
        %v1062 = vrot.slane %v664, 4
        %v1063 = vmax.f32 %v664, %v1062
        %v1064 = vrot.slane %v1063, 2
        %v1065 = vmax.f32 %v1063, %v1064
        %v1066 = vrot.slane %v1065, 1
        %v1067 = vmax.f32 %v1065, %v1066
        %v1068 = vrot.slane %v665, 4
        %v1069 = vmax.f32 %v665, %v1068
        %v1070 = vrot.slane %v1069, 2
        %v1071 = vmax.f32 %v1069, %v1070
        %v1072 = vrot.slane %v1071, 1
        %v1073 = vmax.f32 %v1071, %v1072
        %v1074 = vrot.slane %v666, 4
        %v1075 = vmax.f32 %v666, %v1074
        %v1076 = vrot.slane %v1075, 2
        %v1077 = vmax.f32 %v1075, %v1076
        %v1078 = vrot.slane %v1077, 1
        %v1079 = vmax.f32 %v1077, %v1078
        %v1080 = vrot.slane %v667, 4
        %v1081 = vmax.f32 %v667, %v1080
        %v1082 = vrot.slane %v1081, 2
        %v1083 = vmax.f32 %v1081, %v1082
        %v1084 = vrot.slane %v1083, 1
        %v1085 = vmax.f32 %v1083, %v1084
        %v1086 = vrot.slane %v668, 4
        %v1087 = vmax.f32 %v668, %v1086
        %v1088 = vrot.slane %v1087, 2
        %v1089 = vmax.f32 %v1087, %v1088
        %v1090 = vrot.slane %v1089, 1
        %v1091 = vmax.f32 %v1089, %v1090
        %v1092 = vrot.slane %v669, 4
        %v1093 = vmax.f32 %v669, %v1092
        %v1094 = vrot.slane %v1093, 2
        %v1095 = vmax.f32 %v1093, %v1094
        %v1096 = vrot.slane %v1095, 1
        %v1097 = vmax.f32 %v1095, %v1096
        %v1098 = vrot.slane %v670, 4
        %v1099 = vmax.f32 %v670, %v1098
        %v1100 = vrot.slane %v1099, 2
        %v1101 = vmax.f32 %v1099, %v1100
        %v1102 = vrot.slane %v1101, 1
        %v1103 = vmax.f32 %v1101, %v1102
        %v1104 = vrot.slane %v671, 4
        %v1105 = vmax.f32 %v671, %v1104
        %v1106 = vrot.slane %v1105, 2
        %v1107 = vmax.f32 %v1105, %v1106
        %v1108 = vrot.slane %v1107, 1
        %v1109 = vmax.f32 %v1107, %v1108
        %v1110 = vrot.slane %v672, 4
        %v1111 = vmax.f32 %v672, %v1110
        %v1112 = vrot.slane %v1111, 2
        %v1113 = vmax.f32 %v1111, %v1112
        %v1114 = vrot.slane %v1113, 1
        %v1115 = vmax.f32 %v1113, %v1114
        %v1116 = vrot.slane %v673, 4
        %v1117 = vmax.f32 %v673, %v1116
        %v1118 = vrot.slane %v1117, 2
        %v1119 = vmax.f32 %v1117, %v1118
        %v1120 = vrot.slane %v1119, 1
        %v1121 = vmax.f32 %v1119, %v1120
        %v1122 = vrot.slane %v674, 4
        %v1123 = vmax.f32 %v674, %v1122
        %v1124 = vrot.slane %v1123, 2
        %v1125 = vmax.f32 %v1123, %v1124
        %v1126 = vrot.slane %v1125, 1
        %v1127 = vmax.f32 %v1125, %v1126
        %v1128 = vrot.slane %v675, 4
        %v1129 = vmax.f32 %v675, %v1128
        %v1130 = vrot.slane %v1129, 2
        %v1131 = vmax.f32 %v1129, %v1130
        %v1132 = vrot.slane %v1131, 1
        %v1133 = vmax.f32 %v1131, %v1132
        %v1134 = vrot.slane %v676, 4
        %v1135 = vmax.f32 %v676, %v1134
        %v1136 = vrot.slane %v1135, 2
        %v1137 = vmax.f32 %v1135, %v1136
        %v1138 = vrot.slane %v1137, 1
        %v1139 = vmax.f32 %v1137, %v1138
        %v1140 = vrot.slane %v677, 4
        %v1141 = vmax.f32 %v677, %v1140
        %v1142 = vrot.slane %v1141, 2
        %v1143 = vmax.f32 %v1141, %v1142
        %v1144 = vrot.slane %v1143, 1
        %v1145 = vmax.f32 %v1143, %v1144
        %v1146 = vrot.slane %v678, 4
        %v1147 = vmax.f32 %v678, %v1146
        %v1148 = vrot.slane %v1147, 2
        %v1149 = vmax.f32 %v1147, %v1148
        %v1150 = vrot.slane %v1149, 1
        %v1151 = vmax.f32 %v1149, %v1150
        %v1152 = vrot.slane %v679, 4
        %v1153 = vmax.f32 %v679, %v1152
        %v1154 = vrot.slane %v1153, 2
        %v1155 = vmax.f32 %v1153, %v1154
        %v1156 = vrot.slane %v1155, 1
        %v1157 = vmax.f32 %v1155, %v1156
        %v1158 = vrot.slane %v680, 4
        %v1159 = vmax.f32 %v680, %v1158
        %v1160 = vrot.slane %v1159, 2
        %v1161 = vmax.f32 %v1159, %v1160
        %v1162 = vrot.slane %v1161, 1
        %v1163 = vmax.f32 %v1161, %v1162
        %v1164 = vrot.slane %v681, 4
        %v1165 = vmax.f32 %v681, %v1164
        %v1166 = vrot.slane %v1165, 2
        %v1167 = vmax.f32 %v1165, %v1166
        %v1168 = vrot.slane %v1167, 1
        %v1169 = vmax.f32 %v1167, %v1168
        %v1170 = vrot.slane %v682, 4
        %v1171 = vmax.f32 %v682, %v1170
        %v1172 = vrot.slane %v1171, 2
        %v1173 = vmax.f32 %v1171, %v1172
        %v1174 = vrot.slane %v1173, 1
        %v1175 = vmax.f32 %v1173, %v1174
        %v1176 = vrot.slane %v683, 4
        %v1177 = vmax.f32 %v683, %v1176
        %v1178 = vrot.slane %v1177, 2
        %v1179 = vmax.f32 %v1177, %v1178
        %v1180 = vrot.slane %v1179, 1
        %v1181 = vmax.f32 %v1179, %v1180
        %v1182 = vrot.slane %v684, 4
        %v1183 = vmax.f32 %v684, %v1182
        %v1184 = vrot.slane %v1183, 2
        %v1185 = vmax.f32 %v1183, %v1184
        %v1186 = vrot.slane %v1185, 1
        %v1187 = vmax.f32 %v1185, %v1186
        %v1188 = vrot.slane %v685, 4
        %v1189 = vmax.f32 %v685, %v1188
        %v1190 = vrot.slane %v1189, 2
        %v1191 = vmax.f32 %v1189, %v1190
        %v1192 = vrot.slane %v1191, 1
        %v1193 = vmax.f32 %v1191, %v1192
        %v1194 = vrot.slane %v686, 4
        %v1195 = vmax.f32 %v686, %v1194
        %v1196 = vrot.slane %v1195, 2
        %v1197 = vmax.f32 %v1195, %v1196
        %v1198 = vrot.slane %v1197, 1
        %v1199 = vmax.f32 %v1197, %v1198
        %v1200 = vrot.slane %v687, 4
        %v1201 = vmax.f32 %v687, %v1200
        %v1202 = vrot.slane %v1201, 2
        %v1203 = vmax.f32 %v1201, %v1202
        %v1204 = vrot.slane %v1203, 1
        %v1205 = vmax.f32 %v1203, %v1204
        %v1206 = vrot.slane %v688, 4
        %v1207 = vmax.f32 %v688, %v1206
        %v1208 = vrot.slane %v1207, 2
        %v1209 = vmax.f32 %v1207, %v1208
        %v1210 = vrot.slane %v1209, 1
        %v1211 = vmax.f32 %v1209, %v1210
        %v1212 = vrot.slane %v689, 4
        %v1213 = vmax.f32 %v689, %v1212
        %v1214 = vrot.slane %v1213, 2
        %v1215 = vmax.f32 %v1213, %v1214
        %v1216 = vrot.slane %v1215, 1
        %v1217 = vmax.f32 %v1215, %v1216
        %v1218 = vrot.slane %v690, 4
        %v1219 = vmax.f32 %v690, %v1218
        %v1220 = vrot.slane %v1219, 2
        %v1221 = vmax.f32 %v1219, %v1220
        %v1222 = vrot.slane %v1221, 1
        %v1223 = vmax.f32 %v1221, %v1222
        %v1224 = vrot.slane %v691, 4
        %v1225 = vmax.f32 %v691, %v1224
        %v1226 = vrot.slane %v1225, 2
        %v1227 = vmax.f32 %v1225, %v1226
        %v1228 = vrot.slane %v1227, 1
        %v1229 = vmax.f32 %v1227, %v1228
        %v1230 = vrot.slane %v692, 4
        %v1231 = vmax.f32 %v692, %v1230
        %v1232 = vrot.slane %v1231, 2
        %v1233 = vmax.f32 %v1231, %v1232
        %v1234 = vrot.slane %v1233, 1
        %v1235 = vmax.f32 %v1233, %v1234
        %v1236 = vrot.slane %v693, 4
        %v1237 = vmax.f32 %v693, %v1236
        %v1238 = vrot.slane %v1237, 2
        %v1239 = vmax.f32 %v1237, %v1238
        %v1240 = vrot.slane %v1239, 1
        %v1241 = vmax.f32 %v1239, %v1240
        %v1242 = vrot.slane %v694, 4
        %v1243 = vmax.f32 %v694, %v1242
        %v1244 = vrot.slane %v1243, 2
        %v1245 = vmax.f32 %v1243, %v1244
        %v1246 = vrot.slane %v1245, 1
        %v1247 = vmax.f32 %v1245, %v1246
        %v1248 = vrot.slane %v695, 4
        %v1249 = vmax.f32 %v695, %v1248
        %v1250 = vrot.slane %v1249, 2
        %v1251 = vmax.f32 %v1249, %v1250
        %v1252 = vrot.slane %v1251, 1
        %v1253 = vmax.f32 %v1251, %v1252
        %v1254 = vrot.slane %v696, 4
        %v1255 = vmax.f32 %v696, %v1254
        %v1256 = vrot.slane %v1255, 2
        %v1257 = vmax.f32 %v1255, %v1256
        %v1258 = vrot.slane %v1257, 1
        %v1259 = vmax.f32 %v1257, %v1258
        %v1260 = vrot.slane %v697, 4
        %v1261 = vmax.f32 %v697, %v1260
        %v1262 = vrot.slane %v1261, 2
        %v1263 = vmax.f32 %v1261, %v1262
        %v1264 = vrot.slane %v1263, 1
        %v1265 = vmax.f32 %v1263, %v1264
        %v1266 = vrot.slane %v698, 4
        %v1267 = vmax.f32 %v698, %v1266
        %v1268 = vrot.slane %v1267, 2
        %v1269 = vmax.f32 %v1267, %v1268
        %v1270 = vrot.slane %v1269, 1
        %v1271 = vmax.f32 %v1269, %v1270
        %v1272 = vrot.slane %v699, 4
        %v1273 = vmax.f32 %v699, %v1272
        %v1274 = vrot.slane %v1273, 2
        %v1275 = vmax.f32 %v1273, %v1274
        %v1276 = vrot.slane %v1275, 1
        %v1277 = vmax.f32 %v1275, %v1276
        %v1278 = vrot.slane %v700, 4
        %v1279 = vmax.f32 %v700, %v1278
        %v1280 = vrot.slane %v1279, 2
        %v1281 = vmax.f32 %v1279, %v1280
        %v1282 = vrot.slane %v1281, 1
        %v1283 = vmax.f32 %v1281, %v1282
        %v1284 = vrot.slane %v701, 4
        %v1285 = vmax.f32 %v701, %v1284
        %v1286 = vrot.slane %v1285, 2
        %v1287 = vmax.f32 %v1285, %v1286
        %v1288 = vrot.slane %v1287, 1
        %v1289 = vmax.f32 %v1287, %v1288
        %v1290 = vrot.slane %v702, 4
        %v1291 = vmax.f32 %v702, %v1290
        %v1292 = vrot.slane %v1291, 2
        %v1293 = vmax.f32 %v1291, %v1292
        %v1294 = vrot.slane %v1293, 1
        %v1295 = vmax.f32 %v1293, %v1294
        %v1296 = vrot.slane %v703, 4
        %v1297 = vmax.f32 %v703, %v1296
        %v1298 = vrot.slane %v1297, 2
        %v1299 = vmax.f32 %v1297, %v1298
        %v1300 = vrot.slane %v1299, 1
        %v1301 = vmax.f32 %v1299, %v1300
        %v1302 = vrot.slane %v704, 4
        %v1303 = vmax.f32 %v704, %v1302
        %v1304 = vrot.slane %v1303, 2
        %v1305 = vmax.f32 %v1303, %v1304
        %v1306 = vrot.slane %v1305, 1
        %v1307 = vmax.f32 %v1305, %v1306
        %v1308 = vrot.slane %v705, 4
        %v1309 = vmax.f32 %v705, %v1308
        %v1310 = vrot.slane %v1309, 2
        %v1311 = vmax.f32 %v1309, %v1310
        %v1312 = vrot.slane %v1311, 1
        %v1313 = vmax.f32 %v1311, %v1312
        %v1314 = vrot.slane %v706, 4
        %v1315 = vmax.f32 %v706, %v1314
        %v1316 = vrot.slane %v1315, 2
        %v1317 = vmax.f32 %v1315, %v1316
        %v1318 = vrot.slane %v1317, 1
        %v1319 = vmax.f32 %v1317, %v1318
        %v1320 = vrot.slane %v707, 4
        %v1321 = vmax.f32 %v707, %v1320
        %v1322 = vrot.slane %v1321, 2
        %v1323 = vmax.f32 %v1321, %v1322
        %v1324 = vrot.slane %v1323, 1
        %v1325 = vmax.f32 %v1323, %v1324
        %v1326 = vrot.slane %v708, 4
        %v1327 = vmax.f32 %v708, %v1326
        %v1328 = vrot.slane %v1327, 2
        %v1329 = vmax.f32 %v1327, %v1328
        %v1330 = vrot.slane %v1329, 1
        %v1331 = vmax.f32 %v1329, %v1330
        %v1332 = vrot.slane %v709, 4
        %v1333 = vmax.f32 %v709, %v1332
        %v1334 = vrot.slane %v1333, 2
        %v1335 = vmax.f32 %v1333, %v1334
        %v1336 = vrot.slane %v1335, 1
        %v1337 = vmax.f32 %v1335, %v1336
        %v1338 = vrot.slane %v710, 4
        %v1339 = vmax.f32 %v710, %v1338
        %v1340 = vrot.slane %v1339, 2
        %v1341 = vmax.f32 %v1339, %v1340
        %v1342 = vrot.slane %v1341, 1
        %v1343 = vmax.f32 %v1341, %v1342
        %v1344 = vrot.slane %v711, 4
        %v1345 = vmax.f32 %v711, %v1344
        %v1346 = vrot.slane %v1345, 2
        %v1347 = vmax.f32 %v1345, %v1346
        %v1348 = vrot.slane %v1347, 1
        %v1349 = vmax.f32 %v1347, %v1348
        %v1350 = vrot.slane %v712, 4
        %v1351 = vmax.f32 %v712, %v1350
        %v1352 = vrot.slane %v1351, 2
        %v1353 = vmax.f32 %v1351, %v1352
        %v1354 = vrot.slane %v1353, 1
        %v1355 = vmax.f32 %v1353, %v1354
        %v1356 = vrot.slane %v713, 4
        %v1357 = vmax.f32 %v713, %v1356
        %v1358 = vrot.slane %v1357, 2
        %v1359 = vmax.f32 %v1357, %v1358
        %v1360 = vrot.slane %v1359, 1
        %v1361 = vmax.f32 %v1359, %v1360
        %v1362 = vrot.slane %v714, 4
        %v1363 = vmax.f32 %v714, %v1362
        %v1364 = vrot.slane %v1363, 2
        %v1365 = vmax.f32 %v1363, %v1364
        %v1366 = vrot.slane %v1365, 1
        %v1367 = vmax.f32 %v1365, %v1366
        %v1368 = vrot.slane %v715, 4
        %v1369 = vmax.f32 %v715, %v1368
        %v1370 = vrot.slane %v1369, 2
        %v1371 = vmax.f32 %v1369, %v1370
        %v1372 = vrot.slane %v1371, 1
        %v1373 = vmax.f32 %v1371, %v1372
        %v1374 = vrot.slane %v716, 4
        %v1375 = vmax.f32 %v716, %v1374
        %v1376 = vrot.slane %v1375, 2
        %v1377 = vmax.f32 %v1375, %v1376
        %v1378 = vrot.slane %v1377, 1
        %v1379 = vmax.f32 %v1377, %v1378
        %v1380 = vrot.slane %v717, 4
        %v1381 = vmax.f32 %v717, %v1380
        %v1382 = vrot.slane %v1381, 2
        %v1383 = vmax.f32 %v1381, %v1382
        %v1384 = vrot.slane %v1383, 1
        %v1385 = vmax.f32 %v1383, %v1384
        %v1386 = vrot.slane %v718, 4
        %v1387 = vmax.f32 %v718, %v1386
        %v1388 = vrot.slane %v1387, 2
        %v1389 = vmax.f32 %v1387, %v1388
        %v1390 = vrot.slane %v1389, 1
        %v1391 = vmax.f32 %v1389, %v1390
        %v1392 = vrot.slane %v719, 4
        %v1393 = vmax.f32 %v719, %v1392
        %v1394 = vrot.slane %v1393, 2
        %v1395 = vmax.f32 %v1393, %v1394
        %v1396 = vrot.slane %v1395, 1
        %v1397 = vmax.f32 %v1395, %v1396
        %v1398 = vrot.slane %v720, 4
        %v1399 = vmax.f32 %v720, %v1398
        %v1400 = vrot.slane %v1399, 2
        %v1401 = vmax.f32 %v1399, %v1400
        %v1402 = vrot.slane %v1401, 1
        %v1403 = vmax.f32 %v1401, %v1402
        %v1404 = vrot.slane %v721, 4
        %v1405 = vmax.f32 %v721, %v1404
        %v1406 = vrot.slane %v1405, 2
        %v1407 = vmax.f32 %v1405, %v1406
        %v1408 = vrot.slane %v1407, 1
        %v1409 = vmax.f32 %v1407, %v1408
        %v1410 = vrot.slane %v722, 4
        %v1411 = vmax.f32 %v722, %v1410
        %v1412 = vrot.slane %v1411, 2
        %v1413 = vmax.f32 %v1411, %v1412
        %v1414 = vrot.slane %v1413, 1
        %v1415 = vmax.f32 %v1413, %v1414
        %v1416 = vrot.slane %v723, 4
        %v1417 = vmax.f32 %v723, %v1416
        %v1418 = vrot.slane %v1417, 2
        %v1419 = vmax.f32 %v1417, %v1418
        %v1420 = vrot.slane %v1419, 1
        %v1421 = vmax.f32 %v1419, %v1420
        %v1422 = vrot.slane %v724, 4
        %v1423 = vmax.f32 %v724, %v1422
        %v1424 = vrot.slane %v1423, 2
        %v1425 = vmax.f32 %v1423, %v1424
        %v1426 = vrot.slane %v1425, 1
        %v1427 = vmax.f32 %v1425, %v1426
        %v1428 = vrot.slane %v725, 4
        %v1429 = vmax.f32 %v725, %v1428
        %v1430 = vrot.slane %v1429, 2
        %v1431 = vmax.f32 %v1429, %v1430
        %v1432 = vrot.slane %v1431, 1
        %v1433 = vmax.f32 %v1431, %v1432
        %v1434 = vrot.slane %v726, 4
        %v1435 = vmax.f32 %v726, %v1434
        %v1436 = vrot.slane %v1435, 2
        %v1437 = vmax.f32 %v1435, %v1436
        %v1438 = vrot.slane %v1437, 1
        %v1439 = vmax.f32 %v1437, %v1438
        %v1440 = vrot.slane %v727, 4
        %v1441 = vmax.f32 %v727, %v1440
        %v1442 = vrot.slane %v1441, 2
        %v1443 = vmax.f32 %v1441, %v1442
        %v1444 = vrot.slane %v1443, 1
        %v1445 = vmax.f32 %v1443, %v1444
        %v1446 = vrot.slane %v728, 4
        %v1447 = vmax.f32 %v728, %v1446
        %v1448 = vrot.slane %v1447, 2
        %v1449 = vmax.f32 %v1447, %v1448
        %v1450 = vrot.slane %v1449, 1
        %v1451 = vmax.f32 %v1449, %v1450
        %v1452 = vrot.slane %v729, 4
        %v1453 = vmax.f32 %v729, %v1452
        %v1454 = vrot.slane %v1453, 2
        %v1455 = vmax.f32 %v1453, %v1454
        %v1456 = vrot.slane %v1455, 1
        %v1457 = vmax.f32 %v1455, %v1456
        %v1458 = vrot.slane %v730, 4
        %v1459 = vmax.f32 %v730, %v1458
        %v1460 = vrot.slane %v1459, 2
        %v1461 = vmax.f32 %v1459, %v1460
        %v1462 = vrot.slane %v1461, 1
        %v1463 = vmax.f32 %v1461, %v1462
        %v1464 = vrot.slane %v731, 4
        %v1465 = vmax.f32 %v731, %v1464
        %v1466 = vrot.slane %v1465, 2
        %v1467 = vmax.f32 %v1465, %v1466
        %v1468 = vrot.slane %v1467, 1
        %v1469 = vmax.f32 %v1467, %v1468
        %v1470 = vrot.slane %v732, 4
        %v1471 = vmax.f32 %v732, %v1470
        %v1472 = vrot.slane %v1471, 2
        %v1473 = vmax.f32 %v1471, %v1472
        %v1474 = vrot.slane %v1473, 1
        %v1475 = vmax.f32 %v1473, %v1474
        %v1476 = vrot.slane %v733, 4
        %v1477 = vmax.f32 %v733, %v1476
        %v1478 = vrot.slane %v1477, 2
        %v1479 = vmax.f32 %v1477, %v1478
        %v1480 = vrot.slane %v1479, 1
        %v1481 = vmax.f32 %v1479, %v1480
        %v1482 = vrot.slane %v734, 4
        %v1483 = vmax.f32 %v734, %v1482
        %v1484 = vrot.slane %v1483, 2
        %v1485 = vmax.f32 %v1483, %v1484
        %v1486 = vrot.slane %v1485, 1
        %v1487 = vmax.f32 %v1485, %v1486
        %v1488 = vrot.slane %v735, 4
        %v1489 = vmax.f32 %v735, %v1488
        %v1490 = vrot.slane %v1489, 2
        %v1491 = vmax.f32 %v1489, %v1490
        %v1492 = vrot.slane %v1491, 1
        %v1493 = vmax.f32 %v1491, %v1492
        %v1494 = vrot.slane %v736, 4
        %v1495 = vmax.f32 %v736, %v1494
        %v1496 = vrot.slane %v1495, 2
        %v1497 = vmax.f32 %v1495, %v1496
        %v1498 = vrot.slane %v1497, 1
        %v1499 = vmax.f32 %v1497, %v1498
        %v1500 = vrot.slane %v737, 4
        %v1501 = vmax.f32 %v737, %v1500
        %v1502 = vrot.slane %v1501, 2
        %v1503 = vmax.f32 %v1501, %v1502
        %v1504 = vrot.slane %v1503, 1
        %v1505 = vmax.f32 %v1503, %v1504
        %v1506 = vld [vmem:[#allocation2] sm:$0xff]
        %v1507 = vld [vmem:[#allocation2 + $0x8] sm:$0xff]
        %v1508 = vld [vmem:[#allocation2 + $0x10] sm:$0xff]
        %v1509 = vld [vmem:[#allocation2 + $0x18] sm:$0xff]
        %v1510 = vld [vmem:[#allocation2 + $0x20] sm:$0xff]
        %v1511 = vld [vmem:[#allocation2 + $0x28] sm:$0xff]
        %v1512 = vld [vmem:[#allocation2 + $0x30] sm:$0xff]
        %v1513 = vld [vmem:[#allocation2 + $0x38] sm:$0xff]
        %v1514 = vld [vmem:[#allocation2 + $0x40] sm:$0xff]
        %v1515 = vld [vmem:[#allocation2 + $0x48] sm:$0xff]
        %v1516 = vld [vmem:[#allocation2 + $0x50] sm:$0xff]
        %v1517 = vld [vmem:[#allocation2 + $0x58] sm:$0xff]
        %v1518 = vld [vmem:[#allocation2 + $0x60] sm:$0xff]
        %v1519 = vld [vmem:[#allocation2 + $0x68] sm:$0xff]
        %v1520 = vld [vmem:[#allocation2 + $0x70] sm:$0xff]
        %v1521 = vld [vmem:[#allocation2 + $0x78] sm:$0xff]
        %vm1650 = vcmask 1041409
        %v1651 = vsel %vm1650, %v755, %v743
        %vm1652 = vcmask 1042434
        %v1653 = vsel %vm1652, %v767, %v1651
        %vm1654 = vcmask 1043459
        %v1655 = vsel %vm1654, %v779, %v1653
        %vm1656 = vcmask 1044484
        %v1657 = vsel %vm1656, %v791, %v1655
        %vm1658 = vcmask 1045509
        %v1659 = vsel %vm1658, %v803, %v1657
        %vm1660 = vcmask 1046534
        %v1661 = vsel %vm1660, %v815, %v1659
        %vm1662 = vcmask 1047559
        %v1663 = vsel %vm1662, %v827, %v1661
        %v1664 = vsel %vm1650, %v761, %v749
        %v1665 = vsel %vm1652, %v773, %v1664
        %v1666 = vsel %vm1654, %v785, %v1665
        %v1667 = vsel %vm1656, %v797, %v1666
        %v1668 = vsel %vm1658, %v809, %v1667
        %v1669 = vsel %vm1660, %v821, %v1668
        %v1670 = vsel %vm1662, %v833, %v1669
        %v1671 = vsel %vm1650, %v851, %v839
        %v1672 = vsel %vm1652, %v863, %v1671
        %v1673 = vsel %vm1654, %v875, %v1672
        %v1674 = vsel %vm1656, %v887, %v1673
        %v1675 = vsel %vm1658, %v899, %v1674
        %v1676 = vsel %vm1660, %v911, %v1675
        %v1677 = vsel %vm1662, %v923, %v1676
        %v1678 = vsel %vm1650, %v857, %v845
        %v1679 = vsel %vm1652, %v869, %v1678
        %v1680 = vsel %vm1654, %v881, %v1679
        %v1681 = vsel %vm1656, %v893, %v1680
        %v1682 = vsel %vm1658, %v905, %v1681
        %v1683 = vsel %vm1660, %v917, %v1682
        %v1684 = vsel %vm1662, %v929, %v1683
        %v1685 = vsel %vm1650, %v947, %v935
        %v1686 = vsel %vm1652, %v959, %v1685
        %v1687 = vsel %vm1654, %v971, %v1686
        %v1688 = vsel %vm1656, %v983, %v1687
        %v1689 = vsel %vm1658, %v995, %v1688
        %v1690 = vsel %vm1660, %v1007, %v1689
        %v1691 = vsel %vm1662, %v1019, %v1690
        %v1692 = vsel %vm1650, %v953, %v941
        %v1693 = vsel %vm1652, %v965, %v1692
        %v1694 = vsel %vm1654, %v977, %v1693
        %v1695 = vsel %vm1656, %v989, %v1694
        %v1696 = vsel %vm1658, %v1001, %v1695
        %v1697 = vsel %vm1660, %v1013, %v1696
        %v1698 = vsel %vm1662, %v1025, %v1697
        %v1699 = vsel %vm1650, %v1043, %v1031
        %v1700 = vsel %vm1652, %v1055, %v1699
        %v1701 = vsel %vm1654, %v1067, %v1700
        %v1702 = vsel %vm1656, %v1079, %v1701
        %v1703 = vsel %vm1658, %v1091, %v1702
        %v1704 = vsel %vm1660, %v1103, %v1703
        %v1705 = vsel %vm1662, %v1115, %v1704
        %v1706 = vsel %vm1650, %v1049, %v1037
        %v1707 = vsel %vm1652, %v1061, %v1706
        %v1708 = vsel %vm1654, %v1073, %v1707
        %v1709 = vsel %vm1656, %v1085, %v1708
        %v1710 = vsel %vm1658, %v1097, %v1709
        %v1711 = vsel %vm1660, %v1109, %v1710
        %v1712 = vsel %vm1662, %v1121, %v1711
        %v1713 = vsel %vm1650, %v1139, %v1127
        %v1714 = vsel %vm1652, %v1151, %v1713
        %v1715 = vsel %vm1654, %v1163, %v1714
        %v1716 = vsel %vm1656, %v1175, %v1715
        %v1717 = vsel %vm1658, %v1187, %v1716
        %v1718 = vsel %vm1660, %v1199, %v1717
        %v1719 = vsel %vm1662, %v1211, %v1718
        %v1720 = vsel %vm1650, %v1145, %v1133
        %v1721 = vsel %vm1652, %v1157, %v1720
        %v1722 = vsel %vm1654, %v1169, %v1721
        %v1723 = vsel %vm1656, %v1181, %v1722
        %v1724 = vsel %vm1658, %v1193, %v1723
        %v1725 = vsel %vm1660, %v1205, %v1724
        %v1726 = vsel %vm1662, %v1217, %v1725
        %v1727 = vsel %vm1650, %v1235, %v1223
        %v1728 = vsel %vm1652, %v1247, %v1727
        %v1729 = vsel %vm1654, %v1259, %v1728
        %v1730 = vsel %vm1656, %v1271, %v1729
        %v1731 = vsel %vm1658, %v1283, %v1730
        %v1732 = vsel %vm1660, %v1295, %v1731
        %v1733 = vsel %vm1662, %v1307, %v1732
        %v1734 = vsel %vm1650, %v1241, %v1229
        %v1735 = vsel %vm1652, %v1253, %v1734
        %v1736 = vsel %vm1654, %v1265, %v1735
        %v1737 = vsel %vm1656, %v1277, %v1736
        %v1738 = vsel %vm1658, %v1289, %v1737
        %v1739 = vsel %vm1660, %v1301, %v1738
        %v1740 = vsel %vm1662, %v1313, %v1739
        %v1741 = vsel %vm1650, %v1331, %v1319
        %v1742 = vsel %vm1652, %v1343, %v1741
        %v1743 = vsel %vm1654, %v1355, %v1742
        %v1744 = vsel %vm1656, %v1367, %v1743
        %v1745 = vsel %vm1658, %v1379, %v1744
        %v1746 = vsel %vm1660, %v1391, %v1745
        %v1747 = vsel %vm1662, %v1403, %v1746
        %v1748 = vsel %vm1650, %v1337, %v1325
        %v1749 = vsel %vm1652, %v1349, %v1748
        %v1750 = vsel %vm1654, %v1361, %v1749
        %v1751 = vsel %vm1656, %v1373, %v1750
        %v1752 = vsel %vm1658, %v1385, %v1751
        %v1753 = vsel %vm1660, %v1397, %v1752
        %v1754 = vsel %vm1662, %v1409, %v1753
        %v1755 = vsel %vm1650, %v1427, %v1415
        %v1756 = vsel %vm1652, %v1439, %v1755
        %v1757 = vsel %vm1654, %v1451, %v1756
        %v1758 = vsel %vm1656, %v1463, %v1757
        %v1759 = vsel %vm1658, %v1475, %v1758
        %v1760 = vsel %vm1660, %v1487, %v1759
        %v1761 = vsel %vm1662, %v1499, %v1760
        %v1762 = vsel %vm1650, %v1433, %v1421
        %v1763 = vsel %vm1652, %v1445, %v1762
        %v1764 = vsel %vm1654, %v1457, %v1763
        %v1765 = vsel %vm1656, %v1469, %v1764
        %v1766 = vsel %vm1658, %v1481, %v1765
        %v1767 = vsel %vm1660, %v1493, %v1766
        %v1768 = vsel %vm1662, %v1505, %v1767
        %v1785 = vmax.f32 %v1506, %v1663
        %v1786 = vmax.f32 %v1507, %v1670
        %v1787 = vmax.f32 %v1508, %v1677
        %v1788 = vmax.f32 %v1509, %v1684
        %v1789 = vmax.f32 %v1510, %v1691
        %v1790 = vmax.f32 %v1511, %v1698
        %v1791 = vmax.f32 %v1512, %v1705
        %v1792 = vmax.f32 %v1513, %v1712
        %v1793 = vmax.f32 %v1514, %v1719
        %v1794 = vmax.f32 %v1515, %v1726
        %v1795 = vmax.f32 %v1516, %v1733
        %v1796 = vmax.f32 %v1517, %v1740
        %v1797 = vmax.f32 %v1518, %v1747
        %v1798 = vmax.f32 %v1519, %v1754
        %v1799 = vmax.f32 %v1520, %v1761
        %v1800 = vmax.f32 %v1521, %v1768
        %1801 = vst [vmem:[#allocation2] sm:$0xff] %v1785
        %1802 = vst [vmem:[#allocation2 + $0x8] sm:$0xff] %v1786
        %1803 = vst [vmem:[#allocation2 + $0x10] sm:$0xff] %v1787
        %1804 = vst [vmem:[#allocation2 + $0x18] sm:$0xff] %v1788
        %1805 = vst [vmem:[#allocation2 + $0x20] sm:$0xff] %v1789
        %1806 = vst [vmem:[#allocation2 + $0x28] sm:$0xff] %v1790
        %1807 = vst [vmem:[#allocation2 + $0x30] sm:$0xff] %v1791
        %1808 = vst [vmem:[#allocation2 + $0x38] sm:$0xff] %v1792
        %1809 = vst [vmem:[#allocation2 + $0x40] sm:$0xff] %v1793
        %1810 = vst [vmem:[#allocation2 + $0x48] sm:$0xff] %v1794
        %1811 = vst [vmem:[#allocation2 + $0x50] sm:$0xff] %v1795
        %1812 = vst [vmem:[#allocation2 + $0x58] sm:$0xff] %v1796
        %1813 = vst [vmem:[#allocation2 + $0x60] sm:$0xff] %v1797
        %1814 = vst [vmem:[#allocation2 + $0x68] sm:$0xff] %v1798
        %1815 = vst [vmem:[#allocation2 + $0x70] sm:$0xff] %v1799
        %1816 = vst [vmem:[#allocation2 + $0x78] sm:$0xff] %v1800
        %p1817 = scmp.eq.s32.totalorder %s30, 1
        // Predicated region
        $region68: #{direction_estimation_forward.1} parent=58 // pred_check
          %p1818 = pneg %p1817
        $region69: #{direction_estimation_forward.1} parent=58 // pred_check_branch
          %1820 = sbr.rel (%p1818) target = $region71
        $region70: #{direction_estimation_forward.1} parent=58 // pred_region
          %v1821 = vld [vmem:[#allocation2] sm:$0xff]
          %v1822 = vld [vmem:[#allocation2 + $0x8] sm:$0xff]
          %v1823 = vld [vmem:[#allocation2 + $0x10] sm:$0xff]
          %v1824 = vld [vmem:[#allocation2 + $0x18] sm:$0xff]
          %v1825 = vld [vmem:[#allocation2 + $0x20] sm:$0xff]
          %v1826 = vld [vmem:[#allocation2 + $0x28] sm:$0xff]
          %v1827 = vld [vmem:[#allocation2 + $0x30] sm:$0xff]
          %v1828 = vld [vmem:[#allocation2 + $0x38] sm:$0xff]
          %v1829 = vld [vmem:[#allocation2 + $0x40] sm:$0xff]
          %v1830 = vld [vmem:[#allocation2 + $0x48] sm:$0xff]
          %v1831 = vld [vmem:[#allocation2 + $0x50] sm:$0xff]
          %v1832 = vld [vmem:[#allocation2 + $0x58] sm:$0xff]
          %v1833 = vld [vmem:[#allocation2 + $0x60] sm:$0xff]
          %v1834 = vld [vmem:[#allocation2 + $0x68] sm:$0xff]
          %v1835 = vld [vmem:[#allocation2 + $0x70] sm:$0xff]
          %v1836 = vld [vmem:[#allocation2 + $0x78] sm:$0xff]
          %1837 = vxpose.xlu0.b32.start [1/16] %v1821, 128
          %1838 = vxpose.xlu0.b32.cont [2/16] %v1823, 128
          %1839 = vxpose.xlu0.b32.cont [3/16] %v1825, 128
          %1840 = vxpose.xlu0.b32.cont [4/16] %v1827, 128
          %1841 = vxpose.xlu0.b32.cont [5/16] %v1829, 128
          %1842 = vxpose.xlu0.b32.cont [6/16] %v1831, 128
          %1843 = vxpose.xlu0.b32.cont [7/16] %v1833, 128
          %1844 = vxpose.xlu0.b32.cont [8/16] %v1835, 128
          %1845 = vxpose.xlu0.b32.cont [9/16] 0.0, 128
          %1846 = vxpose.xlu0.b32.cont [10/16] 0.0, 128
          %1847 = vxpose.xlu0.b32.cont [11/16] 0.0, 128
          %1848 = vxpose.xlu0.b32.cont [12/16] 0.0, 128
          %1849 = vxpose.xlu0.b32.cont [13/16] 0.0, 128
          %1850 = vxpose.xlu0.b32.cont [14/16] 0.0, 128
          %1851 = vxpose.xlu0.b32.cont [15/16] 0.0, 128
          %1852 = vxpose.xlu0.b32.end [16/16] 0.0, 128
          %v1853 = vpop.trf.xlu0
          %v1854 = vpop.trf.xlu0
          %v1855 = vpop.trf.xlu0
          %v1856 = vpop.trf.xlu0
          %v1857 = vpop.trf.xlu0
          %v1858 = vpop.trf.xlu0
          %v1859 = vpop.trf.xlu0
          %v1860 = vpop.trf.xlu0
          %v1861 = vpop.trf.xlu0
          %v1862 = vpop.trf.xlu0
          %v1863 = vpop.trf.xlu0
          %v1864 = vpop.trf.xlu0
          %v1865 = vpop.trf.xlu0
          %v1866 = vpop.trf.xlu0
          %v1867 = vpop.trf.xlu0
          %v1868 = vpop.trf.xlu0
          %1869 = vxpose.xlu0.b32.start [1/16] %v1822, 128
          %1870 = vxpose.xlu0.b32.cont [2/16] %v1824, 128
          %1871 = vxpose.xlu0.b32.cont [3/16] %v1826, 128
          %1872 = vxpose.xlu0.b32.cont [4/16] %v1828, 128
          %1873 = vxpose.xlu0.b32.cont [5/16] %v1830, 128
          %1874 = vxpose.xlu0.b32.cont [6/16] %v1832, 128
          %1875 = vxpose.xlu0.b32.cont [7/16] %v1834, 128
          %1876 = vxpose.xlu0.b32.cont [8/16] %v1836, 128
          %1877 = vxpose.xlu0.b32.cont [9/16] 0.0, 128
          %1878 = vxpose.xlu0.b32.cont [10/16] 0.0, 128
          %1879 = vxpose.xlu0.b32.cont [11/16] 0.0, 128
          %1880 = vxpose.xlu0.b32.cont [12/16] 0.0, 128
          %1881 = vxpose.xlu0.b32.cont [13/16] 0.0, 128
          %1882 = vxpose.xlu0.b32.cont [14/16] 0.0, 128
          %1883 = vxpose.xlu0.b32.cont [15/16] 0.0, 128
          %1884 = vxpose.xlu0.b32.end [16/16] 0.0, 128
          %v1885 = vpop.trf.xlu0
          %v1886 = vpop.trf.xlu0
          %v1887 = vpop.trf.xlu0
          %v1888 = vpop.trf.xlu0
          %v1889 = vpop.trf.xlu0
          %v1890 = vpop.trf.xlu0
          %v1891 = vpop.trf.xlu0
          %v1892 = vpop.trf.xlu0
          %v1893 = vpop.trf.xlu0
          %v1894 = vpop.trf.xlu0
          %v1895 = vpop.trf.xlu0
          %v1896 = vpop.trf.xlu0
          %v1897 = vpop.trf.xlu0
          %v1898 = vpop.trf.xlu0
          %v1899 = vpop.trf.xlu0
          %v1900 = vpop.trf.xlu0
          %vm1901 = vcmask 523264
          %v1902 = vsel %vm1901, %v1853, 0.0
          %v1903 = vsel %vm1901, %v1854, 0.0
          %v1904 = vadd.f32 %v1902, %v1903
          %v1905 = vrot.slane %v1904, 4
          %v1906 = vadd.f32 %v1904, %v1905
          %v1907 = vrot.slane %v1906, 2
          %v1908 = vadd.f32 %v1906, %v1907
          %v1909 = vrot.slane %v1908, 1
          %v1910 = vadd.f32 %v1908, %v1909
          %v1911 = vsel %vm1901, %v1855, 0.0
          %v1912 = vsel %vm1901, %v1856, 0.0
          %v1913 = vadd.f32 %v1911, %v1912
          %v1914 = vrot.slane %v1913, 4
          %v1915 = vadd.f32 %v1913, %v1914
          %v1916 = vrot.slane %v1915, 2
          %v1917 = vadd.f32 %v1915, %v1916
          %v1918 = vrot.slane %v1917, 1
          %v1919 = vadd.f32 %v1917, %v1918
          %v1920 = vsel %vm1901, %v1857, 0.0
          %v1921 = vsel %vm1901, %v1858, 0.0
          %v1922 = vadd.f32 %v1920, %v1921
          %v1923 = vrot.slane %v1922, 4
          %v1924 = vadd.f32 %v1922, %v1923
          %v1925 = vrot.slane %v1924, 2
          %v1926 = vadd.f32 %v1924, %v1925
          %v1927 = vrot.slane %v1926, 1
          %v1928 = vadd.f32 %v1926, %v1927
          %v1929 = vsel %vm1901, %v1859, 0.0
          %v1930 = vsel %vm1901, %v1860, 0.0
          %v1931 = vadd.f32 %v1929, %v1930
          %v1932 = vrot.slane %v1931, 4
          %v1933 = vadd.f32 %v1931, %v1932
          %v1934 = vrot.slane %v1933, 2
          %v1935 = vadd.f32 %v1933, %v1934
          %v1936 = vrot.slane %v1935, 1
          %v1937 = vadd.f32 %v1935, %v1936
          %v1938 = vsel %vm1901, %v1861, 0.0
          %v1939 = vsel %vm1901, %v1862, 0.0
          %v1940 = vadd.f32 %v1938, %v1939
          %v1941 = vrot.slane %v1940, 4
          %v1942 = vadd.f32 %v1940, %v1941
          %v1943 = vrot.slane %v1942, 2
          %v1944 = vadd.f32 %v1942, %v1943
          %v1945 = vrot.slane %v1944, 1
          %v1946 = vadd.f32 %v1944, %v1945
          %v1947 = vsel %vm1901, %v1863, 0.0
          %v1948 = vsel %vm1901, %v1864, 0.0
          %v1949 = vadd.f32 %v1947, %v1948
          %v1950 = vrot.slane %v1949, 4
          %v1951 = vadd.f32 %v1949, %v1950
          %v1952 = vrot.slane %v1951, 2
          %v1953 = vadd.f32 %v1951, %v1952
          %v1954 = vrot.slane %v1953, 1
          %v1955 = vadd.f32 %v1953, %v1954
          %v1956 = vsel %vm1901, %v1865, 0.0
          %v1957 = vsel %vm1901, %v1866, 0.0
          %v1958 = vadd.f32 %v1956, %v1957
          %v1959 = vrot.slane %v1958, 4
          %v1960 = vadd.f32 %v1958, %v1959
          %v1961 = vrot.slane %v1960, 2
          %v1962 = vadd.f32 %v1960, %v1961
          %v1963 = vrot.slane %v1962, 1
          %v1964 = vadd.f32 %v1962, %v1963
          %v1965 = vsel %vm1901, %v1867, 0.0
          %v1966 = vsel %vm1901, %v1868, 0.0
          %v1967 = vadd.f32 %v1965, %v1966
          %v1968 = vrot.slane %v1967, 4
          %v1969 = vadd.f32 %v1967, %v1968
          %v1970 = vrot.slane %v1969, 2
          %v1971 = vadd.f32 %v1969, %v1970
          %v1972 = vrot.slane %v1971, 1
          %v1973 = vadd.f32 %v1971, %v1972
          %v1974 = vsel %vm1901, %v1885, 0.0
          %v1975 = vsel %vm1901, %v1886, 0.0
          %v1976 = vadd.f32 %v1974, %v1975
          %v1977 = vrot.slane %v1976, 4
          %v1978 = vadd.f32 %v1976, %v1977
          %v1979 = vrot.slane %v1978, 2
          %v1980 = vadd.f32 %v1978, %v1979
          %v1981 = vrot.slane %v1980, 1
          %v1982 = vadd.f32 %v1980, %v1981
          %v1983 = vsel %vm1901, %v1887, 0.0
          %v1984 = vsel %vm1901, %v1888, 0.0
          %v1985 = vadd.f32 %v1983, %v1984
          %v1986 = vrot.slane %v1985, 4
          %v1987 = vadd.f32 %v1985, %v1986
          %v1988 = vrot.slane %v1987, 2
          %v1989 = vadd.f32 %v1987, %v1988
          %v1990 = vrot.slane %v1989, 1
          %v1991 = vadd.f32 %v1989, %v1990
          %v1992 = vsel %vm1901, %v1889, 0.0
          %v1993 = vsel %vm1901, %v1890, 0.0
          %v1994 = vadd.f32 %v1992, %v1993
          %v1995 = vrot.slane %v1994, 4
          %v1996 = vadd.f32 %v1994, %v1995
          %v1997 = vrot.slane %v1996, 2
          %v1998 = vadd.f32 %v1996, %v1997
          %v1999 = vrot.slane %v1998, 1
          %v2000 = vadd.f32 %v1998, %v1999
          %v2001 = vsel %vm1901, %v1891, 0.0
          %v2002 = vsel %vm1901, %v1892, 0.0
          %v2003 = vadd.f32 %v2001, %v2002
          %v2004 = vrot.slane %v2003, 4
          %v2005 = vadd.f32 %v2003, %v2004
          %v2006 = vrot.slane %v2005, 2
          %v2007 = vadd.f32 %v2005, %v2006
          %v2008 = vrot.slane %v2007, 1
          %v2009 = vadd.f32 %v2007, %v2008
          %v2010 = vsel %vm1901, %v1893, 0.0
          %v2011 = vsel %vm1901, %v1894, 0.0
          %v2012 = vadd.f32 %v2010, %v2011
          %v2013 = vrot.slane %v2012, 4
          %v2014 = vadd.f32 %v2012, %v2013
          %v2015 = vrot.slane %v2014, 2
          %v2016 = vadd.f32 %v2014, %v2015
          %v2017 = vrot.slane %v2016, 1
          %v2018 = vadd.f32 %v2016, %v2017
          %v2019 = vsel %vm1901, %v1895, 0.0
          %v2020 = vsel %vm1901, %v1896, 0.0
          %v2021 = vadd.f32 %v2019, %v2020
          %v2022 = vrot.slane %v2021, 4
          %v2023 = vadd.f32 %v2021, %v2022
          %v2024 = vrot.slane %v2023, 2
          %v2025 = vadd.f32 %v2023, %v2024
          %v2026 = vrot.slane %v2025, 1
          %v2027 = vadd.f32 %v2025, %v2026
          %v2028 = vsel %vm1901, %v1897, 0.0
          %v2029 = vsel %vm1901, %v1898, 0.0
          %v2030 = vadd.f32 %v2028, %v2029
          %v2031 = vrot.slane %v2030, 4
          %v2032 = vadd.f32 %v2030, %v2031
          %v2033 = vrot.slane %v2032, 2
          %v2034 = vadd.f32 %v2032, %v2033
          %v2035 = vrot.slane %v2034, 1
          %v2036 = vadd.f32 %v2034, %v2035
          %v2037 = vsel %vm1901, %v1899, 0.0
          %v2038 = vsel %vm1901, %v1900, 0.0
          %v2039 = vadd.f32 %v2037, %v2038
          %v2040 = vrot.slane %v2039, 4
          %v2041 = vadd.f32 %v2039, %v2040
          %v2042 = vrot.slane %v2041, 2
          %v2043 = vadd.f32 %v2041, %v2042
          %v2044 = vrot.slane %v2043, 1
          %v2045 = vadd.f32 %v2043, %v2044
          %v2046 = vrcp.pop 16.0
          %v2047 = vmul.f32 %v1910, %v2046
          %v2048 = vmul.f32 %v1919, %v2046
          %v2049 = vmul.f32 %v1928, %v2046
          %v2050 = vmul.f32 %v1937, %v2046
          %v2051 = vmul.f32 %v1946, %v2046
          %v2052 = vmul.f32 %v1955, %v2046
          %v2053 = vmul.f32 %v1964, %v2046
          %v2054 = vmul.f32 %v1973, %v2046
          %v2055 = vmul.f32 %v1982, %v2046
          %v2056 = vmul.f32 %v1991, %v2046
          %v2057 = vmul.f32 %v2000, %v2046
          %v2058 = vmul.f32 %v2009, %v2046
          %v2059 = vmul.f32 %v2018, %v2046
          %v2060 = vmul.f32 %v2027, %v2046
          %v2061 = vmul.f32 %v2036, %v2046
          %v2062 = vmul.f32 %v2045, %v2046
          %v2063 = vsel %vm1901, %v1853, -inf
          %v2064 = vsel %vm1901, %v1854, -inf
          %v2065 = vmax.f32 %v2063, %v2064
          %v2066 = vrot.slane %v2065, 4
          %v2067 = vmax.f32 %v2065, %v2066
          %v2068 = vrot.slane %v2067, 2
          %v2069 = vmax.f32 %v2067, %v2068
          %v2070 = vrot.slane %v2069, 1
          %v2071 = vmax.f32 %v2069, %v2070
          %v2072 = vsel %vm1901, %v1855, -inf
          %v2073 = vsel %vm1901, %v1856, -inf
          %v2074 = vmax.f32 %v2072, %v2073
          %v2075 = vrot.slane %v2074, 4
          %v2076 = vmax.f32 %v2074, %v2075
          %v2077 = vrot.slane %v2076, 2
          %v2078 = vmax.f32 %v2076, %v2077
          %v2079 = vrot.slane %v2078, 1
          %v2080 = vmax.f32 %v2078, %v2079
          %v2081 = vsel %vm1901, %v1857, -inf
          %v2082 = vsel %vm1901, %v1858, -inf
          %v2083 = vmax.f32 %v2081, %v2082
          %v2084 = vrot.slane %v2083, 4
          %v2085 = vmax.f32 %v2083, %v2084
          %v2086 = vrot.slane %v2085, 2
          %v2087 = vmax.f32 %v2085, %v2086
          %v2088 = vrot.slane %v2087, 1
          %v2089 = vmax.f32 %v2087, %v2088
          %v2090 = vsel %vm1901, %v1859, -inf
          %v2091 = vsel %vm1901, %v1860, -inf
          %v2092 = vmax.f32 %v2090, %v2091
          %v2093 = vrot.slane %v2092, 4
          %v2094 = vmax.f32 %v2092, %v2093
          %v2095 = vrot.slane %v2094, 2
          %v2096 = vmax.f32 %v2094, %v2095
          %v2097 = vrot.slane %v2096, 1
          %v2098 = vmax.f32 %v2096, %v2097
          %v2099 = vsel %vm1901, %v1861, -inf
          %v2100 = vsel %vm1901, %v1862, -inf
          %v2101 = vmax.f32 %v2099, %v2100
          %v2102 = vrot.slane %v2101, 4
          %v2103 = vmax.f32 %v2101, %v2102
          %v2104 = vrot.slane %v2103, 2
          %v2105 = vmax.f32 %v2103, %v2104
          %v2106 = vrot.slane %v2105, 1
          %v2107 = vmax.f32 %v2105, %v2106
          %v2108 = vsel %vm1901, %v1863, -inf
          %v2109 = vsel %vm1901, %v1864, -inf
          %v2110 = vmax.f32 %v2108, %v2109
          %v2111 = vrot.slane %v2110, 4
          %v2112 = vmax.f32 %v2110, %v2111
          %v2113 = vrot.slane %v2112, 2
          %v2114 = vmax.f32 %v2112, %v2113
          %v2115 = vrot.slane %v2114, 1
          %v2116 = vmax.f32 %v2114, %v2115
          %v2117 = vsel %vm1901, %v1865, -inf
          %v2118 = vsel %vm1901, %v1866, -inf
          %v2119 = vmax.f32 %v2117, %v2118
          %v2120 = vrot.slane %v2119, 4
          %v2121 = vmax.f32 %v2119, %v2120
          %v2122 = vrot.slane %v2121, 2
          %v2123 = vmax.f32 %v2121, %v2122
          %v2124 = vrot.slane %v2123, 1
          %v2125 = vmax.f32 %v2123, %v2124
          %v2126 = vsel %vm1901, %v1867, -inf
          %v2127 = vsel %vm1901, %v1868, -inf
          %v2128 = vmax.f32 %v2126, %v2127
          %v2129 = vrot.slane %v2128, 4
          %v2130 = vmax.f32 %v2128, %v2129
          %v2131 = vrot.slane %v2130, 2
          %v2132 = vmax.f32 %v2130, %v2131
          %v2133 = vrot.slane %v2132, 1
          %v2134 = vmax.f32 %v2132, %v2133
          %v2135 = vsel %vm1901, %v1885, -inf
          %v2136 = vsel %vm1901, %v1886, -inf
          %v2137 = vmax.f32 %v2135, %v2136
          %v2138 = vrot.slane %v2137, 4
          %v2139 = vmax.f32 %v2137, %v2138
          %v2140 = vrot.slane %v2139, 2
          %v2141 = vmax.f32 %v2139, %v2140
          %v2142 = vrot.slane %v2141, 1
          %v2143 = vmax.f32 %v2141, %v2142
          %v2144 = vsel %vm1901, %v1887, -inf
          %v2145 = vsel %vm1901, %v1888, -inf
          %v2146 = vmax.f32 %v2144, %v2145
          %v2147 = vrot.slane %v2146, 4
          %v2148 = vmax.f32 %v2146, %v2147
          %v2149 = vrot.slane %v2148, 2
          %v2150 = vmax.f32 %v2148, %v2149
          %v2151 = vrot.slane %v2150, 1
          %v2152 = vmax.f32 %v2150, %v2151
          %v2153 = vsel %vm1901, %v1889, -inf
          %v2154 = vsel %vm1901, %v1890, -inf
          %v2155 = vmax.f32 %v2153, %v2154
          %v2156 = vrot.slane %v2155, 4
          %v2157 = vmax.f32 %v2155, %v2156
          %v2158 = vrot.slane %v2157, 2
          %v2159 = vmax.f32 %v2157, %v2158
          %v2160 = vrot.slane %v2159, 1
          %v2161 = vmax.f32 %v2159, %v2160
          %v2162 = vsel %vm1901, %v1891, -inf
          %v2163 = vsel %vm1901, %v1892, -inf
          %v2164 = vmax.f32 %v2162, %v2163
          %v2165 = vrot.slane %v2164, 4
          %v2166 = vmax.f32 %v2164, %v2165
          %v2167 = vrot.slane %v2166, 2
          %v2168 = vmax.f32 %v2166, %v2167
          %v2169 = vrot.slane %v2168, 1
          %v2170 = vmax.f32 %v2168, %v2169
          %v2171 = vsel %vm1901, %v1893, -inf
          %v2172 = vsel %vm1901, %v1894, -inf
          %v2173 = vmax.f32 %v2171, %v2172
          %v2174 = vrot.slane %v2173, 4
          %v2175 = vmax.f32 %v2173, %v2174
          %v2176 = vrot.slane %v2175, 2
          %v2177 = vmax.f32 %v2175, %v2176
          %v2178 = vrot.slane %v2177, 1
          %v2179 = vmax.f32 %v2177, %v2178
          %v2180 = vsel %vm1901, %v1895, -inf
          %v2181 = vsel %vm1901, %v1896, -inf
          %v2182 = vmax.f32 %v2180, %v2181
          %v2183 = vrot.slane %v2182, 4
          %v2184 = vmax.f32 %v2182, %v2183
          %v2185 = vrot.slane %v2184, 2
          %v2186 = vmax.f32 %v2184, %v2185
          %v2187 = vrot.slane %v2186, 1
          %v2188 = vmax.f32 %v2186, %v2187
          %v2189 = vsel %vm1901, %v1897, -inf
          %v2190 = vsel %vm1901, %v1898, -inf
          %v2191 = vmax.f32 %v2189, %v2190
          %v2192 = vrot.slane %v2191, 4
          %v2193 = vmax.f32 %v2191, %v2192
          %v2194 = vrot.slane %v2193, 2
          %v2195 = vmax.f32 %v2193, %v2194
          %v2196 = vrot.slane %v2195, 1
          %v2197 = vmax.f32 %v2195, %v2196
          %v2198 = vsel %vm1901, %v1899, -inf
          %v2199 = vsel %vm1901, %v1900, -inf
          %v2200 = vmax.f32 %v2198, %v2199
          %v2201 = vrot.slane %v2200, 4
          %v2202 = vmax.f32 %v2200, %v2201
          %v2203 = vrot.slane %v2202, 2
          %v2204 = vmax.f32 %v2202, %v2203
          %v2205 = vrot.slane %v2204, 1
          %v2206 = vmax.f32 %v2204, %v2205
          %v2207 = vadd.f32 %v2047, %v2071
          %v2208 = vadd.f32 %v2048, %v2080
          %v2209 = vadd.f32 %v2049, %v2089
          %v2210 = vadd.f32 %v2050, %v2098
          %v2211 = vadd.f32 %v2051, %v2107
          %v2212 = vadd.f32 %v2052, %v2116
          %v2213 = vadd.f32 %v2053, %v2125
          %v2214 = vadd.f32 %v2054, %v2134
          %v2215 = vadd.f32 %v2055, %v2143
          %v2216 = vadd.f32 %v2056, %v2152
          %v2217 = vadd.f32 %v2057, %v2161
          %v2218 = vadd.f32 %v2058, %v2170
          %v2219 = vadd.f32 %v2059, %v2179
          %v2220 = vadd.f32 %v2060, %v2188
          %v2221 = vadd.f32 %v2061, %v2197
          %v2222 = vadd.f32 %v2062, %v2206
          %2224 = vbcast.lane.b32.xlu0 %v2207, 256
          %v2225 = vpop.permute.xlu0 %2224
          %s2227 = sor.u32 256, 8
          %2228 = vbcast.lane.b32.xlu0 %v2207, %s2227
          %v2229 = vpop.permute.xlu0 %2228
          %s2231 = sor.u32 256, 16
          %2232 = vbcast.lane.b32.xlu0 %v2207, %s2231
          %v2233 = vpop.permute.xlu0 %2232
          %s2235 = sor.u32 256, 24
          %2236 = vbcast.lane.b32.xlu0 %v2207, %s2235
          %v2237 = vpop.permute.xlu0 %2236
          %s2239 = sor.u32 256, 32
          %2240 = vbcast.lane.b32.xlu0 %v2207, %s2239
          %v2241 = vpop.permute.xlu0 %2240
          %s2243 = sor.u32 256, 40
          %2244 = vbcast.lane.b32.xlu0 %v2207, %s2243
          %v2245 = vpop.permute.xlu0 %2244
          %s2247 = sor.u32 256, 48
          %2248 = vbcast.lane.b32.xlu0 %v2207, %s2247
          %v2249 = vpop.permute.xlu0 %2248
          %s2251 = sor.u32 256, 56
          %2252 = vbcast.lane.b32.xlu0 %v2207, %s2251
          %v2253 = vpop.permute.xlu0 %2252
          %2255 = vbcast.lane.b32.xlu0 %v2208, 256
          %v2256 = vpop.permute.xlu0 %2255
          %s2258 = sor.u32 256, 8
          %2259 = vbcast.lane.b32.xlu0 %v2208, %s2258
          %v2260 = vpop.permute.xlu0 %2259
          %s2262 = sor.u32 256, 16
          %2263 = vbcast.lane.b32.xlu0 %v2208, %s2262
          %v2264 = vpop.permute.xlu0 %2263
          %s2266 = sor.u32 256, 24
          %2267 = vbcast.lane.b32.xlu0 %v2208, %s2266
          %v2268 = vpop.permute.xlu0 %2267
          %s2270 = sor.u32 256, 32
          %2271 = vbcast.lane.b32.xlu0 %v2208, %s2270
          %v2272 = vpop.permute.xlu0 %2271
          %s2274 = sor.u32 256, 40
          %2275 = vbcast.lane.b32.xlu0 %v2208, %s2274
          %v2276 = vpop.permute.xlu0 %2275
          %s2278 = sor.u32 256, 48
          %2279 = vbcast.lane.b32.xlu0 %v2208, %s2278
          %v2280 = vpop.permute.xlu0 %2279
          %s2282 = sor.u32 256, 56
          %2283 = vbcast.lane.b32.xlu0 %v2208, %s2282
          %v2284 = vpop.permute.xlu0 %2283
          %2286 = vbcast.lane.b32.xlu0 %v2209, 256
          %v2287 = vpop.permute.xlu0 %2286
          %s2289 = sor.u32 256, 8
          %2290 = vbcast.lane.b32.xlu0 %v2209, %s2289
          %v2291 = vpop.permute.xlu0 %2290
          %s2293 = sor.u32 256, 16
          %2294 = vbcast.lane.b32.xlu0 %v2209, %s2293
          %v2295 = vpop.permute.xlu0 %2294
          %s2297 = sor.u32 256, 24
          %2298 = vbcast.lane.b32.xlu0 %v2209, %s2297
          %v2299 = vpop.permute.xlu0 %2298
          %s2301 = sor.u32 256, 32
          %2302 = vbcast.lane.b32.xlu0 %v2209, %s2301
          %v2303 = vpop.permute.xlu0 %2302
          %s2305 = sor.u32 256, 40
          %2306 = vbcast.lane.b32.xlu0 %v2209, %s2305
          %v2307 = vpop.permute.xlu0 %2306
          %s2309 = sor.u32 256, 48
          %2310 = vbcast.lane.b32.xlu0 %v2209, %s2309
          %v2311 = vpop.permute.xlu0 %2310
          %s2313 = sor.u32 256, 56
          %2314 = vbcast.lane.b32.xlu0 %v2209, %s2313
          %v2315 = vpop.permute.xlu0 %2314
          %2317 = vbcast.lane.b32.xlu0 %v2210, 256
          %v2318 = vpop.permute.xlu0 %2317
          %s2320 = sor.u32 256, 8
          %2321 = vbcast.lane.b32.xlu0 %v2210, %s2320
          %v2322 = vpop.permute.xlu0 %2321
          %s2324 = sor.u32 256, 16
          %2325 = vbcast.lane.b32.xlu0 %v2210, %s2324
          %v2326 = vpop.permute.xlu0 %2325
          %s2328 = sor.u32 256, 24
          %2329 = vbcast.lane.b32.xlu0 %v2210, %s2328
          %v2330 = vpop.permute.xlu0 %2329
          %s2332 = sor.u32 256, 32
          %2333 = vbcast.lane.b32.xlu0 %v2210, %s2332
          %v2334 = vpop.permute.xlu0 %2333
          %s2336 = sor.u32 256, 40
          %2337 = vbcast.lane.b32.xlu0 %v2210, %s2336
          %v2338 = vpop.permute.xlu0 %2337
          %s2340 = sor.u32 256, 48
          %2341 = vbcast.lane.b32.xlu0 %v2210, %s2340
          %v2342 = vpop.permute.xlu0 %2341
          %s2344 = sor.u32 256, 56
          %2345 = vbcast.lane.b32.xlu0 %v2210, %s2344
          %v2346 = vpop.permute.xlu0 %2345
          %2348 = vbcast.lane.b32.xlu0 %v2211, 256
          %v2349 = vpop.permute.xlu0 %2348
          %s2351 = sor.u32 256, 8
          %2352 = vbcast.lane.b32.xlu0 %v2211, %s2351
          %v2353 = vpop.permute.xlu0 %2352
          %s2355 = sor.u32 256, 16
          %2356 = vbcast.lane.b32.xlu0 %v2211, %s2355
          %v2357 = vpop.permute.xlu0 %2356
          %s2359 = sor.u32 256, 24
          %2360 = vbcast.lane.b32.xlu0 %v2211, %s2359
          %v2361 = vpop.permute.xlu0 %2360
          %s2363 = sor.u32 256, 32
          %2364 = vbcast.lane.b32.xlu0 %v2211, %s2363
          %v2365 = vpop.permute.xlu0 %2364
          %s2367 = sor.u32 256, 40
          %2368 = vbcast.lane.b32.xlu0 %v2211, %s2367
          %v2369 = vpop.permute.xlu0 %2368
          %s2371 = sor.u32 256, 48
          %2372 = vbcast.lane.b32.xlu0 %v2211, %s2371
          %v2373 = vpop.permute.xlu0 %2372
          %s2375 = sor.u32 256, 56
          %2376 = vbcast.lane.b32.xlu0 %v2211, %s2375
          %v2377 = vpop.permute.xlu0 %2376
          %2379 = vbcast.lane.b32.xlu0 %v2212, 256
          %v2380 = vpop.permute.xlu0 %2379
          %s2382 = sor.u32 256, 8
          %2383 = vbcast.lane.b32.xlu0 %v2212, %s2382
          %v2384 = vpop.permute.xlu0 %2383
          %s2386 = sor.u32 256, 16
          %2387 = vbcast.lane.b32.xlu0 %v2212, %s2386
          %v2388 = vpop.permute.xlu0 %2387
          %s2390 = sor.u32 256, 24
          %2391 = vbcast.lane.b32.xlu0 %v2212, %s2390
          %v2392 = vpop.permute.xlu0 %2391
          %s2394 = sor.u32 256, 32
          %2395 = vbcast.lane.b32.xlu0 %v2212, %s2394
          %v2396 = vpop.permute.xlu0 %2395
          %s2398 = sor.u32 256, 40
          %2399 = vbcast.lane.b32.xlu0 %v2212, %s2398
          %v2400 = vpop.permute.xlu0 %2399
          %s2402 = sor.u32 256, 48
          %2403 = vbcast.lane.b32.xlu0 %v2212, %s2402
          %v2404 = vpop.permute.xlu0 %2403
          %s2406 = sor.u32 256, 56
          %2407 = vbcast.lane.b32.xlu0 %v2212, %s2406
          %v2408 = vpop.permute.xlu0 %2407
          %2410 = vbcast.lane.b32.xlu0 %v2213, 256
          %v2411 = vpop.permute.xlu0 %2410
          %s2413 = sor.u32 256, 8
          %2414 = vbcast.lane.b32.xlu0 %v2213, %s2413
          %v2415 = vpop.permute.xlu0 %2414
          %s2417 = sor.u32 256, 16
          %2418 = vbcast.lane.b32.xlu0 %v2213, %s2417
          %v2419 = vpop.permute.xlu0 %2418
          %s2421 = sor.u32 256, 24
          %2422 = vbcast.lane.b32.xlu0 %v2213, %s2421
          %v2423 = vpop.permute.xlu0 %2422
          %s2425 = sor.u32 256, 32
          %2426 = vbcast.lane.b32.xlu0 %v2213, %s2425
          %v2427 = vpop.permute.xlu0 %2426
          %s2429 = sor.u32 256, 40
          %2430 = vbcast.lane.b32.xlu0 %v2213, %s2429
          %v2431 = vpop.permute.xlu0 %2430
          %s2433 = sor.u32 256, 48
          %2434 = vbcast.lane.b32.xlu0 %v2213, %s2433
          %v2435 = vpop.permute.xlu0 %2434
          %s2437 = sor.u32 256, 56
          %2438 = vbcast.lane.b32.xlu0 %v2213, %s2437
          %v2439 = vpop.permute.xlu0 %2438
          %2441 = vbcast.lane.b32.xlu0 %v2214, 256
          %v2442 = vpop.permute.xlu0 %2441
          %s2444 = sor.u32 256, 8
          %2445 = vbcast.lane.b32.xlu0 %v2214, %s2444
          %v2446 = vpop.permute.xlu0 %2445
          %s2448 = sor.u32 256, 16
          %2449 = vbcast.lane.b32.xlu0 %v2214, %s2448
          %v2450 = vpop.permute.xlu0 %2449
          %s2452 = sor.u32 256, 24
          %2453 = vbcast.lane.b32.xlu0 %v2214, %s2452
          %v2454 = vpop.permute.xlu0 %2453
          %s2456 = sor.u32 256, 32
          %2457 = vbcast.lane.b32.xlu0 %v2214, %s2456
          %v2458 = vpop.permute.xlu0 %2457
          %s2460 = sor.u32 256, 40
          %2461 = vbcast.lane.b32.xlu0 %v2214, %s2460
          %v2462 = vpop.permute.xlu0 %2461
          %s2464 = sor.u32 256, 48
          %2465 = vbcast.lane.b32.xlu0 %v2214, %s2464
          %v2466 = vpop.permute.xlu0 %2465
          %s2468 = sor.u32 256, 56
          %2469 = vbcast.lane.b32.xlu0 %v2214, %s2468
          %v2470 = vpop.permute.xlu0 %2469
          %2472 = vbcast.lane.b32.xlu0 %v2215, 256
          %v2473 = vpop.permute.xlu0 %2472
          %s2475 = sor.u32 256, 8
          %2476 = vbcast.lane.b32.xlu0 %v2215, %s2475
          %v2477 = vpop.permute.xlu0 %2476
          %s2479 = sor.u32 256, 16
          %2480 = vbcast.lane.b32.xlu0 %v2215, %s2479
          %v2481 = vpop.permute.xlu0 %2480
          %s2483 = sor.u32 256, 24
          %2484 = vbcast.lane.b32.xlu0 %v2215, %s2483
          %v2485 = vpop.permute.xlu0 %2484
          %s2487 = sor.u32 256, 32
          %2488 = vbcast.lane.b32.xlu0 %v2215, %s2487
          %v2489 = vpop.permute.xlu0 %2488
          %s2491 = sor.u32 256, 40
          %2492 = vbcast.lane.b32.xlu0 %v2215, %s2491
          %v2493 = vpop.permute.xlu0 %2492
          %s2495 = sor.u32 256, 48
          %2496 = vbcast.lane.b32.xlu0 %v2215, %s2495
          %v2497 = vpop.permute.xlu0 %2496
          %s2499 = sor.u32 256, 56
          %2500 = vbcast.lane.b32.xlu0 %v2215, %s2499
          %v2501 = vpop.permute.xlu0 %2500
          %2503 = vbcast.lane.b32.xlu0 %v2216, 256
          %v2504 = vpop.permute.xlu0 %2503
          %s2506 = sor.u32 256, 8
          %2507 = vbcast.lane.b32.xlu0 %v2216, %s2506
          %v2508 = vpop.permute.xlu0 %2507
          %s2510 = sor.u32 256, 16
          %2511 = vbcast.lane.b32.xlu0 %v2216, %s2510
          %v2512 = vpop.permute.xlu0 %2511
          %s2514 = sor.u32 256, 24
          %2515 = vbcast.lane.b32.xlu0 %v2216, %s2514
          %v2516 = vpop.permute.xlu0 %2515
          %s2518 = sor.u32 256, 32
          %2519 = vbcast.lane.b32.xlu0 %v2216, %s2518
          %v2520 = vpop.permute.xlu0 %2519
          %s2522 = sor.u32 256, 40
          %2523 = vbcast.lane.b32.xlu0 %v2216, %s2522
          %v2524 = vpop.permute.xlu0 %2523
          %s2526 = sor.u32 256, 48
          %2527 = vbcast.lane.b32.xlu0 %v2216, %s2526
          %v2528 = vpop.permute.xlu0 %2527
          %s2530 = sor.u32 256, 56
          %2531 = vbcast.lane.b32.xlu0 %v2216, %s2530
          %v2532 = vpop.permute.xlu0 %2531
          %2534 = vbcast.lane.b32.xlu0 %v2217, 256
          %v2535 = vpop.permute.xlu0 %2534
          %s2537 = sor.u32 256, 8
          %2538 = vbcast.lane.b32.xlu0 %v2217, %s2537
          %v2539 = vpop.permute.xlu0 %2538
          %s2541 = sor.u32 256, 16
          %2542 = vbcast.lane.b32.xlu0 %v2217, %s2541
          %v2543 = vpop.permute.xlu0 %2542
          %s2545 = sor.u32 256, 24
          %2546 = vbcast.lane.b32.xlu0 %v2217, %s2545
          %v2547 = vpop.permute.xlu0 %2546
          %s2549 = sor.u32 256, 32
          %2550 = vbcast.lane.b32.xlu0 %v2217, %s2549
          %v2551 = vpop.permute.xlu0 %2550
          %s2553 = sor.u32 256, 40
          %2554 = vbcast.lane.b32.xlu0 %v2217, %s2553
          %v2555 = vpop.permute.xlu0 %2554
          %s2557 = sor.u32 256, 48
          %2558 = vbcast.lane.b32.xlu0 %v2217, %s2557
          %v2559 = vpop.permute.xlu0 %2558
          %s2561 = sor.u32 256, 56
          %2562 = vbcast.lane.b32.xlu0 %v2217, %s2561
          %v2563 = vpop.permute.xlu0 %2562
          %2565 = vbcast.lane.b32.xlu0 %v2218, 256
          %v2566 = vpop.permute.xlu0 %2565
          %s2568 = sor.u32 256, 8
          %2569 = vbcast.lane.b32.xlu0 %v2218, %s2568
          %v2570 = vpop.permute.xlu0 %2569
          %s2572 = sor.u32 256, 16
          %2573 = vbcast.lane.b32.xlu0 %v2218, %s2572
          %v2574 = vpop.permute.xlu0 %2573
          %s2576 = sor.u32 256, 24
          %2577 = vbcast.lane.b32.xlu0 %v2218, %s2576
          %v2578 = vpop.permute.xlu0 %2577
          %s2580 = sor.u32 256, 32
          %2581 = vbcast.lane.b32.xlu0 %v2218, %s2580
          %v2582 = vpop.permute.xlu0 %2581
          %s2584 = sor.u32 256, 40
          %2585 = vbcast.lane.b32.xlu0 %v2218, %s2584
          %v2586 = vpop.permute.xlu0 %2585
          %s2588 = sor.u32 256, 48
          %2589 = vbcast.lane.b32.xlu0 %v2218, %s2588
          %v2590 = vpop.permute.xlu0 %2589
          %s2592 = sor.u32 256, 56
          %2593 = vbcast.lane.b32.xlu0 %v2218, %s2592
          %v2594 = vpop.permute.xlu0 %2593
          %2596 = vbcast.lane.b32.xlu0 %v2219, 256
          %v2597 = vpop.permute.xlu0 %2596
          %s2599 = sor.u32 256, 8
          %2600 = vbcast.lane.b32.xlu0 %v2219, %s2599
          %v2601 = vpop.permute.xlu0 %2600
          %s2603 = sor.u32 256, 16
          %2604 = vbcast.lane.b32.xlu0 %v2219, %s2603
          %v2605 = vpop.permute.xlu0 %2604
          %s2607 = sor.u32 256, 24
          %2608 = vbcast.lane.b32.xlu0 %v2219, %s2607
          %v2609 = vpop.permute.xlu0 %2608
          %s2611 = sor.u32 256, 32
          %2612 = vbcast.lane.b32.xlu0 %v2219, %s2611
          %v2613 = vpop.permute.xlu0 %2612
          %s2615 = sor.u32 256, 40
          %2616 = vbcast.lane.b32.xlu0 %v2219, %s2615
          %v2617 = vpop.permute.xlu0 %2616
          %s2619 = sor.u32 256, 48
          %2620 = vbcast.lane.b32.xlu0 %v2219, %s2619
          %v2621 = vpop.permute.xlu0 %2620
          %s2623 = sor.u32 256, 56
          %2624 = vbcast.lane.b32.xlu0 %v2219, %s2623
          %v2625 = vpop.permute.xlu0 %2624
          %2627 = vbcast.lane.b32.xlu0 %v2220, 256
          %v2628 = vpop.permute.xlu0 %2627
          %s2630 = sor.u32 256, 8
          %2631 = vbcast.lane.b32.xlu0 %v2220, %s2630
          %v2632 = vpop.permute.xlu0 %2631
          %s2634 = sor.u32 256, 16
          %2635 = vbcast.lane.b32.xlu0 %v2220, %s2634
          %v2636 = vpop.permute.xlu0 %2635
          %s2638 = sor.u32 256, 24
          %2639 = vbcast.lane.b32.xlu0 %v2220, %s2638
          %v2640 = vpop.permute.xlu0 %2639
          %s2642 = sor.u32 256, 32
          %2643 = vbcast.lane.b32.xlu0 %v2220, %s2642
          %v2644 = vpop.permute.xlu0 %2643
          %s2646 = sor.u32 256, 40
          %2647 = vbcast.lane.b32.xlu0 %v2220, %s2646
          %v2648 = vpop.permute.xlu0 %2647
          %s2650 = sor.u32 256, 48
          %2651 = vbcast.lane.b32.xlu0 %v2220, %s2650
          %v2652 = vpop.permute.xlu0 %2651
          %s2654 = sor.u32 256, 56
          %2655 = vbcast.lane.b32.xlu0 %v2220, %s2654
          %v2656 = vpop.permute.xlu0 %2655
          %2658 = vbcast.lane.b32.xlu0 %v2221, 256
          %v2659 = vpop.permute.xlu0 %2658
          %s2661 = sor.u32 256, 8
          %2662 = vbcast.lane.b32.xlu0 %v2221, %s2661
          %v2663 = vpop.permute.xlu0 %2662
          %s2665 = sor.u32 256, 16
          %2666 = vbcast.lane.b32.xlu0 %v2221, %s2665
          %v2667 = vpop.permute.xlu0 %2666
          %s2669 = sor.u32 256, 24
          %2670 = vbcast.lane.b32.xlu0 %v2221, %s2669
          %v2671 = vpop.permute.xlu0 %2670
          %s2673 = sor.u32 256, 32
          %2674 = vbcast.lane.b32.xlu0 %v2221, %s2673
          %v2675 = vpop.permute.xlu0 %2674
          %s2677 = sor.u32 256, 40
          %2678 = vbcast.lane.b32.xlu0 %v2221, %s2677
          %v2679 = vpop.permute.xlu0 %2678
          %s2681 = sor.u32 256, 48
          %2682 = vbcast.lane.b32.xlu0 %v2221, %s2681
          %v2683 = vpop.permute.xlu0 %2682
          %s2685 = sor.u32 256, 56
          %2686 = vbcast.lane.b32.xlu0 %v2221, %s2685
          %v2687 = vpop.permute.xlu0 %2686
          %2689 = vbcast.lane.b32.xlu0 %v2222, 256
          %v2690 = vpop.permute.xlu0 %2689
          %s2692 = sor.u32 256, 8
          %2693 = vbcast.lane.b32.xlu0 %v2222, %s2692
          %v2694 = vpop.permute.xlu0 %2693
          %s2696 = sor.u32 256, 16
          %2697 = vbcast.lane.b32.xlu0 %v2222, %s2696
          %v2698 = vpop.permute.xlu0 %2697
          %s2700 = sor.u32 256, 24
          %2701 = vbcast.lane.b32.xlu0 %v2222, %s2700
          %v2702 = vpop.permute.xlu0 %2701
          %s2704 = sor.u32 256, 32
          %2705 = vbcast.lane.b32.xlu0 %v2222, %s2704
          %v2706 = vpop.permute.xlu0 %2705
          %s2708 = sor.u32 256, 40
          %2709 = vbcast.lane.b32.xlu0 %v2222, %s2708
          %v2710 = vpop.permute.xlu0 %2709
          %s2712 = sor.u32 256, 48
          %2713 = vbcast.lane.b32.xlu0 %v2222, %s2712
          %v2714 = vpop.permute.xlu0 %2713
          %s2716 = sor.u32 256, 56
          %2717 = vbcast.lane.b32.xlu0 %v2222, %s2716
          %v2718 = vpop.permute.xlu0 %2717
          %v2719 = vld [vmem:[%s1] sm:$0xff]
          %v2720 = vld [vmem:[%s1 + $0x8] sm:$0xff]
          %v2721 = vld [vmem:[%s1 + $0x10] sm:$0xff]
          %v2722 = vld [vmem:[%s1 + $0x18] sm:$0xff]
          %v2723 = vld [vmem:[%s1 + $0x20] sm:$0xff]
          %v2724 = vld [vmem:[%s1 + $0x28] sm:$0xff]
          %v2725 = vld [vmem:[%s1 + $0x30] sm:$0xff]
          %v2726 = vld [vmem:[%s1 + $0x38] sm:$0xff]
          %v2727 = vld [vmem:[%s1 + $0x40] sm:$0xff]
          %v2728 = vld [vmem:[%s1 + $0x48] sm:$0xff]
          %v2729 = vld [vmem:[%s1 + $0x50] sm:$0xff]
          %v2730 = vld [vmem:[%s1 + $0x58] sm:$0xff]
          %v2731 = vld [vmem:[%s1 + $0x60] sm:$0xff]
          %v2732 = vld [vmem:[%s1 + $0x68] sm:$0xff]
          %v2733 = vld [vmem:[%s1 + $0x70] sm:$0xff]
          %v2734 = vld [vmem:[%s1 + $0x78] sm:$0xff]
          %v2735 = vld [vmem:[%s1 + $0x80] sm:$0xff]
          %v2736 = vld [vmem:[%s1 + $0x88] sm:$0xff]
          %v2737 = vld [vmem:[%s1 + $0x90] sm:$0xff]
          %v2738 = vld [vmem:[%s1 + $0x98] sm:$0xff]
          %v2739 = vld [vmem:[%s1 + $0xa0] sm:$0xff]
          %v2740 = vld [vmem:[%s1 + $0xa8] sm:$0xff]
          %v2741 = vld [vmem:[%s1 + $0xb0] sm:$0xff]
          %v2742 = vld [vmem:[%s1 + $0xb8] sm:$0xff]
          %v2743 = vld [vmem:[%s1 + $0xc0] sm:$0xff]
          %v2744 = vld [vmem:[%s1 + $0xc8] sm:$0xff]
          %v2745 = vld [vmem:[%s1 + $0xd0] sm:$0xff]
          %v2746 = vld [vmem:[%s1 + $0xd8] sm:$0xff]
          %v2747 = vld [vmem:[%s1 + $0xe0] sm:$0xff]
          %v2748 = vld [vmem:[%s1 + $0xe8] sm:$0xff]
          %v2749 = vld [vmem:[%s1 + $0xf0] sm:$0xff]
          %v2750 = vld [vmem:[%s1 + $0xf8] sm:$0xff]
          %v2751 = vld [vmem:[%s1 + $0x100] sm:$0xff]
          %v2752 = vld [vmem:[%s1 + $0x108] sm:$0xff]
          %v2753 = vld [vmem:[%s1 + $0x110] sm:$0xff]
          %v2754 = vld [vmem:[%s1 + $0x118] sm:$0xff]
          %v2755 = vld [vmem:[%s1 + $0x120] sm:$0xff]
          %v2756 = vld [vmem:[%s1 + $0x128] sm:$0xff]
          %v2757 = vld [vmem:[%s1 + $0x130] sm:$0xff]
          %v2758 = vld [vmem:[%s1 + $0x138] sm:$0xff]
          %v2759 = vld [vmem:[%s1 + $0x140] sm:$0xff]
          %v2760 = vld [vmem:[%s1 + $0x148] sm:$0xff]
          %v2761 = vld [vmem:[%s1 + $0x150] sm:$0xff]
          %v2762 = vld [vmem:[%s1 + $0x158] sm:$0xff]
          %v2763 = vld [vmem:[%s1 + $0x160] sm:$0xff]
          %v2764 = vld [vmem:[%s1 + $0x168] sm:$0xff]
          %v2765 = vld [vmem:[%s1 + $0x170] sm:$0xff]
          %v2766 = vld [vmem:[%s1 + $0x178] sm:$0xff]
          %v2767 = vld [vmem:[%s1 + $0x180] sm:$0xff]
          %v2768 = vld [vmem:[%s1 + $0x188] sm:$0xff]
          %v2769 = vld [vmem:[%s1 + $0x190] sm:$0xff]
          %v2770 = vld [vmem:[%s1 + $0x198] sm:$0xff]
          %v2771 = vld [vmem:[%s1 + $0x1a0] sm:$0xff]
          %v2772 = vld [vmem:[%s1 + $0x1a8] sm:$0xff]
          %v2773 = vld [vmem:[%s1 + $0x1b0] sm:$0xff]
          %v2774 = vld [vmem:[%s1 + $0x1b8] sm:$0xff]
          %v2775 = vld [vmem:[%s1 + $0x1c0] sm:$0xff]
          %v2776 = vld [vmem:[%s1 + $0x1c8] sm:$0xff]
          %v2777 = vld [vmem:[%s1 + $0x1d0] sm:$0xff]
          %v2778 = vld [vmem:[%s1 + $0x1d8] sm:$0xff]
          %v2779 = vld [vmem:[%s1 + $0x1e0] sm:$0xff]
          %v2780 = vld [vmem:[%s1 + $0x1e8] sm:$0xff]
          %v2781 = vld [vmem:[%s1 + $0x1f0] sm:$0xff]
          %v2782 = vld [vmem:[%s1 + $0x1f8] sm:$0xff]
          %v2783 = vld [vmem:[%s1 + $0x200] sm:$0xff]
          %v2784 = vld [vmem:[%s1 + $0x208] sm:$0xff]
          %v2785 = vld [vmem:[%s1 + $0x210] sm:$0xff]
          %v2786 = vld [vmem:[%s1 + $0x218] sm:$0xff]
          %v2787 = vld [vmem:[%s1 + $0x220] sm:$0xff]
          %v2788 = vld [vmem:[%s1 + $0x228] sm:$0xff]
          %v2789 = vld [vmem:[%s1 + $0x230] sm:$0xff]
          %v2790 = vld [vmem:[%s1 + $0x238] sm:$0xff]
          %v2791 = vld [vmem:[%s1 + $0x240] sm:$0xff]
          %v2792 = vld [vmem:[%s1 + $0x248] sm:$0xff]
          %v2793 = vld [vmem:[%s1 + $0x250] sm:$0xff]
          %v2794 = vld [vmem:[%s1 + $0x258] sm:$0xff]
          %v2795 = vld [vmem:[%s1 + $0x260] sm:$0xff]
          %v2796 = vld [vmem:[%s1 + $0x268] sm:$0xff]
          %v2797 = vld [vmem:[%s1 + $0x270] sm:$0xff]
          %v2798 = vld [vmem:[%s1 + $0x278] sm:$0xff]
          %v2799 = vld [vmem:[%s1 + $0x280] sm:$0xff]
          %v2800 = vld [vmem:[%s1 + $0x288] sm:$0xff]
          %v2801 = vld [vmem:[%s1 + $0x290] sm:$0xff]
          %v2802 = vld [vmem:[%s1 + $0x298] sm:$0xff]
          %v2803 = vld [vmem:[%s1 + $0x2a0] sm:$0xff]
          %v2804 = vld [vmem:[%s1 + $0x2a8] sm:$0xff]
          %v2805 = vld [vmem:[%s1 + $0x2b0] sm:$0xff]
          %v2806 = vld [vmem:[%s1 + $0x2b8] sm:$0xff]
          %v2807 = vld [vmem:[%s1 + $0x2c0] sm:$0xff]
          %v2808 = vld [vmem:[%s1 + $0x2c8] sm:$0xff]
          %v2809 = vld [vmem:[%s1 + $0x2d0] sm:$0xff]
          %v2810 = vld [vmem:[%s1 + $0x2d8] sm:$0xff]
          %v2811 = vld [vmem:[%s1 + $0x2e0] sm:$0xff]
          %v2812 = vld [vmem:[%s1 + $0x2e8] sm:$0xff]
          %v2813 = vld [vmem:[%s1 + $0x2f0] sm:$0xff]
          %v2814 = vld [vmem:[%s1 + $0x2f8] sm:$0xff]
          %v2815 = vld [vmem:[%s1 + $0x300] sm:$0xff]
          %v2816 = vld [vmem:[%s1 + $0x308] sm:$0xff]
          %v2817 = vld [vmem:[%s1 + $0x310] sm:$0xff]
          %v2818 = vld [vmem:[%s1 + $0x318] sm:$0xff]
          %v2819 = vld [vmem:[%s1 + $0x320] sm:$0xff]
          %v2820 = vld [vmem:[%s1 + $0x328] sm:$0xff]
          %v2821 = vld [vmem:[%s1 + $0x330] sm:$0xff]
          %v2822 = vld [vmem:[%s1 + $0x338] sm:$0xff]
          %v2823 = vld [vmem:[%s1 + $0x340] sm:$0xff]
          %v2824 = vld [vmem:[%s1 + $0x348] sm:$0xff]
          %v2825 = vld [vmem:[%s1 + $0x350] sm:$0xff]
          %v2826 = vld [vmem:[%s1 + $0x358] sm:$0xff]
          %v2827 = vld [vmem:[%s1 + $0x360] sm:$0xff]
          %v2828 = vld [vmem:[%s1 + $0x368] sm:$0xff]
          %v2829 = vld [vmem:[%s1 + $0x370] sm:$0xff]
          %v2830 = vld [vmem:[%s1 + $0x378] sm:$0xff]
          %v2831 = vld [vmem:[%s1 + $0x380] sm:$0xff]
          %v2832 = vld [vmem:[%s1 + $0x388] sm:$0xff]
          %v2833 = vld [vmem:[%s1 + $0x390] sm:$0xff]
          %v2834 = vld [vmem:[%s1 + $0x398] sm:$0xff]
          %v2835 = vld [vmem:[%s1 + $0x3a0] sm:$0xff]
          %v2836 = vld [vmem:[%s1 + $0x3a8] sm:$0xff]
          %v2837 = vld [vmem:[%s1 + $0x3b0] sm:$0xff]
          %v2838 = vld [vmem:[%s1 + $0x3b8] sm:$0xff]
          %v2839 = vld [vmem:[%s1 + $0x3c0] sm:$0xff]
          %v2840 = vld [vmem:[%s1 + $0x3c8] sm:$0xff]
          %v2841 = vld [vmem:[%s1 + $0x3d0] sm:$0xff]
          %v2842 = vld [vmem:[%s1 + $0x3d8] sm:$0xff]
          %v2843 = vld [vmem:[%s1 + $0x3e0] sm:$0xff]
          %v2844 = vld [vmem:[%s1 + $0x3e8] sm:$0xff]
          %v2845 = vld [vmem:[%s1 + $0x3f0] sm:$0xff]
          %v2846 = vld [vmem:[%s1 + $0x3f8] sm:$0xff]
          %v2847 = vmul.f32 %v2225, %v2719
          %v2848 = vmul.f32 %v2229, %v2720
          %v2849 = vmul.f32 %v2233, %v2721
          %v2850 = vmul.f32 %v2237, %v2722
          %v2851 = vmul.f32 %v2241, %v2723
          %v2852 = vmul.f32 %v2245, %v2724
          %v2853 = vmul.f32 %v2249, %v2725
          %v2854 = vmul.f32 %v2253, %v2726
          %v2855 = vmul.f32 %v2256, %v2727
          %v2856 = vmul.f32 %v2260, %v2728
          %v2857 = vmul.f32 %v2264, %v2729
          %v2858 = vmul.f32 %v2268, %v2730
          %v2859 = vmul.f32 %v2272, %v2731
          %v2860 = vmul.f32 %v2276, %v2732
          %v2861 = vmul.f32 %v2280, %v2733
          %v2862 = vmul.f32 %v2284, %v2734
          %v2863 = vmul.f32 %v2287, %v2735
          %v2864 = vmul.f32 %v2291, %v2736
          %v2865 = vmul.f32 %v2295, %v2737
          %v2866 = vmul.f32 %v2299, %v2738
          %v2867 = vmul.f32 %v2303, %v2739
          %v2868 = vmul.f32 %v2307, %v2740
          %v2869 = vmul.f32 %v2311, %v2741
          %v2870 = vmul.f32 %v2315, %v2742
          %v2871 = vmul.f32 %v2318, %v2743
          %v2872 = vmul.f32 %v2322, %v2744
          %v2873 = vmul.f32 %v2326, %v2745
          %v2874 = vmul.f32 %v2330, %v2746
          %v2875 = vmul.f32 %v2334, %v2747
          %v2876 = vmul.f32 %v2338, %v2748
          %v2877 = vmul.f32 %v2342, %v2749
          %v2878 = vmul.f32 %v2346, %v2750
          %v2879 = vmul.f32 %v2349, %v2751
          %v2880 = vmul.f32 %v2353, %v2752
          %v2881 = vmul.f32 %v2357, %v2753
          %v2882 = vmul.f32 %v2361, %v2754
          %v2883 = vmul.f32 %v2365, %v2755
          %v2884 = vmul.f32 %v2369, %v2756
          %v2885 = vmul.f32 %v2373, %v2757
          %v2886 = vmul.f32 %v2377, %v2758
          %v2887 = vmul.f32 %v2380, %v2759
          %v2888 = vmul.f32 %v2384, %v2760
          %v2889 = vmul.f32 %v2388, %v2761
          %v2890 = vmul.f32 %v2392, %v2762
          %v2891 = vmul.f32 %v2396, %v2763
          %v2892 = vmul.f32 %v2400, %v2764
          %v2893 = vmul.f32 %v2404, %v2765
          %v2894 = vmul.f32 %v2408, %v2766
          %v2895 = vmul.f32 %v2411, %v2767
          %v2896 = vmul.f32 %v2415, %v2768
          %v2897 = vmul.f32 %v2419, %v2769
          %v2898 = vmul.f32 %v2423, %v2770
          %v2899 = vmul.f32 %v2427, %v2771
          %v2900 = vmul.f32 %v2431, %v2772
          %v2901 = vmul.f32 %v2435, %v2773
          %v2902 = vmul.f32 %v2439, %v2774
          %v2903 = vmul.f32 %v2442, %v2775
          %v2904 = vmul.f32 %v2446, %v2776
          %v2905 = vmul.f32 %v2450, %v2777
          %v2906 = vmul.f32 %v2454, %v2778
          %v2907 = vmul.f32 %v2458, %v2779
          %v2908 = vmul.f32 %v2462, %v2780
          %v2909 = vmul.f32 %v2466, %v2781
          %v2910 = vmul.f32 %v2470, %v2782
          %v2911 = vmul.f32 %v2473, %v2783
          %v2912 = vmul.f32 %v2477, %v2784
          %v2913 = vmul.f32 %v2481, %v2785
          %v2914 = vmul.f32 %v2485, %v2786
          %v2915 = vmul.f32 %v2489, %v2787
          %v2916 = vmul.f32 %v2493, %v2788
          %v2917 = vmul.f32 %v2497, %v2789
          %v2918 = vmul.f32 %v2501, %v2790
          %v2919 = vmul.f32 %v2504, %v2791
          %v2920 = vmul.f32 %v2508, %v2792
          %v2921 = vmul.f32 %v2512, %v2793
          %v2922 = vmul.f32 %v2516, %v2794
          %v2923 = vmul.f32 %v2520, %v2795
          %v2924 = vmul.f32 %v2524, %v2796
          %v2925 = vmul.f32 %v2528, %v2797
          %v2926 = vmul.f32 %v2532, %v2798
          %v2927 = vmul.f32 %v2535, %v2799
          %v2928 = vmul.f32 %v2539, %v2800
          %v2929 = vmul.f32 %v2543, %v2801
          %v2930 = vmul.f32 %v2547, %v2802
          %v2931 = vmul.f32 %v2551, %v2803
          %v2932 = vmul.f32 %v2555, %v2804
          %v2933 = vmul.f32 %v2559, %v2805
          %v2934 = vmul.f32 %v2563, %v2806
          %v2935 = vmul.f32 %v2566, %v2807
          %v2936 = vmul.f32 %v2570, %v2808
          %v2937 = vmul.f32 %v2574, %v2809
          %v2938 = vmul.f32 %v2578, %v2810
          %v2939 = vmul.f32 %v2582, %v2811
          %v2940 = vmul.f32 %v2586, %v2812
          %v2941 = vmul.f32 %v2590, %v2813
          %v2942 = vmul.f32 %v2594, %v2814
          %v2943 = vmul.f32 %v2597, %v2815
          %v2944 = vmul.f32 %v2601, %v2816
          %v2945 = vmul.f32 %v2605, %v2817
          %v2946 = vmul.f32 %v2609, %v2818
          %v2947 = vmul.f32 %v2613, %v2819
          %v2948 = vmul.f32 %v2617, %v2820
          %v2949 = vmul.f32 %v2621, %v2821
          %v2950 = vmul.f32 %v2625, %v2822
          %v2951 = vmul.f32 %v2628, %v2823
          %v2952 = vmul.f32 %v2632, %v2824
          %v2953 = vmul.f32 %v2636, %v2825
          %v2954 = vmul.f32 %v2640, %v2826
          %v2955 = vmul.f32 %v2644, %v2827
          %v2956 = vmul.f32 %v2648, %v2828
          %v2957 = vmul.f32 %v2652, %v2829
          %v2958 = vmul.f32 %v2656, %v2830
          %v2959 = vmul.f32 %v2659, %v2831
          %v2960 = vmul.f32 %v2663, %v2832
          %v2961 = vmul.f32 %v2667, %v2833
          %v2962 = vmul.f32 %v2671, %v2834
          %v2963 = vmul.f32 %v2675, %v2835
          %v2964 = vmul.f32 %v2679, %v2836
          %v2965 = vmul.f32 %v2683, %v2837
          %v2966 = vmul.f32 %v2687, %v2838
          %v2967 = vmul.f32 %v2690, %v2839
          %v2968 = vmul.f32 %v2694, %v2840
          %v2969 = vmul.f32 %v2698, %v2841
          %v2970 = vmul.f32 %v2702, %v2842
          %v2971 = vmul.f32 %v2706, %v2843
          %v2972 = vmul.f32 %v2710, %v2844
          %v2973 = vmul.f32 %v2714, %v2845
          %v2974 = vmul.f32 %v2718, %v2846
          %vm2975 = vcmask 261120
          %v2976 = vsel %vm2975, %v2847, 0.0
          %v2977 = vsel %vm2975, %v2848, 0.0
          %v2978 = vadd.f32 %v2976, %v2977
          %v2979 = vsel %vm2975, %v2849, 0.0
          %v2980 = vadd.f32 %v2978, %v2979
          %v2981 = vsel %vm2975, %v2850, 0.0
          %v2982 = vadd.f32 %v2980, %v2981
          %v2983 = vsel %vm2975, %v2851, 0.0
          %v2984 = vadd.f32 %v2982, %v2983
          %v2985 = vsel %vm2975, %v2852, 0.0
          %v2986 = vadd.f32 %v2984, %v2985
          %v2987 = vsel %vm2975, %v2853, 0.0
          %v2988 = vadd.f32 %v2986, %v2987
          %v2989 = vsel %vm2975, %v2854, 0.0
          %v2990 = vadd.f32 %v2988, %v2989
          %v2991 = vrot.slane %v2990, 4
          %v2992 = vadd.f32 %v2990, %v2991
          %v2993 = vrot.slane %v2992, 2
          %v2994 = vadd.f32 %v2992, %v2993
          %v2995 = vrot.slane %v2994, 1
          %v2996 = vadd.f32 %v2994, %v2995
          %v2997 = vsel %vm2975, %v2855, 0.0
          %v2998 = vsel %vm2975, %v2856, 0.0
          %v2999 = vadd.f32 %v2997, %v2998
          %v3000 = vsel %vm2975, %v2857, 0.0
          %v3001 = vadd.f32 %v2999, %v3000
          %v3002 = vsel %vm2975, %v2858, 0.0
          %v3003 = vadd.f32 %v3001, %v3002
          %v3004 = vsel %vm2975, %v2859, 0.0
          %v3005 = vadd.f32 %v3003, %v3004
          %v3006 = vsel %vm2975, %v2860, 0.0
          %v3007 = vadd.f32 %v3005, %v3006
          %v3008 = vsel %vm2975, %v2861, 0.0
          %v3009 = vadd.f32 %v3007, %v3008
          %v3010 = vsel %vm2975, %v2862, 0.0
          %v3011 = vadd.f32 %v3009, %v3010
          %v3012 = vrot.slane %v3011, 4
          %v3013 = vadd.f32 %v3011, %v3012
          %v3014 = vrot.slane %v3013, 2
          %v3015 = vadd.f32 %v3013, %v3014
          %v3016 = vrot.slane %v3015, 1
          %v3017 = vadd.f32 %v3015, %v3016
          %v3018 = vsel %vm2975, %v2863, 0.0
          %v3019 = vsel %vm2975, %v2864, 0.0
          %v3020 = vadd.f32 %v3018, %v3019
          %v3021 = vsel %vm2975, %v2865, 0.0
          %v3022 = vadd.f32 %v3020, %v3021
          %v3023 = vsel %vm2975, %v2866, 0.0
          %v3024 = vadd.f32 %v3022, %v3023
          %v3025 = vsel %vm2975, %v2867, 0.0
          %v3026 = vadd.f32 %v3024, %v3025
          %v3027 = vsel %vm2975, %v2868, 0.0
          %v3028 = vadd.f32 %v3026, %v3027
          %v3029 = vsel %vm2975, %v2869, 0.0
          %v3030 = vadd.f32 %v3028, %v3029
          %v3031 = vsel %vm2975, %v2870, 0.0
          %v3032 = vadd.f32 %v3030, %v3031
          %v3033 = vrot.slane %v3032, 4
          %v3034 = vadd.f32 %v3032, %v3033
          %v3035 = vrot.slane %v3034, 2
          %v3036 = vadd.f32 %v3034, %v3035
          %v3037 = vrot.slane %v3036, 1
          %v3038 = vadd.f32 %v3036, %v3037
          %v3039 = vsel %vm2975, %v2871, 0.0
          %v3040 = vsel %vm2975, %v2872, 0.0
          %v3041 = vadd.f32 %v3039, %v3040
          %v3042 = vsel %vm2975, %v2873, 0.0
          %v3043 = vadd.f32 %v3041, %v3042
          %v3044 = vsel %vm2975, %v2874, 0.0
          %v3045 = vadd.f32 %v3043, %v3044
          %v3046 = vsel %vm2975, %v2875, 0.0
          %v3047 = vadd.f32 %v3045, %v3046
          %v3048 = vsel %vm2975, %v2876, 0.0
          %v3049 = vadd.f32 %v3047, %v3048
          %v3050 = vsel %vm2975, %v2877, 0.0
          %v3051 = vadd.f32 %v3049, %v3050
          %v3052 = vsel %vm2975, %v2878, 0.0
          %v3053 = vadd.f32 %v3051, %v3052
          %v3054 = vrot.slane %v3053, 4
          %v3055 = vadd.f32 %v3053, %v3054
          %v3056 = vrot.slane %v3055, 2
          %v3057 = vadd.f32 %v3055, %v3056
          %v3058 = vrot.slane %v3057, 1
          %v3059 = vadd.f32 %v3057, %v3058
          %v3060 = vsel %vm2975, %v2879, 0.0
          %v3061 = vsel %vm2975, %v2880, 0.0
          %v3062 = vadd.f32 %v3060, %v3061
          %v3063 = vsel %vm2975, %v2881, 0.0
          %v3064 = vadd.f32 %v3062, %v3063
          %v3065 = vsel %vm2975, %v2882, 0.0
          %v3066 = vadd.f32 %v3064, %v3065
          %v3067 = vsel %vm2975, %v2883, 0.0
          %v3068 = vadd.f32 %v3066, %v3067
          %v3069 = vsel %vm2975, %v2884, 0.0
          %v3070 = vadd.f32 %v3068, %v3069
          %v3071 = vsel %vm2975, %v2885, 0.0
          %v3072 = vadd.f32 %v3070, %v3071
          %v3073 = vsel %vm2975, %v2886, 0.0
          %v3074 = vadd.f32 %v3072, %v3073
          %v3075 = vrot.slane %v3074, 4
          %v3076 = vadd.f32 %v3074, %v3075
          %v3077 = vrot.slane %v3076, 2
          %v3078 = vadd.f32 %v3076, %v3077
          %v3079 = vrot.slane %v3078, 1
          %v3080 = vadd.f32 %v3078, %v3079
          %v3081 = vsel %vm2975, %v2887, 0.0
          %v3082 = vsel %vm2975, %v2888, 0.0
          %v3083 = vadd.f32 %v3081, %v3082
          %v3084 = vsel %vm2975, %v2889, 0.0
          %v3085 = vadd.f32 %v3083, %v3084
          %v3086 = vsel %vm2975, %v2890, 0.0
          %v3087 = vadd.f32 %v3085, %v3086
          %v3088 = vsel %vm2975, %v2891, 0.0
          %v3089 = vadd.f32 %v3087, %v3088
          %v3090 = vsel %vm2975, %v2892, 0.0
          %v3091 = vadd.f32 %v3089, %v3090
          %v3092 = vsel %vm2975, %v2893, 0.0
          %v3093 = vadd.f32 %v3091, %v3092
          %v3094 = vsel %vm2975, %v2894, 0.0
          %v3095 = vadd.f32 %v3093, %v3094
          %v3096 = vrot.slane %v3095, 4
          %v3097 = vadd.f32 %v3095, %v3096
          %v3098 = vrot.slane %v3097, 2
          %v3099 = vadd.f32 %v3097, %v3098
          %v3100 = vrot.slane %v3099, 1
          %v3101 = vadd.f32 %v3099, %v3100
          %v3102 = vsel %vm2975, %v2895, 0.0
          %v3103 = vsel %vm2975, %v2896, 0.0
          %v3104 = vadd.f32 %v3102, %v3103
          %v3105 = vsel %vm2975, %v2897, 0.0
          %v3106 = vadd.f32 %v3104, %v3105
          %v3107 = vsel %vm2975, %v2898, 0.0
          %v3108 = vadd.f32 %v3106, %v3107
          %v3109 = vsel %vm2975, %v2899, 0.0
          %v3110 = vadd.f32 %v3108, %v3109
          %v3111 = vsel %vm2975, %v2900, 0.0
          %v3112 = vadd.f32 %v3110, %v3111
          %v3113 = vsel %vm2975, %v2901, 0.0
          %v3114 = vadd.f32 %v3112, %v3113
          %v3115 = vsel %vm2975, %v2902, 0.0
          %v3116 = vadd.f32 %v3114, %v3115
          %v3117 = vrot.slane %v3116, 4
          %v3118 = vadd.f32 %v3116, %v3117
          %v3119 = vrot.slane %v3118, 2
          %v3120 = vadd.f32 %v3118, %v3119
          %v3121 = vrot.slane %v3120, 1
          %v3122 = vadd.f32 %v3120, %v3121
          %v3123 = vsel %vm2975, %v2903, 0.0
          %v3124 = vsel %vm2975, %v2904, 0.0
          %v3125 = vadd.f32 %v3123, %v3124
          %v3126 = vsel %vm2975, %v2905, 0.0
          %v3127 = vadd.f32 %v3125, %v3126
          %v3128 = vsel %vm2975, %v2906, 0.0
          %v3129 = vadd.f32 %v3127, %v3128
          %v3130 = vsel %vm2975, %v2907, 0.0
          %v3131 = vadd.f32 %v3129, %v3130
          %v3132 = vsel %vm2975, %v2908, 0.0
          %v3133 = vadd.f32 %v3131, %v3132
          %v3134 = vsel %vm2975, %v2909, 0.0
          %v3135 = vadd.f32 %v3133, %v3134
          %v3136 = vsel %vm2975, %v2910, 0.0
          %v3137 = vadd.f32 %v3135, %v3136
          %v3138 = vrot.slane %v3137, 4
          %v3139 = vadd.f32 %v3137, %v3138
          %v3140 = vrot.slane %v3139, 2
          %v3141 = vadd.f32 %v3139, %v3140
          %v3142 = vrot.slane %v3141, 1
          %v3143 = vadd.f32 %v3141, %v3142
          %v3144 = vsel %vm2975, %v2911, 0.0
          %v3145 = vsel %vm2975, %v2912, 0.0
          %v3146 = vadd.f32 %v3144, %v3145
          %v3147 = vsel %vm2975, %v2913, 0.0
          %v3148 = vadd.f32 %v3146, %v3147
          %v3149 = vsel %vm2975, %v2914, 0.0
          %v3150 = vadd.f32 %v3148, %v3149
          %v3151 = vsel %vm2975, %v2915, 0.0
          %v3152 = vadd.f32 %v3150, %v3151
          %v3153 = vsel %vm2975, %v2916, 0.0
          %v3154 = vadd.f32 %v3152, %v3153
          %v3155 = vsel %vm2975, %v2917, 0.0
          %v3156 = vadd.f32 %v3154, %v3155
          %v3157 = vsel %vm2975, %v2918, 0.0
          %v3158 = vadd.f32 %v3156, %v3157
          %v3159 = vrot.slane %v3158, 4
          %v3160 = vadd.f32 %v3158, %v3159
          %v3161 = vrot.slane %v3160, 2
          %v3162 = vadd.f32 %v3160, %v3161
          %v3163 = vrot.slane %v3162, 1
          %v3164 = vadd.f32 %v3162, %v3163
          %v3165 = vsel %vm2975, %v2919, 0.0
          %v3166 = vsel %vm2975, %v2920, 0.0
          %v3167 = vadd.f32 %v3165, %v3166
          %v3168 = vsel %vm2975, %v2921, 0.0
          %v3169 = vadd.f32 %v3167, %v3168
          %v3170 = vsel %vm2975, %v2922, 0.0
          %v3171 = vadd.f32 %v3169, %v3170
          %v3172 = vsel %vm2975, %v2923, 0.0
          %v3173 = vadd.f32 %v3171, %v3172
          %v3174 = vsel %vm2975, %v2924, 0.0
          %v3175 = vadd.f32 %v3173, %v3174
          %v3176 = vsel %vm2975, %v2925, 0.0
          %v3177 = vadd.f32 %v3175, %v3176
          %v3178 = vsel %vm2975, %v2926, 0.0
          %v3179 = vadd.f32 %v3177, %v3178
          %v3180 = vrot.slane %v3179, 4
          %v3181 = vadd.f32 %v3179, %v3180
          %v3182 = vrot.slane %v3181, 2
          %v3183 = vadd.f32 %v3181, %v3182
          %v3184 = vrot.slane %v3183, 1
          %v3185 = vadd.f32 %v3183, %v3184
          %v3186 = vsel %vm2975, %v2927, 0.0
          %v3187 = vsel %vm2975, %v2928, 0.0
          %v3188 = vadd.f32 %v3186, %v3187
          %v3189 = vsel %vm2975, %v2929, 0.0
          %v3190 = vadd.f32 %v3188, %v3189
          %v3191 = vsel %vm2975, %v2930, 0.0
          %v3192 = vadd.f32 %v3190, %v3191
          %v3193 = vsel %vm2975, %v2931, 0.0
          %v3194 = vadd.f32 %v3192, %v3193
          %v3195 = vsel %vm2975, %v2932, 0.0
          %v3196 = vadd.f32 %v3194, %v3195
          %v3197 = vsel %vm2975, %v2933, 0.0
          %v3198 = vadd.f32 %v3196, %v3197
          %v3199 = vsel %vm2975, %v2934, 0.0
          %v3200 = vadd.f32 %v3198, %v3199
          %v3201 = vrot.slane %v3200, 4
          %v3202 = vadd.f32 %v3200, %v3201
          %v3203 = vrot.slane %v3202, 2
          %v3204 = vadd.f32 %v3202, %v3203
          %v3205 = vrot.slane %v3204, 1
          %v3206 = vadd.f32 %v3204, %v3205
          %v3207 = vsel %vm2975, %v2935, 0.0
          %v3208 = vsel %vm2975, %v2936, 0.0
          %v3209 = vadd.f32 %v3207, %v3208
          %v3210 = vsel %vm2975, %v2937, 0.0
          %v3211 = vadd.f32 %v3209, %v3210
          %v3212 = vsel %vm2975, %v2938, 0.0
          %v3213 = vadd.f32 %v3211, %v3212
          %v3214 = vsel %vm2975, %v2939, 0.0
          %v3215 = vadd.f32 %v3213, %v3214
          %v3216 = vsel %vm2975, %v2940, 0.0
          %v3217 = vadd.f32 %v3215, %v3216
          %v3218 = vsel %vm2975, %v2941, 0.0
          %v3219 = vadd.f32 %v3217, %v3218
          %v3220 = vsel %vm2975, %v2942, 0.0
          %v3221 = vadd.f32 %v3219, %v3220
          %v3222 = vrot.slane %v3221, 4
          %v3223 = vadd.f32 %v3221, %v3222
          %v3224 = vrot.slane %v3223, 2
          %v3225 = vadd.f32 %v3223, %v3224
          %v3226 = vrot.slane %v3225, 1
          %v3227 = vadd.f32 %v3225, %v3226
          %v3228 = vsel %vm2975, %v2943, 0.0
          %v3229 = vsel %vm2975, %v2944, 0.0
          %v3230 = vadd.f32 %v3228, %v3229
          %v3231 = vsel %vm2975, %v2945, 0.0
          %v3232 = vadd.f32 %v3230, %v3231
          %v3233 = vsel %vm2975, %v2946, 0.0
          %v3234 = vadd.f32 %v3232, %v3233
          %v3235 = vsel %vm2975, %v2947, 0.0
          %v3236 = vadd.f32 %v3234, %v3235
          %v3237 = vsel %vm2975, %v2948, 0.0
          %v3238 = vadd.f32 %v3236, %v3237
          %v3239 = vsel %vm2975, %v2949, 0.0
          %v3240 = vadd.f32 %v3238, %v3239
          %v3241 = vsel %vm2975, %v2950, 0.0
          %v3242 = vadd.f32 %v3240, %v3241
          %v3243 = vrot.slane %v3242, 4
          %v3244 = vadd.f32 %v3242, %v3243
          %v3245 = vrot.slane %v3244, 2
          %v3246 = vadd.f32 %v3244, %v3245
          %v3247 = vrot.slane %v3246, 1
          %v3248 = vadd.f32 %v3246, %v3247
          %v3249 = vsel %vm2975, %v2951, 0.0
          %v3250 = vsel %vm2975, %v2952, 0.0
          %v3251 = vadd.f32 %v3249, %v3250
          %v3252 = vsel %vm2975, %v2953, 0.0
          %v3253 = vadd.f32 %v3251, %v3252
          %v3254 = vsel %vm2975, %v2954, 0.0
          %v3255 = vadd.f32 %v3253, %v3254
          %v3256 = vsel %vm2975, %v2955, 0.0
          %v3257 = vadd.f32 %v3255, %v3256
          %v3258 = vsel %vm2975, %v2956, 0.0
          %v3259 = vadd.f32 %v3257, %v3258
          %v3260 = vsel %vm2975, %v2957, 0.0
          %v3261 = vadd.f32 %v3259, %v3260
          %v3262 = vsel %vm2975, %v2958, 0.0
          %v3263 = vadd.f32 %v3261, %v3262
          %v3264 = vrot.slane %v3263, 4
          %v3265 = vadd.f32 %v3263, %v3264
          %v3266 = vrot.slane %v3265, 2
          %v3267 = vadd.f32 %v3265, %v3266
          %v3268 = vrot.slane %v3267, 1
          %v3269 = vadd.f32 %v3267, %v3268
          %v3270 = vsel %vm2975, %v2959, 0.0
          %v3271 = vsel %vm2975, %v2960, 0.0
          %v3272 = vadd.f32 %v3270, %v3271
          %v3273 = vsel %vm2975, %v2961, 0.0
          %v3274 = vadd.f32 %v3272, %v3273
          %v3275 = vsel %vm2975, %v2962, 0.0
          %v3276 = vadd.f32 %v3274, %v3275
          %v3277 = vsel %vm2975, %v2963, 0.0
          %v3278 = vadd.f32 %v3276, %v3277
          %v3279 = vsel %vm2975, %v2964, 0.0
          %v3280 = vadd.f32 %v3278, %v3279
          %v3281 = vsel %vm2975, %v2965, 0.0
          %v3282 = vadd.f32 %v3280, %v3281
          %v3283 = vsel %vm2975, %v2966, 0.0
          %v3284 = vadd.f32 %v3282, %v3283
          %v3285 = vrot.slane %v3284, 4
          %v3286 = vadd.f32 %v3284, %v3285
          %v3287 = vrot.slane %v3286, 2
          %v3288 = vadd.f32 %v3286, %v3287
          %v3289 = vrot.slane %v3288, 1
          %v3290 = vadd.f32 %v3288, %v3289
          %v3291 = vsel %vm2975, %v2967, 0.0
          %v3292 = vsel %vm2975, %v2968, 0.0
          %v3293 = vadd.f32 %v3291, %v3292
          %v3294 = vsel %vm2975, %v2969, 0.0
          %v3295 = vadd.f32 %v3293, %v3294
          %v3296 = vsel %vm2975, %v2970, 0.0
          %v3297 = vadd.f32 %v3295, %v3296
          %v3298 = vsel %vm2975, %v2971, 0.0
          %v3299 = vadd.f32 %v3297, %v3298
          %v3300 = vsel %vm2975, %v2972, 0.0
          %v3301 = vadd.f32 %v3299, %v3300
          %v3302 = vsel %vm2975, %v2973, 0.0
          %v3303 = vadd.f32 %v3301, %v3302
          %v3304 = vsel %vm2975, %v2974, 0.0
          %v3305 = vadd.f32 %v3303, %v3304
          %v3306 = vrot.slane %v3305, 4
          %v3307 = vadd.f32 %v3305, %v3306
          %v3308 = vrot.slane %v3307, 2
          %v3309 = vadd.f32 %v3307, %v3308
          %v3310 = vrot.slane %v3309, 1
          %v3311 = vadd.f32 %v3309, %v3310
          %v3328 = vsel %vm1650, %v3017, %v2996
          %v3329 = vsel %vm1652, %v3038, %v3328
          %v3330 = vsel %vm1654, %v3059, %v3329
          %v3331 = vsel %vm1656, %v3080, %v3330
          %v3332 = vsel %vm1658, %v3101, %v3331
          %v3333 = vsel %vm1660, %v3122, %v3332
          %v3334 = vsel %vm1662, %v3143, %v3333
          %v3335 = vsel %vm1650, %v3185, %v3164
          %v3336 = vsel %vm1652, %v3206, %v3335
          %v3337 = vsel %vm1654, %v3227, %v3336
          %v3338 = vsel %vm1656, %v3248, %v3337
          %v3339 = vsel %vm1658, %v3269, %v3338
          %v3340 = vsel %vm1660, %v3290, %v3339
          %v3341 = vsel %vm1662, %v3311, %v3340
          %3344 = vst.msk [vmem:[%s570] sm:$0xff] %vm2975, %v3334
          %3345 = vst.msk [vmem:[%s570 + $0x8] sm:$0xff] %vm2975, %v3341
          %v3346 = vld [vmem:[%s2] sm:$0xff]
          %v3347 = vld [vmem:[%s2 + $0x8] sm:$0xff]
          %v3350 = vrot.slane %v3346, 1
          %v3351 = vrot.slane %v3346, 2
          %v3352 = vrot.slane %v3346, 3
          %v3353 = vrot.slane %v3346, 4
          %v3354 = vrot.slane %v3346, 5
          %v3355 = vrot.slane %v3346, 6
          %v3356 = vrot.slane %v3346, 7
          %v3357 = vrot.slane %v3347, 1
          %v3358 = vrot.slane %v3347, 2
          %v3359 = vrot.slane %v3347, 3
          %v3360 = vrot.slane %v3347, 4
          %v3361 = vrot.slane %v3347, 5
          %v3362 = vrot.slane %v3347, 6
          %v3363 = vrot.slane %v3347, 7
          %v3380 = vmul.f32 %v2996, %v3346
          %v3381 = vmul.f32 %v3017, %v3350
          %v3382 = vmul.f32 %v3038, %v3351
          %v3383 = vmul.f32 %v3059, %v3352
          %v3384 = vmul.f32 %v3080, %v3353
          %v3385 = vmul.f32 %v3101, %v3354
          %v3386 = vmul.f32 %v3122, %v3355
          %v3387 = vmul.f32 %v3143, %v3356
          %v3388 = vmul.f32 %v3164, %v3347
          %v3389 = vmul.f32 %v3185, %v3357
          %v3390 = vmul.f32 %v3206, %v3358
          %v3391 = vmul.f32 %v3227, %v3359
          %v3392 = vmul.f32 %v3248, %v3360
          %v3393 = vmul.f32 %v3269, %v3361
          %v3394 = vmul.f32 %v3290, %v3362
          %v3395 = vmul.f32 %v3311, %v3363
          %v3396 = vld [vmem:[%s3] sm:$0xff]
          %v3397 = vld [vmem:[%s3 + $0x8] sm:$0xff]
          %v3400 = vrot.slane %v3396, 1
          %v3401 = vrot.slane %v3396, 2
          %v3402 = vrot.slane %v3396, 3
          %v3403 = vrot.slane %v3396, 4
          %v3404 = vrot.slane %v3396, 5
          %v3405 = vrot.slane %v3396, 6
          %v3406 = vrot.slane %v3396, 7
          %v3407 = vrot.slane %v3397, 1
          %v3408 = vrot.slane %v3397, 2
          %v3409 = vrot.slane %v3397, 3
          %v3410 = vrot.slane %v3397, 4
          %v3411 = vrot.slane %v3397, 5
          %v3412 = vrot.slane %v3397, 6
          %v3413 = vrot.slane %v3397, 7
          %v3430 = vadd.f32 %v3380, %v3396
          %v3431 = vadd.f32 %v3381, %v3400
          %v3432 = vadd.f32 %v3382, %v3401
          %v3433 = vadd.f32 %v3383, %v3402
          %v3434 = vadd.f32 %v3384, %v3403
          %v3435 = vadd.f32 %v3385, %v3404
          %v3436 = vadd.f32 %v3386, %v3405
          %v3437 = vadd.f32 %v3387, %v3406
          %v3438 = vadd.f32 %v3388, %v3397
          %v3439 = vadd.f32 %v3389, %v3407
          %v3440 = vadd.f32 %v3390, %v3408
          %v3441 = vadd.f32 %v3391, %v3409
          %v3442 = vadd.f32 %v3392, %v3410
          %v3443 = vadd.f32 %v3393, %v3411
          %v3444 = vadd.f32 %v3394, %v3412
          %v3445 = vadd.f32 %v3395, %v3413
          %v3446 = vmul.f32 %v3430, %v3430
          %v3447 = vmul.f32 %v3431, %v3431
          %v3448 = vmul.f32 %v3432, %v3432
          %v3449 = vmul.f32 %v3433, %v3433
          %v3450 = vmul.f32 %v3434, %v3434
          %v3451 = vmul.f32 %v3435, %v3435
          %v3452 = vmul.f32 %v3436, %v3436
          %v3453 = vmul.f32 %v3437, %v3437
          %v3454 = vmul.f32 %v3438, %v3438
          %v3455 = vmul.f32 %v3439, %v3439
          %v3456 = vmul.f32 %v3440, %v3440
          %v3457 = vmul.f32 %v3441, %v3441
          %v3458 = vmul.f32 %v3442, %v3442
          %v3459 = vmul.f32 %v3443, %v3443
          %v3460 = vmul.f32 %v3444, %v3444
          %v3461 = vmul.f32 %v3445, %v3445
          %v3478 = vrot.slane %v3447, 7
          %v3479 = vsel %vm1650, %v3478, %v3446
          %v3480 = vrot.slane %v3448, 6
          %v3481 = vsel %vm1652, %v3480, %v3479
          %v3482 = vrot.slane %v3449, 5
          %v3483 = vsel %vm1654, %v3482, %v3481
          %v3484 = vrot.slane %v3450, 4
          %v3485 = vsel %vm1656, %v3484, %v3483
          %v3486 = vrot.slane %v3451, 3
          %v3487 = vsel %vm1658, %v3486, %v3485
          %v3488 = vrot.slane %v3452, 2
          %v3489 = vsel %vm1660, %v3488, %v3487
          %v3490 = vrot.slane %v3453, 1
          %v3491 = vsel %vm1662, %v3490, %v3489
          %v3492 = vrot.slane %v3455, 7
          %v3493 = vsel %vm1650, %v3492, %v3454
          %v3494 = vrot.slane %v3456, 6
          %v3495 = vsel %vm1652, %v3494, %v3493
          %v3496 = vrot.slane %v3457, 5
          %v3497 = vsel %vm1654, %v3496, %v3495
          %v3498 = vrot.slane %v3458, 4
          %v3499 = vsel %vm1656, %v3498, %v3497
          %v3500 = vrot.slane %v3459, 3
          %v3501 = vsel %vm1658, %v3500, %v3499
          %v3502 = vrot.slane %v3460, 2
          %v3503 = vsel %vm1660, %v3502, %v3501
          %v3504 = vrot.slane %v3461, 1
          %v3505 = vsel %vm1662, %v3504, %v3503
          %v3508 = vsel %vm2975, %v3491, 0.0
          %3509 = vadd.xlane.f32.xlu0 %v3508
          %v3510 = vpop.xlane.xlu0 %3509
          %v3511 = vsel %vm2975, %v3505, 0.0
          %3512 = vadd.xlane.f32.xlu0 %v3511
          %v3513 = vpop.xlane.xlu0 %3512
          %v3514 = vmax.f32 %v3510, 1e-24
          %v3515 = vmax.f32 %v3513, 1e-24
          %v3516 = vrsqrt.pop %v3514
          %v3517 = vrsqrt.pop %v3515
          %v3520 = vrot.slane %v3516, 1
          %v3521 = vrot.slane %v3516, 2
          %v3522 = vrot.slane %v3516, 3
          %v3523 = vrot.slane %v3516, 4
          %v3524 = vrot.slane %v3516, 5
          %v3525 = vrot.slane %v3516, 6
          %v3526 = vrot.slane %v3516, 7
          %v3527 = vrot.slane %v3517, 1
          %v3528 = vrot.slane %v3517, 2
          %v3529 = vrot.slane %v3517, 3
          %v3530 = vrot.slane %v3517, 4
          %v3531 = vrot.slane %v3517, 5
          %v3532 = vrot.slane %v3517, 6
          %v3533 = vrot.slane %v3517, 7
          %v3550 = vmul.f32 %v3430, %v3516
          %v3551 = vmul.f32 %v3431, %v3520
          %v3552 = vmul.f32 %v3432, %v3521
          %v3553 = vmul.f32 %v3433, %v3522
          %v3554 = vmul.f32 %v3434, %v3523
          %v3555 = vmul.f32 %v3435, %v3524
          %v3556 = vmul.f32 %v3436, %v3525
          %v3557 = vmul.f32 %v3437, %v3526
          %v3558 = vmul.f32 %v3438, %v3517
          %v3559 = vmul.f32 %v3439, %v3527
          %v3560 = vmul.f32 %v3440, %v3528
          %v3561 = vmul.f32 %v3441, %v3529
          %v3562 = vmul.f32 %v3442, %v3530
          %v3563 = vmul.f32 %v3443, %v3531
          %v3564 = vmul.f32 %v3444, %v3532
          %v3565 = vmul.f32 %v3445, %v3533
          %v3582 = vrot.slane %v3551, 7
          %v3583 = vsel %vm1650, %v3582, %v3550
          %v3584 = vrot.slane %v3552, 6
          %v3585 = vsel %vm1652, %v3584, %v3583
          %v3586 = vrot.slane %v3553, 5
          %v3587 = vsel %vm1654, %v3586, %v3585
          %v3588 = vrot.slane %v3554, 4
          %v3589 = vsel %vm1656, %v3588, %v3587
          %v3590 = vrot.slane %v3555, 3
          %v3591 = vsel %vm1658, %v3590, %v3589
          %v3592 = vrot.slane %v3556, 2
          %v3593 = vsel %vm1660, %v3592, %v3591
          %v3594 = vrot.slane %v3557, 1
          %v3595 = vsel %vm1662, %v3594, %v3593
          %v3596 = vrot.slane %v3559, 7
          %v3597 = vsel %vm1650, %v3596, %v3558
          %v3598 = vrot.slane %v3560, 6
          %v3599 = vsel %vm1652, %v3598, %v3597
          %v3600 = vrot.slane %v3561, 5
          %v3601 = vsel %vm1654, %v3600, %v3599
          %v3602 = vrot.slane %v3562, 4
          %v3603 = vsel %vm1656, %v3602, %v3601
          %v3604 = vrot.slane %v3563, 3
          %v3605 = vsel %vm1658, %v3604, %v3603
          %v3606 = vrot.slane %v3564, 2
          %v3607 = vsel %vm1660, %v3606, %v3605
          %v3608 = vrot.slane %v3565, 1
          %v3609 = vsel %vm1662, %v3608, %v3607
          %3612 = vst.msk [vmem:[%s577] sm:$0xff] %vm2975, %v3595
          %3613 = vst.msk [vmem:[%s577 + $0x8] sm:$0xff] %vm2975, %v3609
          %v3614 = vlaneseq
          %v3615 = vshrl.u32 %v3614, 7
          %v3616 = vsub.s32 0, %v3615
          %v3617 = vrot.slane %v3550, %v3616
          %3619 = vbcast.lane.b32.xlu0 %v3617, 256
          %v3620 = vpop.permute.xlu0 %3619
          %s3622 = sor.u32 256, 8
          %3623 = vbcast.lane.b32.xlu0 %v3617, %s3622
          %v3624 = vpop.permute.xlu0 %3623
          %s3626 = sor.u32 256, 16
          %3627 = vbcast.lane.b32.xlu0 %v3617, %s3626
          %v3628 = vpop.permute.xlu0 %3627
          %s3630 = sor.u32 256, 24
          %3631 = vbcast.lane.b32.xlu0 %v3617, %s3630
          %v3632 = vpop.permute.xlu0 %3631
          %v3633 = vlaneseq
          %v3634 = vshrl.u32 %v3633, 7
          %v3635 = vsub.s32 0, %v3634
          %v3636 = vrot.slane %v3551, %v3635
          %3638 = vbcast.lane.b32.xlu0 %v3636, 256
          %v3639 = vpop.permute.xlu0 %3638
          %s3641 = sor.u32 256, 8
          %3642 = vbcast.lane.b32.xlu0 %v3636, %s3641
          %v3643 = vpop.permute.xlu0 %3642
          %s3645 = sor.u32 256, 16
          %3646 = vbcast.lane.b32.xlu0 %v3636, %s3645
          %v3647 = vpop.permute.xlu0 %3646
          %s3649 = sor.u32 256, 24
          %3650 = vbcast.lane.b32.xlu0 %v3636, %s3649
          %v3651 = vpop.permute.xlu0 %3650
          %v3652 = vlaneseq
          %v3653 = vshrl.u32 %v3652, 7
          %v3654 = vsub.s32 0, %v3653
          %v3655 = vrot.slane %v3552, %v3654
          %3657 = vbcast.lane.b32.xlu0 %v3655, 256
          %v3658 = vpop.permute.xlu0 %3657
          %s3660 = sor.u32 256, 8
          %3661 = vbcast.lane.b32.xlu0 %v3655, %s3660
          %v3662 = vpop.permute.xlu0 %3661
          %s3664 = sor.u32 256, 16
          %3665 = vbcast.lane.b32.xlu0 %v3655, %s3664
          %v3666 = vpop.permute.xlu0 %3665
          %s3668 = sor.u32 256, 24
          %3669 = vbcast.lane.b32.xlu0 %v3655, %s3668
          %v3670 = vpop.permute.xlu0 %3669
          %v3671 = vlaneseq
          %v3672 = vshrl.u32 %v3671, 7
          %v3673 = vsub.s32 0, %v3672
          %v3674 = vrot.slane %v3553, %v3673
          %3676 = vbcast.lane.b32.xlu0 %v3674, 256
          %v3677 = vpop.permute.xlu0 %3676
          %s3679 = sor.u32 256, 8
          %3680 = vbcast.lane.b32.xlu0 %v3674, %s3679
          %v3681 = vpop.permute.xlu0 %3680
          %s3683 = sor.u32 256, 16
          %3684 = vbcast.lane.b32.xlu0 %v3674, %s3683
          %v3685 = vpop.permute.xlu0 %3684
          %s3687 = sor.u32 256, 24
          %3688 = vbcast.lane.b32.xlu0 %v3674, %s3687
          %v3689 = vpop.permute.xlu0 %3688
          %v3690 = vlaneseq
          %v3691 = vshrl.u32 %v3690, 7
          %v3692 = vsub.s32 0, %v3691
          %v3693 = vrot.slane %v3554, %v3692
          %3695 = vbcast.lane.b32.xlu0 %v3693, 256
          %v3696 = vpop.permute.xlu0 %3695
          %s3698 = sor.u32 256, 8
          %3699 = vbcast.lane.b32.xlu0 %v3693, %s3698
          %v3700 = vpop.permute.xlu0 %3699
          %s3702 = sor.u32 256, 16
          %3703 = vbcast.lane.b32.xlu0 %v3693, %s3702
          %v3704 = vpop.permute.xlu0 %3703
          %s3706 = sor.u32 256, 24
          %3707 = vbcast.lane.b32.xlu0 %v3693, %s3706
          %v3708 = vpop.permute.xlu0 %3707
          %v3709 = vlaneseq
          %v3710 = vshrl.u32 %v3709, 7
          %v3711 = vsub.s32 0, %v3710
          %v3712 = vrot.slane %v3555, %v3711
          %3714 = vbcast.lane.b32.xlu0 %v3712, 256
          %v3715 = vpop.permute.xlu0 %3714
          %s3717 = sor.u32 256, 8
          %3718 = vbcast.lane.b32.xlu0 %v3712, %s3717
          %v3719 = vpop.permute.xlu0 %3718
          %s3721 = sor.u32 256, 16
          %3722 = vbcast.lane.b32.xlu0 %v3712, %s3721
          %v3723 = vpop.permute.xlu0 %3722
          %s3725 = sor.u32 256, 24
          %3726 = vbcast.lane.b32.xlu0 %v3712, %s3725
          %v3727 = vpop.permute.xlu0 %3726
          %v3728 = vlaneseq
          %v3729 = vshrl.u32 %v3728, 7
          %v3730 = vsub.s32 0, %v3729
          %v3731 = vrot.slane %v3556, %v3730
          %3733 = vbcast.lane.b32.xlu0 %v3731, 256
          %v3734 = vpop.permute.xlu0 %3733
          %s3736 = sor.u32 256, 8
          %3737 = vbcast.lane.b32.xlu0 %v3731, %s3736
          %v3738 = vpop.permute.xlu0 %3737
          %s3740 = sor.u32 256, 16
          %3741 = vbcast.lane.b32.xlu0 %v3731, %s3740
          %v3742 = vpop.permute.xlu0 %3741
          %s3744 = sor.u32 256, 24
          %3745 = vbcast.lane.b32.xlu0 %v3731, %s3744
          %v3746 = vpop.permute.xlu0 %3745
          %v3747 = vlaneseq
          %v3748 = vshrl.u32 %v3747, 7
          %v3749 = vsub.s32 0, %v3748
          %v3750 = vrot.slane %v3557, %v3749
          %3752 = vbcast.lane.b32.xlu0 %v3750, 256
          %v3753 = vpop.permute.xlu0 %3752
          %s3755 = sor.u32 256, 8
          %3756 = vbcast.lane.b32.xlu0 %v3750, %s3755
          %v3757 = vpop.permute.xlu0 %3756
          %s3759 = sor.u32 256, 16
          %3760 = vbcast.lane.b32.xlu0 %v3750, %s3759
          %v3761 = vpop.permute.xlu0 %3760
          %s3763 = sor.u32 256, 24
          %3764 = vbcast.lane.b32.xlu0 %v3750, %s3763
          %v3765 = vpop.permute.xlu0 %3764
          %v3766 = vlaneseq
          %v3767 = vshrl.u32 %v3766, 7
          %v3768 = vsub.s32 0, %v3767
          %v3769 = vrot.slane %v3558, %v3768
          %3771 = vbcast.lane.b32.xlu0 %v3769, 256
          %v3772 = vpop.permute.xlu0 %3771
          %s3774 = sor.u32 256, 8
          %3775 = vbcast.lane.b32.xlu0 %v3769, %s3774
          %v3776 = vpop.permute.xlu0 %3775
          %s3778 = sor.u32 256, 16
          %3779 = vbcast.lane.b32.xlu0 %v3769, %s3778
          %v3780 = vpop.permute.xlu0 %3779
          %s3782 = sor.u32 256, 24
          %3783 = vbcast.lane.b32.xlu0 %v3769, %s3782
          %v3784 = vpop.permute.xlu0 %3783
          %v3785 = vlaneseq
          %v3786 = vshrl.u32 %v3785, 7
          %v3787 = vsub.s32 0, %v3786
          %v3788 = vrot.slane %v3559, %v3787
          %3790 = vbcast.lane.b32.xlu0 %v3788, 256
          %v3791 = vpop.permute.xlu0 %3790
          %s3793 = sor.u32 256, 8
          %3794 = vbcast.lane.b32.xlu0 %v3788, %s3793
          %v3795 = vpop.permute.xlu0 %3794
          %s3797 = sor.u32 256, 16
          %3798 = vbcast.lane.b32.xlu0 %v3788, %s3797
          %v3799 = vpop.permute.xlu0 %3798
          %s3801 = sor.u32 256, 24
          %3802 = vbcast.lane.b32.xlu0 %v3788, %s3801
          %v3803 = vpop.permute.xlu0 %3802
          %v3804 = vlaneseq
          %v3805 = vshrl.u32 %v3804, 7
          %v3806 = vsub.s32 0, %v3805
          %v3807 = vrot.slane %v3560, %v3806
          %3809 = vbcast.lane.b32.xlu0 %v3807, 256
          %v3810 = vpop.permute.xlu0 %3809
          %s3812 = sor.u32 256, 8
          %3813 = vbcast.lane.b32.xlu0 %v3807, %s3812
          %v3814 = vpop.permute.xlu0 %3813
          %s3816 = sor.u32 256, 16
          %3817 = vbcast.lane.b32.xlu0 %v3807, %s3816
          %v3818 = vpop.permute.xlu0 %3817
          %s3820 = sor.u32 256, 24
          %3821 = vbcast.lane.b32.xlu0 %v3807, %s3820
          %v3822 = vpop.permute.xlu0 %3821
          %v3823 = vlaneseq
          %v3824 = vshrl.u32 %v3823, 7
          %v3825 = vsub.s32 0, %v3824
          %v3826 = vrot.slane %v3561, %v3825
          %3828 = vbcast.lane.b32.xlu0 %v3826, 256
          %v3829 = vpop.permute.xlu0 %3828
          %s3831 = sor.u32 256, 8
          %3832 = vbcast.lane.b32.xlu0 %v3826, %s3831
          %v3833 = vpop.permute.xlu0 %3832
          %s3835 = sor.u32 256, 16
          %3836 = vbcast.lane.b32.xlu0 %v3826, %s3835
          %v3837 = vpop.permute.xlu0 %3836
          %s3839 = sor.u32 256, 24
          %3840 = vbcast.lane.b32.xlu0 %v3826, %s3839
          %v3841 = vpop.permute.xlu0 %3840
          %v3842 = vlaneseq
          %v3843 = vshrl.u32 %v3842, 7
          %v3844 = vsub.s32 0, %v3843
          %v3845 = vrot.slane %v3562, %v3844
          %3847 = vbcast.lane.b32.xlu0 %v3845, 256
          %v3848 = vpop.permute.xlu0 %3847
          %s3850 = sor.u32 256, 8
          %3851 = vbcast.lane.b32.xlu0 %v3845, %s3850
          %v3852 = vpop.permute.xlu0 %3851
          %s3854 = sor.u32 256, 16
          %3855 = vbcast.lane.b32.xlu0 %v3845, %s3854
          %v3856 = vpop.permute.xlu0 %3855
          %s3858 = sor.u32 256, 24
          %3859 = vbcast.lane.b32.xlu0 %v3845, %s3858
          %v3860 = vpop.permute.xlu0 %3859
          %v3861 = vlaneseq
          %v3862 = vshrl.u32 %v3861, 7
          %v3863 = vsub.s32 0, %v3862
          %v3864 = vrot.slane %v3563, %v3863
          %3866 = vbcast.lane.b32.xlu0 %v3864, 256
          %v3867 = vpop.permute.xlu0 %3866
          %s3869 = sor.u32 256, 8
          %3870 = vbcast.lane.b32.xlu0 %v3864, %s3869
          %v3871 = vpop.permute.xlu0 %3870
          %s3873 = sor.u32 256, 16
          %3874 = vbcast.lane.b32.xlu0 %v3864, %s3873
          %v3875 = vpop.permute.xlu0 %3874
          %s3877 = sor.u32 256, 24
          %3878 = vbcast.lane.b32.xlu0 %v3864, %s3877
          %v3879 = vpop.permute.xlu0 %3878
          %v3880 = vlaneseq
          %v3881 = vshrl.u32 %v3880, 7
          %v3882 = vsub.s32 0, %v3881
          %v3883 = vrot.slane %v3564, %v3882
          %3885 = vbcast.lane.b32.xlu0 %v3883, 256
          %v3886 = vpop.permute.xlu0 %3885
          %s3888 = sor.u32 256, 8
          %3889 = vbcast.lane.b32.xlu0 %v3883, %s3888
          %v3890 = vpop.permute.xlu0 %3889
          %s3892 = sor.u32 256, 16
          %3893 = vbcast.lane.b32.xlu0 %v3883, %s3892
          %v3894 = vpop.permute.xlu0 %3893
          %s3896 = sor.u32 256, 24
          %3897 = vbcast.lane.b32.xlu0 %v3883, %s3896
          %v3898 = vpop.permute.xlu0 %3897
          %v3899 = vlaneseq
          %v3900 = vshrl.u32 %v3899, 7
          %v3901 = vsub.s32 0, %v3900
          %v3902 = vrot.slane %v3565, %v3901
          %3904 = vbcast.lane.b32.xlu0 %v3902, 256
          %v3905 = vpop.permute.xlu0 %3904
          %s3907 = sor.u32 256, 8
          %3908 = vbcast.lane.b32.xlu0 %v3902, %s3907
          %v3909 = vpop.permute.xlu0 %3908
          %s3911 = sor.u32 256, 16
          %3912 = vbcast.lane.b32.xlu0 %v3902, %s3911
          %v3913 = vpop.permute.xlu0 %3912
          %s3915 = sor.u32 256, 24
          %3916 = vbcast.lane.b32.xlu0 %v3902, %s3915
          %v3917 = vpop.permute.xlu0 %3916
          %v3918 = vld [vmem:[%s4] sm:$0xff]
          %v3919 = vld [vmem:[%s4 + $0x8] sm:$0xff]
          %v3920 = vld [vmem:[%s4 + $0x10] sm:$0xff]
          %v3921 = vld [vmem:[%s4 + $0x18] sm:$0xff]
          %v3922 = vld [vmem:[%s4 + $0x20] sm:$0xff]
          %v3923 = vld [vmem:[%s4 + $0x28] sm:$0xff]
          %v3924 = vld [vmem:[%s4 + $0x30] sm:$0xff]
          %v3925 = vld [vmem:[%s4 + $0x38] sm:$0xff]
          %v3926 = vld [vmem:[%s4 + $0x40] sm:$0xff]
          %v3927 = vld [vmem:[%s4 + $0x48] sm:$0xff]
          %v3928 = vld [vmem:[%s4 + $0x50] sm:$0xff]
          %v3929 = vld [vmem:[%s4 + $0x58] sm:$0xff]
          %v3930 = vld [vmem:[%s4 + $0x60] sm:$0xff]
          %v3931 = vld [vmem:[%s4 + $0x68] sm:$0xff]
          %v3932 = vld [vmem:[%s4 + $0x70] sm:$0xff]
          %v3933 = vld [vmem:[%s4 + $0x78] sm:$0xff]
          %v3934 = vld [vmem:[%s4 + $0x80] sm:$0xff]
          %v3935 = vld [vmem:[%s4 + $0x88] sm:$0xff]
          %v3936 = vld [vmem:[%s4 + $0x90] sm:$0xff]
          %v3937 = vld [vmem:[%s4 + $0x98] sm:$0xff]
          %v3938 = vld [vmem:[%s4 + $0xa0] sm:$0xff]
          %v3939 = vld [vmem:[%s4 + $0xa8] sm:$0xff]
          %v3940 = vld [vmem:[%s4 + $0xb0] sm:$0xff]
          %v3941 = vld [vmem:[%s4 + $0xb8] sm:$0xff]
          %v3942 = vld [vmem:[%s4 + $0xc0] sm:$0xff]
          %v3943 = vld [vmem:[%s4 + $0xc8] sm:$0xff]
          %v3944 = vld [vmem:[%s4 + $0xd0] sm:$0xff]
          %v3945 = vld [vmem:[%s4 + $0xd8] sm:$0xff]
          %v3946 = vld [vmem:[%s4 + $0xe0] sm:$0xff]
          %v3947 = vld [vmem:[%s4 + $0xe8] sm:$0xff]
          %v3948 = vld [vmem:[%s4 + $0xf0] sm:$0xff]
          %v3949 = vld [vmem:[%s4 + $0xf8] sm:$0xff]
          %v3950 = vld [vmem:[%s4 + $0x100] sm:$0xff]
          %v3951 = vld [vmem:[%s4 + $0x108] sm:$0xff]
          %v3952 = vld [vmem:[%s4 + $0x110] sm:$0xff]
          %v3953 = vld [vmem:[%s4 + $0x118] sm:$0xff]
          %v3954 = vld [vmem:[%s4 + $0x120] sm:$0xff]
          %v3955 = vld [vmem:[%s4 + $0x128] sm:$0xff]
          %v3956 = vld [vmem:[%s4 + $0x130] sm:$0xff]
          %v3957 = vld [vmem:[%s4 + $0x138] sm:$0xff]
          %v3958 = vld [vmem:[%s4 + $0x140] sm:$0xff]
          %v3959 = vld [vmem:[%s4 + $0x148] sm:$0xff]
          %v3960 = vld [vmem:[%s4 + $0x150] sm:$0xff]
          %v3961 = vld [vmem:[%s4 + $0x158] sm:$0xff]
          %v3962 = vld [vmem:[%s4 + $0x160] sm:$0xff]
          %v3963 = vld [vmem:[%s4 + $0x168] sm:$0xff]
          %v3964 = vld [vmem:[%s4 + $0x170] sm:$0xff]
          %v3965 = vld [vmem:[%s4 + $0x178] sm:$0xff]
          %v3966 = vld [vmem:[%s4 + $0x180] sm:$0xff]
          %v3967 = vld [vmem:[%s4 + $0x188] sm:$0xff]
          %v3968 = vld [vmem:[%s4 + $0x190] sm:$0xff]
          %v3969 = vld [vmem:[%s4 + $0x198] sm:$0xff]
          %v3970 = vld [vmem:[%s4 + $0x1a0] sm:$0xff]
          %v3971 = vld [vmem:[%s4 + $0x1a8] sm:$0xff]
          %v3972 = vld [vmem:[%s4 + $0x1b0] sm:$0xff]
          %v3973 = vld [vmem:[%s4 + $0x1b8] sm:$0xff]
          %v3974 = vld [vmem:[%s4 + $0x1c0] sm:$0xff]
          %v3975 = vld [vmem:[%s4 + $0x1c8] sm:$0xff]
          %v3976 = vld [vmem:[%s4 + $0x1d0] sm:$0xff]
          %v3977 = vld [vmem:[%s4 + $0x1d8] sm:$0xff]
          %v3978 = vld [vmem:[%s4 + $0x1e0] sm:$0xff]
          %v3979 = vld [vmem:[%s4 + $0x1e8] sm:$0xff]
          %v3980 = vld [vmem:[%s4 + $0x1f0] sm:$0xff]
          %v3981 = vld [vmem:[%s4 + $0x1f8] sm:$0xff]
          %v3982 = vmul.f32 %v3620, %v3918
          %v3983 = vmul.f32 %v3624, %v3919
          %v3984 = vmul.f32 %v3628, %v3920
          %v3985 = vmul.f32 %v3632, %v3921
          %v3986 = vmul.f32 %v3639, %v3922
          %v3987 = vmul.f32 %v3643, %v3923
          %v3988 = vmul.f32 %v3647, %v3924
          %v3989 = vmul.f32 %v3651, %v3925
          %v3990 = vmul.f32 %v3658, %v3926
          %v3991 = vmul.f32 %v3662, %v3927
          %v3992 = vmul.f32 %v3666, %v3928
          %v3993 = vmul.f32 %v3670, %v3929
          %v3994 = vmul.f32 %v3677, %v3930
          %v3995 = vmul.f32 %v3681, %v3931
          %v3996 = vmul.f32 %v3685, %v3932
          %v3997 = vmul.f32 %v3689, %v3933
          %v3998 = vmul.f32 %v3696, %v3934
          %v3999 = vmul.f32 %v3700, %v3935
          %v4000 = vmul.f32 %v3704, %v3936
          %v4001 = vmul.f32 %v3708, %v3937
          %v4002 = vmul.f32 %v3715, %v3938
          %v4003 = vmul.f32 %v3719, %v3939
          %v4004 = vmul.f32 %v3723, %v3940
          %v4005 = vmul.f32 %v3727, %v3941
          %v4006 = vmul.f32 %v3734, %v3942
          %v4007 = vmul.f32 %v3738, %v3943
          %v4008 = vmul.f32 %v3742, %v3944
          %v4009 = vmul.f32 %v3746, %v3945
          %v4010 = vmul.f32 %v3753, %v3946
          %v4011 = vmul.f32 %v3757, %v3947
          %v4012 = vmul.f32 %v3761, %v3948
          %v4013 = vmul.f32 %v3765, %v3949
          %v4014 = vmul.f32 %v3772, %v3950
          %v4015 = vmul.f32 %v3776, %v3951
          %v4016 = vmul.f32 %v3780, %v3952
          %v4017 = vmul.f32 %v3784, %v3953
          %v4018 = vmul.f32 %v3791, %v3954
          %v4019 = vmul.f32 %v3795, %v3955
          %v4020 = vmul.f32 %v3799, %v3956
          %v4021 = vmul.f32 %v3803, %v3957
          %v4022 = vmul.f32 %v3810, %v3958
          %v4023 = vmul.f32 %v3814, %v3959
          %v4024 = vmul.f32 %v3818, %v3960
          %v4025 = vmul.f32 %v3822, %v3961
          %v4026 = vmul.f32 %v3829, %v3962
          %v4027 = vmul.f32 %v3833, %v3963
          %v4028 = vmul.f32 %v3837, %v3964
          %v4029 = vmul.f32 %v3841, %v3965
          %v4030 = vmul.f32 %v3848, %v3966
          %v4031 = vmul.f32 %v3852, %v3967
          %v4032 = vmul.f32 %v3856, %v3968
          %v4033 = vmul.f32 %v3860, %v3969
          %v4034 = vmul.f32 %v3867, %v3970
          %v4035 = vmul.f32 %v3871, %v3971
          %v4036 = vmul.f32 %v3875, %v3972
          %v4037 = vmul.f32 %v3879, %v3973
          %v4038 = vmul.f32 %v3886, %v3974
          %v4039 = vmul.f32 %v3890, %v3975
          %v4040 = vmul.f32 %v3894, %v3976
          %v4041 = vmul.f32 %v3898, %v3977
          %v4042 = vmul.f32 %v3905, %v3978
          %v4043 = vmul.f32 %v3909, %v3979
          %v4044 = vmul.f32 %v3913, %v3980
          %v4045 = vmul.f32 %v3917, %v3981
          %vm4046 = vcmask 89088
          %v4047 = vsel %vm4046, %v3982, 0.0
          %v4048 = vsel %vm4046, %v3983, 0.0
          %v4049 = vadd.f32 %v4047, %v4048
          %v4050 = vsel %vm4046, %v3984, 0.0
          %v4051 = vadd.f32 %v4049, %v4050
          %v4052 = vsel %vm4046, %v3985, 0.0
          %v4053 = vadd.f32 %v4051, %v4052
          %v4054 = vrot.slane %v4053, 4
          %v4055 = vadd.f32 %v4053, %v4054
          %v4056 = vrot.slane %v4055, 2
          %v4057 = vadd.f32 %v4055, %v4056
          %v4058 = vrot.slane %v4057, 1
          %v4059 = vadd.f32 %v4057, %v4058
          %v4060 = vsel %vm4046, %v3986, 0.0
          %v4061 = vsel %vm4046, %v3987, 0.0
          %v4062 = vadd.f32 %v4060, %v4061
          %v4063 = vsel %vm4046, %v3988, 0.0
          %v4064 = vadd.f32 %v4062, %v4063
          %v4065 = vsel %vm4046, %v3989, 0.0
          %v4066 = vadd.f32 %v4064, %v4065
          %v4067 = vrot.slane %v4066, 4
          %v4068 = vadd.f32 %v4066, %v4067
          %v4069 = vrot.slane %v4068, 2
          %v4070 = vadd.f32 %v4068, %v4069
          %v4071 = vrot.slane %v4070, 1
          %v4072 = vadd.f32 %v4070, %v4071
          %v4073 = vsel %vm4046, %v3990, 0.0
          %v4074 = vsel %vm4046, %v3991, 0.0
          %v4075 = vadd.f32 %v4073, %v4074
          %v4076 = vsel %vm4046, %v3992, 0.0
          %v4077 = vadd.f32 %v4075, %v4076
          %v4078 = vsel %vm4046, %v3993, 0.0
          %v4079 = vadd.f32 %v4077, %v4078
          %v4080 = vrot.slane %v4079, 4
          %v4081 = vadd.f32 %v4079, %v4080
          %v4082 = vrot.slane %v4081, 2
          %v4083 = vadd.f32 %v4081, %v4082
          %v4084 = vrot.slane %v4083, 1
          %v4085 = vadd.f32 %v4083, %v4084
          %v4086 = vsel %vm4046, %v3994, 0.0
          %v4087 = vsel %vm4046, %v3995, 0.0
          %v4088 = vadd.f32 %v4086, %v4087
          %v4089 = vsel %vm4046, %v3996, 0.0
          %v4090 = vadd.f32 %v4088, %v4089
          %v4091 = vsel %vm4046, %v3997, 0.0
          %v4092 = vadd.f32 %v4090, %v4091
          %v4093 = vrot.slane %v4092, 4
          %v4094 = vadd.f32 %v4092, %v4093
          %v4095 = vrot.slane %v4094, 2
          %v4096 = vadd.f32 %v4094, %v4095
          %v4097 = vrot.slane %v4096, 1
          %v4098 = vadd.f32 %v4096, %v4097
          %v4099 = vsel %vm4046, %v3998, 0.0
          %v4100 = vsel %vm4046, %v3999, 0.0
          %v4101 = vadd.f32 %v4099, %v4100
          %v4102 = vsel %vm4046, %v4000, 0.0
          %v4103 = vadd.f32 %v4101, %v4102
          %v4104 = vsel %vm4046, %v4001, 0.0
          %v4105 = vadd.f32 %v4103, %v4104
          %v4106 = vrot.slane %v4105, 4
          %v4107 = vadd.f32 %v4105, %v4106
          %v4108 = vrot.slane %v4107, 2
          %v4109 = vadd.f32 %v4107, %v4108
          %v4110 = vrot.slane %v4109, 1
          %v4111 = vadd.f32 %v4109, %v4110
          %v4112 = vsel %vm4046, %v4002, 0.0
          %v4113 = vsel %vm4046, %v4003, 0.0
          %v4114 = vadd.f32 %v4112, %v4113
          %v4115 = vsel %vm4046, %v4004, 0.0
          %v4116 = vadd.f32 %v4114, %v4115
          %v4117 = vsel %vm4046, %v4005, 0.0
          %v4118 = vadd.f32 %v4116, %v4117
          %v4119 = vrot.slane %v4118, 4
          %v4120 = vadd.f32 %v4118, %v4119
          %v4121 = vrot.slane %v4120, 2
          %v4122 = vadd.f32 %v4120, %v4121
          %v4123 = vrot.slane %v4122, 1
          %v4124 = vadd.f32 %v4122, %v4123
          %v4125 = vsel %vm4046, %v4006, 0.0
          %v4126 = vsel %vm4046, %v4007, 0.0
          %v4127 = vadd.f32 %v4125, %v4126
          %v4128 = vsel %vm4046, %v4008, 0.0
          %v4129 = vadd.f32 %v4127, %v4128
          %v4130 = vsel %vm4046, %v4009, 0.0
          %v4131 = vadd.f32 %v4129, %v4130
          %v4132 = vrot.slane %v4131, 4
          %v4133 = vadd.f32 %v4131, %v4132
          %v4134 = vrot.slane %v4133, 2
          %v4135 = vadd.f32 %v4133, %v4134
          %v4136 = vrot.slane %v4135, 1
          %v4137 = vadd.f32 %v4135, %v4136
          %v4138 = vsel %vm4046, %v4010, 0.0
          %v4139 = vsel %vm4046, %v4011, 0.0
          %v4140 = vadd.f32 %v4138, %v4139
          %v4141 = vsel %vm4046, %v4012, 0.0
          %v4142 = vadd.f32 %v4140, %v4141
          %v4143 = vsel %vm4046, %v4013, 0.0
          %v4144 = vadd.f32 %v4142, %v4143
          %v4145 = vrot.slane %v4144, 4
          %v4146 = vadd.f32 %v4144, %v4145
          %v4147 = vrot.slane %v4146, 2
          %v4148 = vadd.f32 %v4146, %v4147
          %v4149 = vrot.slane %v4148, 1
          %v4150 = vadd.f32 %v4148, %v4149
          %v4151 = vsel %vm4046, %v4014, 0.0
          %v4152 = vsel %vm4046, %v4015, 0.0
          %v4153 = vadd.f32 %v4151, %v4152
          %v4154 = vsel %vm4046, %v4016, 0.0
          %v4155 = vadd.f32 %v4153, %v4154
          %v4156 = vsel %vm4046, %v4017, 0.0
          %v4157 = vadd.f32 %v4155, %v4156
          %v4158 = vrot.slane %v4157, 4
          %v4159 = vadd.f32 %v4157, %v4158
          %v4160 = vrot.slane %v4159, 2
          %v4161 = vadd.f32 %v4159, %v4160
          %v4162 = vrot.slane %v4161, 1
          %v4163 = vadd.f32 %v4161, %v4162
          %v4164 = vsel %vm4046, %v4018, 0.0
          %v4165 = vsel %vm4046, %v4019, 0.0
          %v4166 = vadd.f32 %v4164, %v4165
          %v4167 = vsel %vm4046, %v4020, 0.0
          %v4168 = vadd.f32 %v4166, %v4167
          %v4169 = vsel %vm4046, %v4021, 0.0
          %v4170 = vadd.f32 %v4168, %v4169
          %v4171 = vrot.slane %v4170, 4
          %v4172 = vadd.f32 %v4170, %v4171
          %v4173 = vrot.slane %v4172, 2
          %v4174 = vadd.f32 %v4172, %v4173
          %v4175 = vrot.slane %v4174, 1
          %v4176 = vadd.f32 %v4174, %v4175
          %v4177 = vsel %vm4046, %v4022, 0.0
          %v4178 = vsel %vm4046, %v4023, 0.0
          %v4179 = vadd.f32 %v4177, %v4178
          %v4180 = vsel %vm4046, %v4024, 0.0
          %v4181 = vadd.f32 %v4179, %v4180
          %v4182 = vsel %vm4046, %v4025, 0.0
          %v4183 = vadd.f32 %v4181, %v4182
          %v4184 = vrot.slane %v4183, 4
          %v4185 = vadd.f32 %v4183, %v4184
          %v4186 = vrot.slane %v4185, 2
          %v4187 = vadd.f32 %v4185, %v4186
          %v4188 = vrot.slane %v4187, 1
          %v4189 = vadd.f32 %v4187, %v4188
          %v4190 = vsel %vm4046, %v4026, 0.0
          %v4191 = vsel %vm4046, %v4027, 0.0
          %v4192 = vadd.f32 %v4190, %v4191
          %v4193 = vsel %vm4046, %v4028, 0.0
          %v4194 = vadd.f32 %v4192, %v4193
          %v4195 = vsel %vm4046, %v4029, 0.0
          %v4196 = vadd.f32 %v4194, %v4195
          %v4197 = vrot.slane %v4196, 4
          %v4198 = vadd.f32 %v4196, %v4197
          %v4199 = vrot.slane %v4198, 2
          %v4200 = vadd.f32 %v4198, %v4199
          %v4201 = vrot.slane %v4200, 1
          %v4202 = vadd.f32 %v4200, %v4201
          %v4203 = vsel %vm4046, %v4030, 0.0
          %v4204 = vsel %vm4046, %v4031, 0.0
          %v4205 = vadd.f32 %v4203, %v4204
          %v4206 = vsel %vm4046, %v4032, 0.0
          %v4207 = vadd.f32 %v4205, %v4206
          %v4208 = vsel %vm4046, %v4033, 0.0
          %v4209 = vadd.f32 %v4207, %v4208
          %v4210 = vrot.slane %v4209, 4
          %v4211 = vadd.f32 %v4209, %v4210
          %v4212 = vrot.slane %v4211, 2
          %v4213 = vadd.f32 %v4211, %v4212
          %v4214 = vrot.slane %v4213, 1
          %v4215 = vadd.f32 %v4213, %v4214
          %v4216 = vsel %vm4046, %v4034, 0.0
          %v4217 = vsel %vm4046, %v4035, 0.0
          %v4218 = vadd.f32 %v4216, %v4217
          %v4219 = vsel %vm4046, %v4036, 0.0
          %v4220 = vadd.f32 %v4218, %v4219
          %v4221 = vsel %vm4046, %v4037, 0.0
          %v4222 = vadd.f32 %v4220, %v4221
          %v4223 = vrot.slane %v4222, 4
          %v4224 = vadd.f32 %v4222, %v4223
          %v4225 = vrot.slane %v4224, 2
          %v4226 = vadd.f32 %v4224, %v4225
          %v4227 = vrot.slane %v4226, 1
          %v4228 = vadd.f32 %v4226, %v4227
          %v4229 = vsel %vm4046, %v4038, 0.0
          %v4230 = vsel %vm4046, %v4039, 0.0
          %v4231 = vadd.f32 %v4229, %v4230
          %v4232 = vsel %vm4046, %v4040, 0.0
          %v4233 = vadd.f32 %v4231, %v4232
          %v4234 = vsel %vm4046, %v4041, 0.0
          %v4235 = vadd.f32 %v4233, %v4234
          %v4236 = vrot.slane %v4235, 4
          %v4237 = vadd.f32 %v4235, %v4236
          %v4238 = vrot.slane %v4237, 2
          %v4239 = vadd.f32 %v4237, %v4238
          %v4240 = vrot.slane %v4239, 1
          %v4241 = vadd.f32 %v4239, %v4240
          %v4242 = vsel %vm4046, %v4042, 0.0
          %v4243 = vsel %vm4046, %v4043, 0.0
          %v4244 = vadd.f32 %v4242, %v4243
          %v4245 = vsel %vm4046, %v4044, 0.0
          %v4246 = vadd.f32 %v4244, %v4245
          %v4247 = vsel %vm4046, %v4045, 0.0
          %v4248 = vadd.f32 %v4246, %v4247
          %v4249 = vrot.slane %v4248, 4
          %v4250 = vadd.f32 %v4248, %v4249
          %v4251 = vrot.slane %v4250, 2
          %v4252 = vadd.f32 %v4250, %v4251
          %v4253 = vrot.slane %v4252, 1
          %v4254 = vadd.f32 %v4252, %v4253
          %v4271 = vsel %vm1650, %v4072, %v4059
          %v4272 = vsel %vm1652, %v4085, %v4271
          %v4273 = vsel %vm1654, %v4098, %v4272
          %v4274 = vsel %vm1656, %v4111, %v4273
          %v4275 = vsel %vm1658, %v4124, %v4274
          %v4276 = vsel %vm1660, %v4137, %v4275
          %v4277 = vsel %vm1662, %v4150, %v4276
          %v4278 = vsel %vm1650, %v4176, %v4163
          %v4279 = vsel %vm1652, %v4189, %v4278
          %v4280 = vsel %vm1654, %v4202, %v4279
          %v4281 = vsel %vm1656, %v4215, %v4280
          %v4282 = vsel %vm1658, %v4228, %v4281
          %v4283 = vsel %vm1660, %v4241, %v4282
          %v4284 = vsel %vm1662, %v4254, %v4283
          %4287 = vst.msk [vmem:[%s589] sm:$0xff] %vm4046, %v4277
          %4288 = vst.msk [vmem:[%s589 + $0x8] sm:$0xff] %vm4046, %v4284
        $region71: #{direction_estimation_forward.1} parent=58 // pred_fallthru
          _
        %s4289 = sand.u32 %s157, 1
        %s4290 = scalar_lea.sflag [#allocation5], %s4289
        %s4291 = sand.u32 %s157, 1
        %s4292 = smul.addr %s4291, 16
        %s4293 = scalar_lea.vmem [#allocation4], %s4292
        %s4294 = sand.u32 %s183, 1
        %s4295 = scalar_lea.sflag [#allocation7], %s4294
        %s4296 = sand.u32 %s183, 1
        %s4297 = smul.addr %s4296, 16
        %s4298 = scalar_lea.vmem [#allocation6], %s4297
        %p4299 = scmp.lt.s32.totalorder %s29, 1
        %s4300 = scalar_select %p4299, %s29, 1
        %s4301 = smul.addr %s4300, 2
        %s4302 = smul.addr %s4301, 8
        %s4303 = scalar_lea.vmem %s7, %s4302
        // Predicated region
        $region72: #{direction_estimation_forward.1} parent=58 // pred_check
          %p4304 = pneg %p167
        $region73: #{direction_estimation_forward.1} parent=58 // pred_check_branch
          %4306 = sbr.rel (%p4304) target = $region75
        $region74: #{direction_estimation_forward.1} parent=58 // pred_region
          %s4308 = ssub.s32 256, 256
          %4309 = vsyncadd %s4290, %s4308
          %s4310 = smul.addr %s29, 2
          %s4311 = smul.addr %s4310, 128
          %s4312 = scalar_lea.hbm %s5, %s4311
          %s4313 = sshll.u32 %s4293, 4
          %s4314 = int_to_ptr.vmem [resolvable:$true] %s4313
          %4319 = dma.vmem_to_hbm [thread:$0]  %s4314, 256, %s4312, %s4290, 128, 128, 8
        $region75: #{direction_estimation_forward.1} parent=58 // pred_fallthru
          _
        // Predicated region
        $region76: #{direction_estimation_forward.1} parent=58 // pred_check
          %p4320 = pneg %p193
        $region77: #{direction_estimation_forward.1} parent=58 // pred_check_branch
          %4322 = sbr.rel (%p4320) target = $region79
        $region78: #{direction_estimation_forward.1} parent=58 // pred_region
          %s4324 = ssub.s32 256, 256
          %4325 = vsyncadd %s4295, %s4324
          %s4326 = smul.addr %s29, 2
          %s4327 = smul.addr %s4326, 128
          %s4328 = scalar_lea.hbm %s6, %s4327
          %s4329 = sshll.u32 %s4298, 4
          %s4330 = int_to_ptr.vmem [resolvable:$true] %s4329
          %4335 = dma.vmem_to_hbm [thread:$0]  %s4330, 256, %s4328, %s4295, 128, 128, 8
        $region79: #{direction_estimation_forward.1} parent=58 // pred_fallthru
          _
        // Predicated region
        $region80: #{direction_estimation_forward.1} parent=58 // pred_check
          %p4336 = pneg %p219
        $region81: #{direction_estimation_forward.1} parent=58 // pred_check_branch
          %4338 = sbr.rel (%p4336) target = $region83
        $region82: #{direction_estimation_forward.1} parent=58 // pred_region
          _
        $region83: #{direction_estimation_forward.1} parent=58 // pred_fallthru
          _
      $region59: #{direction_estimation_forward.1} parent=5 // pred_fallthru
        _
      %p4339 = scmp.le.s32.totalorder 2, %s20
      // Predicated region
      $region84: #{direction_estimation_forward.1} parent=5 // pred_check
        %p4340 = pneg %p4339
      $region85: #{direction_estimation_forward.1} parent=5 // pred_check_branch
        %4342 = sbr.rel (%p4340) target = $region87
      $region86: #{direction_estimation_forward.1} parent=5 // pred_region
        %s4343 = ssub.s32 %s20, 2
        // Predicated region
        $region88: #{direction_estimation_forward.1} parent=86 // pred_check
          %p4344 = pneg %p173
        $region89: #{direction_estimation_forward.1} parent=86 // pred_check_branch
          %4346 = sbr.rel (%p4344) target = $region91
        $region90: #{direction_estimation_forward.1} parent=86 // pred_region
          %s4347 = sand.u32 %s158, 1
          %s4348 = scalar_lea.sflag [#allocation5], %s4347
          %s4349 = sand.u32 %s158, 1
          %s4350 = smul.addr %s4349, 16
          %s4351 = scalar_lea.vmem [#allocation4], %s4350
          %4352 = dma.done %s4348, 256
        $region91: #{direction_estimation_forward.1} parent=86 // pred_fallthru
          _
        // Predicated region
        $region92: #{direction_estimation_forward.1} parent=86 // pred_check
          %p4353 = pneg %p199
        $region93: #{direction_estimation_forward.1} parent=86 // pred_check_branch
          %4355 = sbr.rel (%p4353) target = $region95
        $region94: #{direction_estimation_forward.1} parent=86 // pred_region
          %s4356 = sand.u32 %s184, 1
          %s4357 = scalar_lea.sflag [#allocation7], %s4356
          %s4358 = sand.u32 %s184, 1
          %s4359 = smul.addr %s4358, 16
          %s4360 = scalar_lea.vmem [#allocation6], %s4359
          %4361 = dma.done %s4357, 256
        $region95: #{direction_estimation_forward.1} parent=86 // pred_fallthru
          _
        // Predicated region
        $region96: #{direction_estimation_forward.1} parent=86 // pred_check
          %p4362 = pneg %p225
        $region97: #{direction_estimation_forward.1} parent=86 // pred_check_branch
          %4364 = sbr.rel (%p4362) target = $region99
        $region98: #{direction_estimation_forward.1} parent=86 // pred_region
          %p4365 = scmp.lt.s32.totalorder %s31, 1
          %s4366 = scalar_select %p4365, %s31, 1
          %s4367 = smul.addr %s4366, 2
          %s4368 = smul.addr %s4367, 8
          %s4369 = scalar_lea.vmem %s7, %s4368
        $region99: #{direction_estimation_forward.1} parent=86 // pred_fallthru
          _
      $region87: #{direction_estimation_forward.1} parent=5 // pred_fallthru
        _
    $region6: #{direction_estimation_forward.1} parent=1 // loop_footer
      %s24 = sadd.s32 1, %s20
    $region7: #{direction_estimation_forward.1} parent=1 // loop_footer_branch
      %19 = sbr.rel target = $region3
    $region8: #{direction_estimation_forward.1} parent=1 // loop_exit
      _
    %4370 = vsyncpa [#allocation5], 1
    %s4371 = scalar_lea.sflag [#allocation5], 1
    %4372 = vsyncpa %s4371, 1
    %4373 = vsyncpa [#allocation7], 1
    %s4374 = scalar_lea.sflag [#allocation7], 1
    %4375 = vsyncpa %s4374, 1

</llo_original>
